<compile_context>
chip_gen: v7x
topology: tpu7x:2x2x1
jax: 0.10.0
libtpu: 0.0.40
codegen_flags: <defaults>
</compile_context>

<pallas_src>
import jax
import jax.numpy as jnp
from jax import lax
from jax.experimental import pallas as pl
from jax.experimental.pallas import tpu as pltpu


def lstm_reg_kernel(x_ref, wih_ref, whh_ref, b_ref,
                    w1_ref, b1_ref, w2_ref, b2_ref, out_ref):
    """One block of B independent sequences per grid step (batch-along-lanes).

    x_ref   : (I, T, B)   B input sequences, batch on the lane axis
    wih_ref : (4H, I)     W_ih (PyTorch orientation)
    whh_ref : (4H, H)     W_hh
    b_ref   : (4H, 1)     b_ih + b_hh
    w1_ref  : (H, H)      reg linear-1 weight
    b1_ref  : (H, 1)
    w2_ref  : (O, H)      reg linear-2 weight
    b2_ref  : (O, 1)
    out_ref : (O, B)
    """
    I, T, B = x_ref.shape
    GH, H = whh_ref.shape          # GH == 4*H

    whh = whh_ref[...]

    # Hoisted input projection: one big MXU pass for the whole block,
    # gates_x[:, t*B:(t+1)*B] is the (4H, B) input contribution of step t.
    x = x_ref[...].reshape(I, T * B)
    gates_x = (jnp.dot(wih_ref[...], x, preferred_element_type=jnp.float32)
               + b_ref[...])                                   # (4H, T*B)

    # Sublane (row) mask selecting the "g" (cell candidate) block of [i,f,g,o].
    row = lax.broadcasted_iota(jnp.int32, (GH, 1), 0)
    g_mask = (row >= 2 * H) & (row < 3 * H)
    # sigmoid(x) = 0.5*tanh(x/2) + 0.5  ->  pre-scale non-g rows by 0.5,
    # single tanh pass over the full gate tensor, then fix up non-g rows.
    pre_scale = jnp.where(g_mask, 1.0, 0.5).astype(jnp.float32)  # (4H, 1)

    h = jnp.zeros((H, B), jnp.float32)
    c = jnp.zeros((H, B), jnp.float32)

    # T is small and static -> fully unrolled recurrence (static slices only).
    for t in range(T):
        g_pre = gates_x[:, t * B:(t + 1) * B]                  # (4H, B)
        if t > 0:                                              # h == 0 at t == 0
            g_pre = g_pre + jnp.dot(whh, h,
                                    preferred_element_type=jnp.float32)
        act = jnp.tanh(g_pre * pre_scale)                      # one EUP pass
        act = jnp.where(g_mask, act, 0.5 * act + 0.5)          # sigmoid fixup (VPU)
        i_g = act[0 * H:1 * H, :]
        f_g = act[1 * H:2 * H, :]
        g_g = act[2 * H:3 * H, :]
        o_g = act[3 * H:4 * H, :]
        c = f_g * c + i_g * g_g
        h = o_g * jnp.tanh(c)

    # reg head: Linear -> ReLU -> Linear  (h.reshape(1,-1) == h since batch=1
    # per sequence; here applied to all B lanes at once).
    hid = jnp.dot(w1_ref[...], h, preferred_element_type=jnp.float32) + b1_ref[...]
    hid = jnp.maximum(hid, 0.0)
    out = jnp.dot(w2_ref[...], hid, preferred_element_type=jnp.float32) + b2_ref[...]
    out_ref[...] = out.astype(out_ref.dtype)                   # lane-dense (O, B) store


def lstm_forward_sequences(seqs, params, block_b=256):
    """seqs: (N, T, I) = N independent (batch=1) sequences.  Returns (N, O).

    block_b: sequences per grid block (256 for v6e/v7x, 128 is a good v5e pick).
    """
    N, T, I = seqs.shape
    wih, whh, bias, w1, b1, w2, b2 = params
    O = w2.shape[0]

    if N <= block_b:
        B, Np = N, N                      # single block, no padding
    else:
        B = block_b
        Np = pl.cdiv(N, B) * B            # pad batch up to a multiple of B

    # Batch-along-lanes layout: (I, T, N); contiguous (I, T, B) blocks per step.
    x = jnp.transpose(seqs.astype(jnp.float32), (2, 1, 0))
    if Np != N:
        x = jnp.pad(x, ((0, 0), (0, 0), (0, Np - N)))

    vmem_full = pl.BlockSpec(memory_space=pltpu.MemorySpace.VMEM)

    out = pl.pallas_call(
        lstm_reg_kernel,
        out_shape=jax.ShapeDtypeStruct((O, Np), jnp.float32),
        grid=(Np // B,),
        in_specs=[
            pl.BlockSpec((I, T, B), lambda n: (0, 0, n)),   # B sequences per step
            vmem_full,   # wih
            vmem_full,   # whh
            vmem_full,   # bias
            vmem_full,   # w1
            vmem_full,   # b1
            vmem_full,   # w2
            vmem_full,   # b2
        ],
        out_specs=pl.BlockSpec((O, B), lambda n: (0, n)),
        compiler_params=pltpu.CompilerParams(
            dimension_semantics=("parallel",)),
    )(x, wih, whh, bias, w1, b1, w2, b2)
    return out[:, :N].T                   # (N, O)


def lstm_forward(input_seq, params):
    """Module-exact call: input_seq (1, T, I) -> (1, output_size)."""
    assert input_seq.shape[0] == 1, "module's h.reshape(1,-1) requires batch=1"
    return lstm_forward_sequences(input_seq, params)


def make_params(key, input_size, hidden_size, output_size):
    """Deterministic synthetic parameters with PyTorch-equivalent shapes."""
    ks = jax.random.split(key, 8)
    s = 0.1
    # nn.LSTM parameters (single layer), PyTorch orientation (4H, I)/(4H, H).
    w_ih = jax.random.normal(ks[0], (4 * hidden_size, input_size), jnp.float32) * s
    w_hh = jax.random.normal(ks[1], (4 * hidden_size, hidden_size), jnp.float32) * s
    b_ih = jax.random.normal(ks[2], (4 * hidden_size,), jnp.float32) * s
    b_hh = jax.random.normal(ks[3], (4 * hidden_size,), jnp.float32) * s
    # reg head: Linear(H, H), Linear(H, O) in PyTorch orientation.
    w1 = jax.random.normal(ks[4], (hidden_size, hidden_size), jnp.float32) * s
    b1 = jax.random.normal(ks[5], (hidden_size,), jnp.float32) * s
    w2 = jax.random.normal(ks[6], (output_size, hidden_size), jnp.float32) * s
    b2 = jax.random.normal(ks[7], (output_size,), jnp.float32) * s

    return (w_ih, w_hh, (b_ih + b_hh)[:, None],
            w1, b1[:, None], w2, b2[:, None])


def reference_forward_sequences(seqs, params):
    """Pure-JAX reference of the same forward pass for all N sequences."""
    wih, whh, bias, w1, b1, w2, b2 = params
    N, T, I = seqs.shape
    H = whh.shape[1]
    h = jnp.zeros((N, H), jnp.float32)
    c = jnp.zeros((N, H), jnp.float32)
    for t in range(T):
        gates = seqs[:, t, :] @ wih.T + h @ whh.T + bias[:, 0]   # (N, 4H)
        i_g = jax.nn.sigmoid(gates[:, 0 * H:1 * H])
        f_g = jax.nn.sigmoid(gates[:, 1 * H:2 * H])
        g_g = jnp.tanh(gates[:, 2 * H:3 * H])
        o_g = jax.nn.sigmoid(gates[:, 3 * H:4 * H])
        c = f_g * c + i_g * g_g
        h = o_g * jnp.tanh(c)
    hid = jnp.maximum(h @ w1.T + b1[:, 0], 0.0)
    return hid @ w2.T + b2[:, 0]


if __name__ == "__main__":
    input_size, hidden_size, output_size = 8, 32, 4
    seq_len = 8

    key = jax.random.PRNGKey(0)
    k_x, k_p = jax.random.split(key)
    params = make_params(k_p, input_size, hidden_size, output_size)

    # 1) Module-exact case: one (1, T, I) sequence -> (1, O).
    x1 = jax.random.normal(k_x, (1, seq_len, input_size), jnp.float32)
    out1 = jax.block_until_ready(lstm_forward(x1, params))
    ref1 = reference_forward_sequences(x1, params)
    assert out1.shape == (1, output_size), out1.shape
    assert jnp.allclose(out1, ref1, atol=1e-4, rtol=1e-4), (out1, ref1)

    # 2) Many independent sequences, batched 256 per grid block (2 parallel
    #    blocks -> both v7x TensorCores get work).
    n_seq = 512
    xs = jax.random.normal(jax.random.fold_in(k_x, 1),
                           (n_seq, seq_len, input_size), jnp.float32)
    outs = jax.block_until_ready(lstm_forward_sequences(xs, params, block_b=256))
    refs = reference_forward_sequences(xs, params)
    assert outs.shape == (n_seq, output_size), outs.shape
    assert jnp.allclose(outs, refs, atol=1e-4, rtol=1e-4), (
        jnp.max(jnp.abs(outs - refs)))

    # 3) Padding path: N not a multiple of the block size.
    n_seq = 300
    xs = jax.random.normal(jax.random.fold_in(k_x, 2),
                           (n_seq, seq_len, input_size), jnp.float32)
    outs = jax.block_until_ready(lstm_forward_sequences(xs, params, block_b=256))
    refs = reference_forward_sequences(xs, params)
    assert outs.shape == (n_seq, output_size), outs.shape
    assert jnp.allclose(outs, refs, atol=1e-4, rtol=1e-4), (
        jnp.max(jnp.abs(outs - refs)))

    print("KERNEL_OK")
</pallas_src>

<mosaic_0001>
module attributes {stable_mosaic.version = 11 : i64} {
  func.func @lstm_reg_kernel(%arg0: i32, %arg1: memref<8x8x1xf32, #tpu.memory_space<vmem>>, %arg2: memref<128x8xf32, #tpu.memory_space<vmem>>, %arg3: memref<128x32xf32, #tpu.memory_space<vmem>>, %arg4: memref<128x1xf32, #tpu.memory_space<vmem>>, %arg5: memref<32x32xf32, #tpu.memory_space<vmem>>, %arg6: memref<32x1xf32, #tpu.memory_space<vmem>>, %arg7: memref<4x32xf32, #tpu.memory_space<vmem>>, %arg8: memref<4x1xf32, #tpu.memory_space<vmem>>, %arg9: memref<4x1xf32, #tpu.memory_space<vmem>>) attributes {dimension_semantics = [#tpu.dimension_semantics<parallel>], iteration_bounds = array<i64: 1>, scalar_prefetch = 0 : i64, scratch_operands = 0 : i64, tpu.core_type = #tpu.core_type<tc>, window_params = [{transform_indices = @transform_0, window_bounds = array<i64: 8, 8, 1>}, {pipeline_mode = #tpu.pipeline_mode<synchronous>, transform_indices = @transform_1, window_bounds = array<i64: 128, 8>}, {pipeline_mode = #tpu.pipeline_mode<synchronous>, transform_indices = @transform_2, window_bounds = array<i64: 128, 32>}, {pipeline_mode = #tpu.pipeline_mode<synchronous>, transform_indices = @transform_3, window_bounds = array<i64: 128, 1>}, {pipeline_mode = #tpu.pipeline_mode<synchronous>, transform_indices = @transform_4, window_bounds = array<i64: 32, 32>}, {pipeline_mode = #tpu.pipeline_mode<synchronous>, transform_indices = @transform_5, window_bounds = array<i64: 32, 1>}, {pipeline_mode = #tpu.pipeline_mode<synchronous>, transform_indices = @transform_6, window_bounds = array<i64: 4, 32>}, {pipeline_mode = #tpu.pipeline_mode<synchronous>, transform_indices = @transform_7, window_bounds = array<i64: 4, 1>}, {transform_indices = @transform_8, window_bounds = array<i64: 4, 1>}]} {
    %c0 = arith.constant 0 : index
    %c0_0 = arith.constant 0 : index
    %0 = vector.load %arg3[%c0, %c0_0] : memref<128x32xf32, #tpu.memory_space<vmem>>, vector<128x32xf32>
    %c0_1 = arith.constant 0 : index
    %c0_2 = arith.constant 0 : index
    %c0_3 = arith.constant 0 : index
    %1 = vector.load %arg1[%c0_1, %c0_2, %c0_3] : memref<8x8x1xf32, #tpu.memory_space<vmem>>, vector<8x8x1xf32>
    %2 = vector.shape_cast %1 : vector<8x8x1xf32> to vector<8x8xf32>
    %c0_4 = arith.constant 0 : index
    %c0_5 = arith.constant 0 : index
    %3 = vector.load %arg2[%c0_4, %c0_5] : memref<128x8xf32, #tpu.memory_space<vmem>>, vector<128x8xf32>
    %cst = arith.constant dense<0.000000e+00> : vector<128x8xf32>
    %4 = tpu.matmul %3, %2, %cst {dimension_numbers = #tpu.dot_dimension_numbers<[1], [0], [0], [1], [0, 0, 1, 1], [], []>} : vector<128x8xf32>, vector<8x8xf32>, vector<128x8xf32> -> vector<128x8xf32>
    %c0_6 = arith.constant 0 : index
    %c0_7 = arith.constant 0 : index
    %5 = vector.load %arg4[%c0_6, %c0_7] : memref<128x1xf32, #tpu.memory_space<vmem>>, vector<128x1xf32>
    %6 = vector.broadcast %5 : vector<128x1xf32> to vector<128x8xf32>
    %7 = arith.addf %4, %6 : vector<128x8xf32>
    %8 = tpu.iota {dimensions = array<i32: 0>} : vector<128x1xi32>
    %c64_i32 = arith.constant 64 : i32
    %9 = vector.broadcast %c64_i32 : i32 to vector<128x1xi32>
    %10 = arith.cmpi sge, %8, %9 : vector<128x1xi32>
    %c96_i32 = arith.constant 96 : i32
    %11 = vector.broadcast %c96_i32 : i32 to vector<128x1xi32>
    %12 = arith.cmpi slt, %8, %11 : vector<128x1xi32>
    %13 = arith.andi %10, %12 : vector<128x1xi1>
    %cst_8 = arith.constant 1.000000e+00 : f32
    %cst_9 = arith.constant 5.000000e-01 : f32
    %14 = vector.broadcast %cst_8 : f32 to vector<128x1xf32>
    %15 = vector.broadcast %cst_9 : f32 to vector<128x1xf32>
    %16 = arith.select %13, %14, %15 : vector<128x1xi1>, vector<128x1xf32>
    %cst_10 = arith.constant 0.000000e+00 : f32
    %17 = vector.broadcast %cst_10 : f32 to vector<32x1xf32>
    %18 = vector.extract_strided_slice %7 {offsets = [0, 0], sizes = [128, 1], strides = [1, 1]} : vector<128x8xf32> to vector<128x1xf32>
    %19 = arith.mulf %18, %16 : vector<128x1xf32>
    %20 = math.tanh %19 : vector<128x1xf32>
    %cst_11 = arith.constant 5.000000e-01 : f32
    %21 = vector.broadcast %cst_11 : f32 to vector<128x1xf32>
    %22 = arith.mulf %21, %20 : vector<128x1xf32>
    %cst_12 = arith.constant 5.000000e-01 : f32
    %23 = vector.broadcast %cst_12 : f32 to vector<128x1xf32>
    %24 = arith.addf %22, %23 : vector<128x1xf32>
    %25 = arith.select %13, %20, %24 : vector<128x1xi1>, vector<128x1xf32>
    %26 = vector.extract_strided_slice %25 {offsets = [0, 0], sizes = [32, 1], strides = [1, 1]} : vector<128x1xf32> to vector<32x1xf32>
    %27 = vector.extract_strided_slice %25 {offsets = [32, 0], sizes = [32, 1], strides = [1, 1]} : vector<128x1xf32> to vector<32x1xf32>
    %28 = vector.extract_strided_slice %25 {offsets = [64, 0], sizes = [32, 1], strides = [1, 1]} : vector<128x1xf32> to vector<32x1xf32>
    %29 = vector.extract_strided_slice %25 {offsets = [96, 0], sizes = [32, 1], strides = [1, 1]} : vector<128x1xf32> to vector<32x1xf32>
    %30 = arith.mulf %27, %17 : vector<32x1xf32>
    %31 = arith.mulf %26, %28 : vector<32x1xf32>
    %32 = arith.addf %30, %31 : vector<32x1xf32>
    %33 = math.tanh %32 : vector<32x1xf32>
    %34 = arith.mulf %29, %33 : vector<32x1xf32>
    %35 = vector.extract_strided_slice %7 {offsets = [0, 1], sizes = [128, 1], strides = [1, 1]} : vector<128x8xf32> to vector<128x1xf32>
    %cst_13 = arith.constant dense<0.000000e+00> : vector<128x1xf32>
    %36 = tpu.matmul %0, %34, %cst_13 {dimension_numbers = #tpu.dot_dimension_numbers<[1], [0], [0], [1], [0, 0, 1, 1], [], []>} : vector<128x32xf32>, vector<32x1xf32>, vector<128x1xf32> -> vector<128x1xf32>
    %37 = arith.addf %35, %36 : vector<128x1xf32>
    %38 = arith.mulf %37, %16 : vector<128x1xf32>
    %39 = math.tanh %38 : vector<128x1xf32>
    %cst_14 = arith.constant 5.000000e-01 : f32
    %40 = vector.broadcast %cst_14 : f32 to vector<128x1xf32>
    %41 = arith.mulf %40, %39 : vector<128x1xf32>
    %cst_15 = arith.constant 5.000000e-01 : f32
    %42 = vector.broadcast %cst_15 : f32 to vector<128x1xf32>
    %43 = arith.addf %41, %42 : vector<128x1xf32>
    %44 = arith.select %13, %39, %43 : vector<128x1xi1>, vector<128x1xf32>
    %45 = vector.extract_strided_slice %44 {offsets = [0, 0], sizes = [32, 1], strides = [1, 1]} : vector<128x1xf32> to vector<32x1xf32>
    %46 = vector.extract_strided_slice %44 {offsets = [32, 0], sizes = [32, 1], strides = [1, 1]} : vector<128x1xf32> to vector<32x1xf32>
    %47 = vector.extract_strided_slice %44 {offsets = [64, 0], sizes = [32, 1], strides = [1, 1]} : vector<128x1xf32> to vector<32x1xf32>
    %48 = vector.extract_strided_slice %44 {offsets = [96, 0], sizes = [32, 1], strides = [1, 1]} : vector<128x1xf32> to vector<32x1xf32>
    %49 = arith.mulf %46, %32 : vector<32x1xf32>
    %50 = arith.mulf %45, %47 : vector<32x1xf32>
    %51 = arith.addf %49, %50 : vector<32x1xf32>
    %52 = math.tanh %51 : vector<32x1xf32>
    %53 = arith.mulf %48, %52 : vector<32x1xf32>
    %54 = vector.extract_strided_slice %7 {offsets = [0, 2], sizes = [128, 1], strides = [1, 1]} : vector<128x8xf32> to vector<128x1xf32>
    %cst_16 = arith.constant dense<0.000000e+00> : vector<128x1xf32>
    %55 = tpu.matmul %0, %53, %cst_16 {dimension_numbers = #tpu.dot_dimension_numbers<[1], [0], [0], [1], [0, 0, 1, 1], [], []>} : vector<128x32xf32>, vector<32x1xf32>, vector<128x1xf32> -> vector<128x1xf32>
    %56 = arith.addf %54, %55 : vector<128x1xf32>
    %57 = arith.mulf %56, %16 : vector<128x1xf32>
    %58 = math.tanh %57 : vector<128x1xf32>
    %cst_17 = arith.constant 5.000000e-01 : f32
    %59 = vector.broadcast %cst_17 : f32 to vector<128x1xf32>
    %60 = arith.mulf %59, %58 : vector<128x1xf32>
    %cst_18 = arith.constant 5.000000e-01 : f32
    %61 = vector.broadcast %cst_18 : f32 to vector<128x1xf32>
    %62 = arith.addf %60, %61 : vector<128x1xf32>
    %63 = arith.select %13, %58, %62 : vector<128x1xi1>, vector<128x1xf32>
    %64 = vector.extract_strided_slice %63 {offsets = [0, 0], sizes = [32, 1], strides = [1, 1]} : vector<128x1xf32> to vector<32x1xf32>
    %65 = vector.extract_strided_slice %63 {offsets = [32, 0], sizes = [32, 1], strides = [1, 1]} : vector<128x1xf32> to vector<32x1xf32>
    %66 = vector.extract_strided_slice %63 {offsets = [64, 0], sizes = [32, 1], strides = [1, 1]} : vector<128x1xf32> to vector<32x1xf32>
    %67 = vector.extract_strided_slice %63 {offsets = [96, 0], sizes = [32, 1], strides = [1, 1]} : vector<128x1xf32> to vector<32x1xf32>
    %68 = arith.mulf %65, %51 : vector<32x1xf32>
    %69 = arith.mulf %64, %66 : vector<32x1xf32>
    %70 = arith.addf %68, %69 : vector<32x1xf32>
    %71 = math.tanh %70 : vector<32x1xf32>
    %72 = arith.mulf %67, %71 : vector<32x1xf32>
    %73 = vector.extract_strided_slice %7 {offsets = [0, 3], sizes = [128, 1], strides = [1, 1]} : vector<128x8xf32> to vector<128x1xf32>
    %cst_19 = arith.constant dense<0.000000e+00> : vector<128x1xf32>
    %74 = tpu.matmul %0, %72, %cst_19 {dimension_numbers = #tpu.dot_dimension_numbers<[1], [0], [0], [1], [0, 0, 1, 1], [], []>} : vector<128x32xf32>, vector<32x1xf32>, vector<128x1xf32> -> vector<128x1xf32>
    %75 = arith.addf %73, %74 : vector<128x1xf32>
    %76 = arith.mulf %75, %16 : vector<128x1xf32>
    %77 = math.tanh %76 : vector<128x1xf32>
    %cst_20 = arith.constant 5.000000e-01 : f32
    %78 = vector.broadcast %cst_20 : f32 to vector<128x1xf32>
    %79 = arith.mulf %78, %77 : vector<128x1xf32>
    %cst_21 = arith.constant 5.000000e-01 : f32
    %80 = vector.broadcast %cst_21 : f32 to vector<128x1xf32>
    %81 = arith.addf %79, %80 : vector<128x1xf32>
    %82 = arith.select %13, %77, %81 : vector<128x1xi1>, vector<128x1xf32>
    %83 = vector.extract_strided_slice %82 {offsets = [0, 0], sizes = [32, 1], strides = [1, 1]} : vector<128x1xf32> to vector<32x1xf32>
    %84 = vector.extract_strided_slice %82 {offsets = [32, 0], sizes = [32, 1], strides = [1, 1]} : vector<128x1xf32> to vector<32x1xf32>
    %85 = vector.extract_strided_slice %82 {offsets = [64, 0], sizes = [32, 1], strides = [1, 1]} : vector<128x1xf32> to vector<32x1xf32>
    %86 = vector.extract_strided_slice %82 {offsets = [96, 0], sizes = [32, 1], strides = [1, 1]} : vector<128x1xf32> to vector<32x1xf32>
    %87 = arith.mulf %84, %70 : vector<32x1xf32>
    %88 = arith.mulf %83, %85 : vector<32x1xf32>
    %89 = arith.addf %87, %88 : vector<32x1xf32>
    %90 = math.tanh %89 : vector<32x1xf32>
    %91 = arith.mulf %86, %90 : vector<32x1xf32>
    %92 = vector.extract_strided_slice %7 {offsets = [0, 4], sizes = [128, 1], strides = [1, 1]} : vector<128x8xf32> to vector<128x1xf32>
    %cst_22 = arith.constant dense<0.000000e+00> : vector<128x1xf32>
    %93 = tpu.matmul %0, %91, %cst_22 {dimension_numbers = #tpu.dot_dimension_numbers<[1], [0], [0], [1], [0, 0, 1, 1], [], []>} : vector<128x32xf32>, vector<32x1xf32>, vector<128x1xf32> -> vector<128x1xf32>
    %94 = arith.addf %92, %93 : vector<128x1xf32>
    %95 = arith.mulf %94, %16 : vector<128x1xf32>
    %96 = math.tanh %95 : vector<128x1xf32>
    %cst_23 = arith.constant 5.000000e-01 : f32
    %97 = vector.broadcast %cst_23 : f32 to vector<128x1xf32>
    %98 = arith.mulf %97, %96 : vector<128x1xf32>
    %cst_24 = arith.constant 5.000000e-01 : f32
    %99 = vector.broadcast %cst_24 : f32 to vector<128x1xf32>
    %100 = arith.addf %98, %99 : vector<128x1xf32>
    %101 = arith.select %13, %96, %100 : vector<128x1xi1>, vector<128x1xf32>
    %102 = vector.extract_strided_slice %101 {offsets = [0, 0], sizes = [32, 1], strides = [1, 1]} : vector<128x1xf32> to vector<32x1xf32>
    %103 = vector.extract_strided_slice %101 {offsets = [32, 0], sizes = [32, 1], strides = [1, 1]} : vector<128x1xf32> to vector<32x1xf32>
    %104 = vector.extract_strided_slice %101 {offsets = [64, 0], sizes = [32, 1], strides = [1, 1]} : vector<128x1xf32> to vector<32x1xf32>
    %105 = vector.extract_strided_slice %101 {offsets = [96, 0], sizes = [32, 1], strides = [1, 1]} : vector<128x1xf32> to vector<32x1xf32>
    %106 = arith.mulf %103, %89 : vector<32x1xf32>
    %107 = arith.mulf %102, %104 : vector<32x1xf32>
    %108 = arith.addf %106, %107 : vector<32x1xf32>
    %109 = math.tanh %108 : vector<32x1xf32>
    %110 = arith.mulf %105, %109 : vector<32x1xf32>
    %111 = vector.extract_strided_slice %7 {offsets = [0, 5], sizes = [128, 1], strides = [1, 1]} : vector<128x8xf32> to vector<128x1xf32>
    %cst_25 = arith.constant dense<0.000000e+00> : vector<128x1xf32>
    %112 = tpu.matmul %0, %110, %cst_25 {dimension_numbers = #tpu.dot_dimension_numbers<[1], [0], [0], [1], [0, 0, 1, 1], [], []>} : vector<128x32xf32>, vector<32x1xf32>, vector<128x1xf32> -> vector<128x1xf32>
    %113 = arith.addf %111, %112 : vector<128x1xf32>
    %114 = arith.mulf %113, %16 : vector<128x1xf32>
    %115 = math.tanh %114 : vector<128x1xf32>
    %cst_26 = arith.constant 5.000000e-01 : f32
    %116 = vector.broadcast %cst_26 : f32 to vector<128x1xf32>
    %117 = arith.mulf %116, %115 : vector<128x1xf32>
    %cst_27 = arith.constant 5.000000e-01 : f32
    %118 = vector.broadcast %cst_27 : f32 to vector<128x1xf32>
    %119 = arith.addf %117, %118 : vector<128x1xf32>
    %120 = arith.select %13, %115, %119 : vector<128x1xi1>, vector<128x1xf32>
    %121 = vector.extract_strided_slice %120 {offsets = [0, 0], sizes = [32, 1], strides = [1, 1]} : vector<128x1xf32> to vector<32x1xf32>
    %122 = vector.extract_strided_slice %120 {offsets = [32, 0], sizes = [32, 1], strides = [1, 1]} : vector<128x1xf32> to vector<32x1xf32>
    %123 = vector.extract_strided_slice %120 {offsets = [64, 0], sizes = [32, 1], strides = [1, 1]} : vector<128x1xf32> to vector<32x1xf32>
    %124 = vector.extract_strided_slice %120 {offsets = [96, 0], sizes = [32, 1], strides = [1, 1]} : vector<128x1xf32> to vector<32x1xf32>
    %125 = arith.mulf %122, %108 : vector<32x1xf32>
    %126 = arith.mulf %121, %123 : vector<32x1xf32>
    %127 = arith.addf %125, %126 : vector<32x1xf32>
    %128 = math.tanh %127 : vector<32x1xf32>
    %129 = arith.mulf %124, %128 : vector<32x1xf32>
    %130 = vector.extract_strided_slice %7 {offsets = [0, 6], sizes = [128, 1], strides = [1, 1]} : vector<128x8xf32> to vector<128x1xf32>
    %cst_28 = arith.constant dense<0.000000e+00> : vector<128x1xf32>
    %131 = tpu.matmul %0, %129, %cst_28 {dimension_numbers = #tpu.dot_dimension_numbers<[1], [0], [0], [1], [0, 0, 1, 1], [], []>} : vector<128x32xf32>, vector<32x1xf32>, vector<128x1xf32> -> vector<128x1xf32>
    %132 = arith.addf %130, %131 : vector<128x1xf32>
    %133 = arith.mulf %132, %16 : vector<128x1xf32>
    %134 = math.tanh %133 : vector<128x1xf32>
    %cst_29 = arith.constant 5.000000e-01 : f32
    %135 = vector.broadcast %cst_29 : f32 to vector<128x1xf32>
    %136 = arith.mulf %135, %134 : vector<128x1xf32>
    %cst_30 = arith.constant 5.000000e-01 : f32
    %137 = vector.broadcast %cst_30 : f32 to vector<128x1xf32>
    %138 = arith.addf %136, %137 : vector<128x1xf32>
    %139 = arith.select %13, %134, %138 : vector<128x1xi1>, vector<128x1xf32>
    %140 = vector.extract_strided_slice %139 {offsets = [0, 0], sizes = [32, 1], strides = [1, 1]} : vector<128x1xf32> to vector<32x1xf32>
    %141 = vector.extract_strided_slice %139 {offsets = [32, 0], sizes = [32, 1], strides = [1, 1]} : vector<128x1xf32> to vector<32x1xf32>
    %142 = vector.extract_strided_slice %139 {offsets = [64, 0], sizes = [32, 1], strides = [1, 1]} : vector<128x1xf32> to vector<32x1xf32>
    %143 = vector.extract_strided_slice %139 {offsets = [96, 0], sizes = [32, 1], strides = [1, 1]} : vector<128x1xf32> to vector<32x1xf32>
    %144 = arith.mulf %141, %127 : vector<32x1xf32>
    %145 = arith.mulf %140, %142 : vector<32x1xf32>
    %146 = arith.addf %144, %145 : vector<32x1xf32>
    %147 = math.tanh %146 : vector<32x1xf32>
    %148 = arith.mulf %143, %147 : vector<32x1xf32>
    %149 = vector.extract_strided_slice %7 {offsets = [0, 7], sizes = [128, 1], strides = [1, 1]} : vector<128x8xf32> to vector<128x1xf32>
    %cst_31 = arith.constant dense<0.000000e+00> : vector<128x1xf32>
    %150 = tpu.matmul %0, %148, %cst_31 {dimension_numbers = #tpu.dot_dimension_numbers<[1], [0], [0], [1], [0, 0, 1, 1], [], []>} : vector<128x32xf32>, vector<32x1xf32>, vector<128x1xf32> -> vector<128x1xf32>
    %151 = arith.addf %149, %150 : vector<128x1xf32>
    %152 = arith.mulf %151, %16 : vector<128x1xf32>
    %153 = math.tanh %152 : vector<128x1xf32>
    %cst_32 = arith.constant 5.000000e-01 : f32
    %154 = vector.broadcast %cst_32 : f32 to vector<128x1xf32>
    %155 = arith.mulf %154, %153 : vector<128x1xf32>
    %cst_33 = arith.constant 5.000000e-01 : f32
    %156 = vector.broadcast %cst_33 : f32 to vector<128x1xf32>
    %157 = arith.addf %155, %156 : vector<128x1xf32>
    %158 = arith.select %13, %153, %157 : vector<128x1xi1>, vector<128x1xf32>
    %159 = vector.extract_strided_slice %158 {offsets = [0, 0], sizes = [32, 1], strides = [1, 1]} : vector<128x1xf32> to vector<32x1xf32>
    %160 = vector.extract_strided_slice %158 {offsets = [32, 0], sizes = [32, 1], strides = [1, 1]} : vector<128x1xf32> to vector<32x1xf32>
    %161 = vector.extract_strided_slice %158 {offsets = [64, 0], sizes = [32, 1], strides = [1, 1]} : vector<128x1xf32> to vector<32x1xf32>
    %162 = vector.extract_strided_slice %158 {offsets = [96, 0], sizes = [32, 1], strides = [1, 1]} : vector<128x1xf32> to vector<32x1xf32>
    %163 = arith.mulf %160, %146 : vector<32x1xf32>
    %164 = arith.mulf %159, %161 : vector<32x1xf32>
    %165 = arith.addf %163, %164 : vector<32x1xf32>
    %166 = math.tanh %165 : vector<32x1xf32>
    %167 = arith.mulf %162, %166 : vector<32x1xf32>
    %c0_34 = arith.constant 0 : index
    %c0_35 = arith.constant 0 : index
    %168 = vector.load %arg5[%c0_34, %c0_35] : memref<32x32xf32, #tpu.memory_space<vmem>>, vector<32x32xf32>
    %cst_36 = arith.constant dense<0.000000e+00> : vector<32x1xf32>
    %169 = tpu.matmul %168, %167, %cst_36 {dimension_numbers = #tpu.dot_dimension_numbers<[1], [0], [0], [1], [0, 0, 1, 1], [], []>} : vector<32x32xf32>, vector<32x1xf32>, vector<32x1xf32> -> vector<32x1xf32>
    %c0_37 = arith.constant 0 : index
    %c0_38 = arith.constant 0 : index
    %170 = vector.load %arg6[%c0_37, %c0_38] : memref<32x1xf32, #tpu.memory_space<vmem>>, vector<32x1xf32>
    %171 = arith.addf %169, %170 : vector<32x1xf32>
    %cst_39 = arith.constant 0.000000e+00 : f32
    %172 = vector.broadcast %cst_39 : f32 to vector<32x1xf32>
    %173 = arith.maximumf %171, %172 : vector<32x1xf32>
    %c0_40 = arith.constant 0 : index
    %c0_41 = arith.constant 0 : index
    %174 = vector.load %arg7[%c0_40, %c0_41] : memref<4x32xf32, #tpu.memory_space<vmem>>, vector<4x32xf32>
    %cst_42 = arith.constant dense<0.000000e+00> : vector<4x1xf32>
    %175 = tpu.matmul %174, %173, %cst_42 {dimension_numbers = #tpu.dot_dimension_numbers<[1], [0], [0], [1], [0, 0, 1, 1], [], []>} : vector<4x32xf32>, vector<32x1xf32>, vector<4x1xf32> -> vector<4x1xf32>
    %c0_43 = arith.constant 0 : index
    %c0_44 = arith.constant 0 : index
    %176 = vector.load %arg8[%c0_43, %c0_44] : memref<4x1xf32, #tpu.memory_space<vmem>>, vector<4x1xf32>
    %177 = arith.addf %175, %176 : vector<4x1xf32>
    %c0_45 = arith.constant 0 : index
    %c0_46 = arith.constant 0 : index
    %178 = vector.load %arg9[%c0_45, %c0_46] : memref<4x1xf32, #tpu.memory_space<vmem>>, vector<4x1xf32>
    tpu.vector_store %arg9[%c0_45, %c0_46], %177 {strides = array<i32>} : memref<4x1xf32, #tpu.memory_space<vmem>>, vector<4x1xf32>,
    return
  }
  func.func @transform_0(%arg0: i32) -> (i32, i32, i32) {
    %c0_i32 = arith.constant 0 : i32
    %c0_i32_0 = arith.constant 0 : i32
    %c0_i32_1 = arith.constant 0 : i32
    return %c0_i32, %c0_i32_0, %arg0 : i32, i32, i32
  }
  func.func @transform_1(%arg0: i32) -> (i32, i32) {
    %c0_i32 = arith.constant 0 : i32
    %c0_i32_0 = arith.constant 0 : i32
    %c0_i32_1 = arith.constant 0 : i32
    return %c0_i32, %c0_i32_0 : i32, i32
  }
  func.func @transform_2(%arg0: i32) -> (i32, i32) {
    %c0_i32 = arith.constant 0 : i32
    %c0_i32_0 = arith.constant 0 : i32
    %c0_i32_1 = arith.constant 0 : i32
    return %c0_i32, %c0_i32_0 : i32, i32
  }
  func.func @transform_3(%arg0: i32) -> (i32, i32) {
    %c0_i32 = arith.constant 0 : i32
    %c0_i32_0 = arith.constant 0 : i32
    %c0_i32_1 = arith.constant 0 : i32
    return %c0_i32, %c0_i32_0 : i32, i32
  }
  func.func @transform_4(%arg0: i32) -> (i32, i32) {
    %c0_i32 = arith.constant 0 : i32
    %c0_i32_0 = arith.constant 0 : i32
    %c0_i32_1 = arith.constant 0 : i32
    return %c0_i32, %c0_i32_0 : i32, i32
  }
  func.func @transform_5(%arg0: i32) -> (i32, i32) {
    %c0_i32 = arith.constant 0 : i32
    %c0_i32_0 = arith.constant 0 : i32
    %c0_i32_1 = arith.constant 0 : i32
    return %c0_i32, %c0_i32_0 : i32, i32
  }
  func.func @transform_6(%arg0: i32) -> (i32, i32) {
    %c0_i32 = arith.constant 0 : i32
    %c0_i32_0 = arith.constant 0 : i32
    %c0_i32_1 = arith.constant 0 : i32
    return %c0_i32, %c0_i32_0 : i32, i32
  }
  func.func @transform_7(%arg0: i32) -> (i32, i32) {
    %c0_i32 = arith.constant 0 : i32
    %c0_i32_0 = arith.constant 0 : i32
    %c0_i32_1 = arith.constant 0 : i32
    return %c0_i32, %c0_i32_0 : i32, i32
  }
  func.func @transform_8(%arg0: i32) -> (i32, i32) {
    %c0_i32 = arith.constant 0 : i32
    %c0_i32_0 = arith.constant 0 : i32
    return %c0_i32, %arg0 : i32, i32
  }
}

</mosaic_0001>

<llo_original>
// kernel: tpu_custom_call.1
$region0: #{tpu_custom_call.1}
  #allocation0 [shape = 'u32[]', space=smem, size = 0x4, offset = 0x4, fixed_abs, tag = 'smem constant byte address 0x4 - core index']
  #allocation1 [shape = 'u32[144,128]{1,0:T(1,128)}', space=vmem, size = 0x12000, scoped, tag = 'internal scratch']
  %s0 = inlined_call_operand.vmem [shape: f32[8,8,1], index: 0, kind: input, shape index: {}]
  %s1 = inlined_call_operand.vmem [shape: f32[128,8], index: 1, kind: input, shape index: {}]
  %s2 = inlined_call_operand.vmem [shape: f32[128,32], index: 2, kind: input, shape index: {}]
  %s3 = inlined_call_operand.vmem [shape: f32[128,1], index: 3, kind: input, shape index: {}]
  %s4 = inlined_call_operand.vmem [shape: f32[32,32], index: 4, kind: input, shape index: {}]
  %s5 = inlined_call_operand.vmem [shape: f32[32,1], index: 5, kind: input, shape index: {}]
  %s6 = inlined_call_operand.vmem [shape: f32[4,32], index: 6, kind: input, shape index: {}]
  %s7 = inlined_call_operand.vmem [shape: f32[4,1], index: 7, kind: input, shape index: {}]
  %s8 = inlined_call_operand.vmem [shape: f32[4,1], index: 8, kind: output, shape index: {}]
  %s9 = sld [smem:[#allocation0]]
  $region42: #{tpu_custom_call.1} parent=0
    _
  %s11 = ssub.s32 1, %s9
  %s12 = scalar_select 0, %s11, %s9
  // Predicated region
  $region2: #{tpu_custom_call.1} parent=0 // pred_check
    _
  $region3: #{tpu_custom_call.1} parent=0 // pred_check_branch
    %14 = sbr.rel (0) target = $region5
  $region4: #{tpu_custom_call.1} parent=0 // pred_region
    _
  $region5: #{tpu_custom_call.1} parent=0 // pred_fallthru
    _
  // Predicated region
  $region6: #{tpu_custom_call.1} parent=0 // pred_check
    _
  $region7: #{tpu_custom_call.1} parent=0 // pred_check_branch
    %16 = sbr.rel (0) target = $region9
  $region8: #{tpu_custom_call.1} parent=0 // pred_region
    _
  $region9: #{tpu_custom_call.1} parent=0 // pred_fallthru
    _
  // Predicated region
  $region10: #{tpu_custom_call.1} parent=0 // pred_check
    _
  $region11: #{tpu_custom_call.1} parent=0 // pred_check_branch
    %18 = sbr.rel (0) target = $region13
  $region12: #{tpu_custom_call.1} parent=0 // pred_region
    _
  $region13: #{tpu_custom_call.1} parent=0 // pred_fallthru
    _
  // Predicated region
  $region14: #{tpu_custom_call.1} parent=0 // pred_check
    _
  $region15: #{tpu_custom_call.1} parent=0 // pred_check_branch
    %20 = sbr.rel (0) target = $region17
  $region16: #{tpu_custom_call.1} parent=0 // pred_region
    _
  $region17: #{tpu_custom_call.1} parent=0 // pred_fallthru
    _
  // Predicated region
  $region18: #{tpu_custom_call.1} parent=0 // pred_check
    _
  $region19: #{tpu_custom_call.1} parent=0 // pred_check_branch
    %22 = sbr.rel (0) target = $region21
  $region20: #{tpu_custom_call.1} parent=0 // pred_region
    _
  $region21: #{tpu_custom_call.1} parent=0 // pred_fallthru
    _
  // Predicated region
  $region22: #{tpu_custom_call.1} parent=0 // pred_check
    _
  $region23: #{tpu_custom_call.1} parent=0 // pred_check_branch
    %24 = sbr.rel (0) target = $region25
  $region24: #{tpu_custom_call.1} parent=0 // pred_region
    _
  $region25: #{tpu_custom_call.1} parent=0 // pred_fallthru
    _
  // Predicated region
  $region26: #{tpu_custom_call.1} parent=0 // pred_check
    _
  $region27: #{tpu_custom_call.1} parent=0 // pred_check_branch
    %26 = sbr.rel (0) target = $region29
  $region28: #{tpu_custom_call.1} parent=0 // pred_region
    _
  $region29: #{tpu_custom_call.1} parent=0 // pred_fallthru
    _
  // Predicated region
  $region30: #{tpu_custom_call.1} parent=0 // pred_check
    _
  $region31: #{tpu_custom_call.1} parent=0 // pred_check_branch
    %28 = sbr.rel (0) target = $region33
  $region32: #{tpu_custom_call.1} parent=0 // pred_region
    _
  $region33: #{tpu_custom_call.1} parent=0 // pred_fallthru
    _
  %v29 = vld [vmem:[%s2] sm:$0xff]
  %v30 = vld [vmem:[%s2 + $0x8] sm:$0xff]
  %v31 = vld [vmem:[%s2 + $0x10] sm:$0xff]
  %v32 = vld [vmem:[%s2 + $0x18] sm:$0xff]
  %v33 = vld [vmem:[%s2 + $0x20] sm:$0xff]
  %v34 = vld [vmem:[%s2 + $0x28] sm:$0xff]
  %v35 = vld [vmem:[%s2 + $0x30] sm:$0xff]
  %v36 = vld [vmem:[%s2 + $0x38] sm:$0xff]
  %v37 = vld [vmem:[%s2 + $0x40] sm:$0xff]
  %v38 = vld [vmem:[%s2 + $0x48] sm:$0xff]
  %v39 = vld [vmem:[%s2 + $0x50] sm:$0xff]
  %v40 = vld [vmem:[%s2 + $0x58] sm:$0xff]
  %v41 = vld [vmem:[%s2 + $0x60] sm:$0xff]
  %v42 = vld [vmem:[%s2 + $0x68] sm:$0xff]
  %v43 = vld [vmem:[%s2 + $0x70] sm:$0xff]
  %v44 = vld [vmem:[%s2 + $0x78] sm:$0xff]
  %v45 = vld [vmem:[%s0] sm:$0xff]
  %v46 = vld [vmem:[%s0 + $0x8] sm:$0xff]
  %v47 = vld [vmem:[%s0 + $0x10] sm:$0xff]
  %v48 = vld [vmem:[%s0 + $0x18] sm:$0xff]
  %v49 = vld [vmem:[%s0 + $0x20] sm:$0xff]
  %v50 = vld [vmem:[%s0 + $0x28] sm:$0xff]
  %v51 = vld [vmem:[%s0 + $0x30] sm:$0xff]
  %v52 = vld [vmem:[%s0 + $0x38] sm:$0xff]
  %v53 = vld [vmem:[%s1] sm:$0xff]
  %v54 = vld [vmem:[%s1 + $0x8] sm:$0xff]
  %v55 = vld [vmem:[%s1 + $0x10] sm:$0xff]
  %v56 = vld [vmem:[%s1 + $0x18] sm:$0xff]
  %v57 = vld [vmem:[%s1 + $0x20] sm:$0xff]
  %v58 = vld [vmem:[%s1 + $0x28] sm:$0xff]
  %v59 = vld [vmem:[%s1 + $0x30] sm:$0xff]
  %v60 = vld [vmem:[%s1 + $0x38] sm:$0xff]
  %v61 = vld [vmem:[%s1 + $0x40] sm:$0xff]
  %v62 = vld [vmem:[%s1 + $0x48] sm:$0xff]
  %v63 = vld [vmem:[%s1 + $0x50] sm:$0xff]
  %v64 = vld [vmem:[%s1 + $0x58] sm:$0xff]
  %v65 = vld [vmem:[%s1 + $0x60] sm:$0xff]
  %v66 = vld [vmem:[%s1 + $0x68] sm:$0xff]
  %v67 = vld [vmem:[%s1 + $0x70] sm:$0xff]
  %v68 = vld [vmem:[%s1 + $0x78] sm:$0xff]
  %v69 = vld [vmem:[%s3] sm:$0xff]
  %v70 = vld [vmem:[%s3 + $0x8] sm:$0xff]
  %v71 = vld [vmem:[%s3 + $0x10] sm:$0xff]
  %v72 = vld [vmem:[%s3 + $0x18] sm:$0xff]
  %v73 = vld [vmem:[%s3 + $0x20] sm:$0xff]
  %v74 = vld [vmem:[%s3 + $0x28] sm:$0xff]
  %v75 = vld [vmem:[%s3 + $0x30] sm:$0xff]
  %v76 = vld [vmem:[%s3 + $0x38] sm:$0xff]
  %v77 = vld [vmem:[%s3 + $0x40] sm:$0xff]
  %v78 = vld [vmem:[%s3 + $0x48] sm:$0xff]
  %v79 = vld [vmem:[%s3 + $0x50] sm:$0xff]
  %v80 = vld [vmem:[%s3 + $0x58] sm:$0xff]
  %v81 = vld [vmem:[%s3 + $0x60] sm:$0xff]
  %v82 = vld [vmem:[%s3 + $0x68] sm:$0xff]
  %v83 = vld [vmem:[%s3 + $0x70] sm:$0xff]
  %v84 = vld [vmem:[%s3 + $0x78] sm:$0xff]
  %86 = vset.pattern.permute.xlu0 0
  %87 = vperm.xlu0 %86, %v69
  %v88 = vpop.permute.xlu0 %87
  %91 = vset.pattern.permute.xlu0 0
  %92 = vperm.xlu0 %91, %v70
  %v93 = vpop.permute.xlu0 %92
  %96 = vset.pattern.permute.xlu0 0
  %97 = vperm.xlu0 %96, %v71
  %v98 = vpop.permute.xlu0 %97
  %101 = vset.pattern.permute.xlu0 0
  %102 = vperm.xlu0 %101, %v72
  %v103 = vpop.permute.xlu0 %102
  %106 = vset.pattern.permute.xlu0 0
  %107 = vperm.xlu0 %106, %v73
  %v108 = vpop.permute.xlu0 %107
  %111 = vset.pattern.permute.xlu0 0
  %112 = vperm.xlu0 %111, %v74
  %v113 = vpop.permute.xlu0 %112
  %116 = vset.pattern.permute.xlu0 0
  %117 = vperm.xlu0 %116, %v75
  %v118 = vpop.permute.xlu0 %117
  %121 = vset.pattern.permute.xlu0 0
  %122 = vperm.xlu0 %121, %v76
  %v123 = vpop.permute.xlu0 %122
  %126 = vset.pattern.permute.xlu0 0
  %127 = vperm.xlu0 %126, %v77
  %v128 = vpop.permute.xlu0 %127
  %131 = vset.pattern.permute.xlu0 0
  %132 = vperm.xlu0 %131, %v78
  %v133 = vpop.permute.xlu0 %132
  %136 = vset.pattern.permute.xlu0 0
  %137 = vperm.xlu0 %136, %v79
  %v138 = vpop.permute.xlu0 %137
  %141 = vset.pattern.permute.xlu0 0
  %142 = vperm.xlu0 %141, %v80
  %v143 = vpop.permute.xlu0 %142
  %146 = vset.pattern.permute.xlu0 0
  %147 = vperm.xlu0 %146, %v81
  %v148 = vpop.permute.xlu0 %147
  %151 = vset.pattern.permute.xlu0 0
  %152 = vperm.xlu0 %151, %v82
  %v153 = vpop.permute.xlu0 %152
  %156 = vset.pattern.permute.xlu0 0
  %157 = vperm.xlu0 %156, %v83
  %v158 = vpop.permute.xlu0 %157
  %161 = vset.pattern.permute.xlu0 0
  %162 = vperm.xlu0 %161, %v84
  %v163 = vpop.permute.xlu0 %162
  %173 = vset.pattern.permute.xlu0 0
  %174 = vperm.xlu0 %173, %v45
  %v175 = vpop.permute.xlu0 %174
  %176 = vset.pattern.permute.xlu0 0
  %177 = vperm.xlu0 %176, %v46
  %v178 = vpop.permute.xlu0 %177
  %179 = vset.pattern.permute.xlu0 0
  %180 = vperm.xlu0 %179, %v47
  %v181 = vpop.permute.xlu0 %180
  %182 = vset.pattern.permute.xlu0 0
  %183 = vperm.xlu0 %182, %v48
  %v184 = vpop.permute.xlu0 %183
  %185 = vset.pattern.permute.xlu0 0
  %186 = vperm.xlu0 %185, %v49
  %v187 = vpop.permute.xlu0 %186
  %188 = vset.pattern.permute.xlu0 0
  %189 = vperm.xlu0 %188, %v50
  %v190 = vpop.permute.xlu0 %189
  %191 = vset.pattern.permute.xlu0 0
  %192 = vperm.xlu0 %191, %v51
  %v193 = vpop.permute.xlu0 %192
  %194 = vset.pattern.permute.xlu0 0
  %195 = vperm.xlu0 %194, %v52
  %v196 = vpop.permute.xlu0 %195
  %v197 = vlaneseq
  %v198 = vand.u32 %v197, 127
  %v199 = vlaneseq
  %v200 = vshrl.u32 %v199, 7
  %v201 = vsub.s32 %v198, %v200
  %v202 = vrot.slane %v175, %v201
  %v203 = vlaneseq
  %v204 = vshrl.u32 %v203, 7
  %v205 = vsub.s32 %v198, %v204
  %v206 = vrot.slane %v178, %v205
  %v207 = vlaneseq
  %v208 = vshrl.u32 %v207, 7
  %v209 = vsub.s32 %v198, %v208
  %v210 = vrot.slane %v181, %v209
  %v211 = vlaneseq
  %v212 = vshrl.u32 %v211, 7
  %v213 = vsub.s32 %v198, %v212
  %v214 = vrot.slane %v184, %v213
  %v215 = vlaneseq
  %v216 = vshrl.u32 %v215, 7
  %v217 = vsub.s32 %v198, %v216
  %v218 = vrot.slane %v187, %v217
  %v219 = vlaneseq
  %v220 = vshrl.u32 %v219, 7
  %v221 = vsub.s32 %v198, %v220
  %v222 = vrot.slane %v190, %v221
  %v223 = vlaneseq
  %v224 = vshrl.u32 %v223, 7
  %v225 = vsub.s32 %v198, %v224
  %v226 = vrot.slane %v193, %v225
  %v227 = vlaneseq
  %v228 = vshrl.u32 %v227, 7
  %v229 = vsub.s32 %v198, %v228
  %v230 = vrot.slane %v196, %v229
  %vm231 = vcmask 1041409
  %v232 = vsel %vm231, %v206, %v202
  %vm233 = vcmask 1042434
  %v234 = vsel %vm233, %v210, %v232
  %vm235 = vcmask 1043459
  %v236 = vsel %vm235, %v214, %v234
  %vm237 = vcmask 1044484
  %v238 = vsel %vm237, %v218, %v236
  %vm239 = vcmask 1045509
  %v240 = vsel %vm239, %v222, %v238
  %vm241 = vcmask 1046534
  %v242 = vsel %vm241, %v226, %v240
  %vm243 = vcmask 1047559
  %v244 = vsel %vm243, %v230, %v242
  %vm246 = vcmask 64512
  %v248 = vsel %vm246, %v53, 0
  %v251 = vsel %vm246, %v54, 0
  %v254 = vsel %vm246, %v55, 0
  %v257 = vsel %vm246, %v56, 0
  %v260 = vsel %vm246, %v57, 0
  %v263 = vsel %vm246, %v58, 0
  %v266 = vsel %vm246, %v59, 0
  %v269 = vsel %vm246, %v60, 0
  %v272 = vsel %vm246, %v61, 0
  %v275 = vsel %vm246, %v62, 0
  %v278 = vsel %vm246, %v63, 0
  %v281 = vsel %vm246, %v64, 0
  %v284 = vsel %vm246, %v65, 0
  %v287 = vsel %vm246, %v66, 0
  %v290 = vsel %vm246, %v67, 0
  %v293 = vsel %vm246, %v68, 0
  %295 = vmatprep.subr.mxu0 0.0
  %296 = vmatpush1.msra.mxu0 %v244
  %297 = vmatprep.subr.mxu0 0.0
  %298 = vmatpush1.msra.mxu0 0.0
  %299 = vmatprep.subr.mxu0 0.0
  %300 = vmatpush1.msra.mxu0 0.0
  %301 = vmatprep.subr.mxu0 0.0
  %302 = vmatpush1.msra.mxu0 0.0
  %303 = vmatprep.subr.mxu0 0.0
  %304 = vmatpush1.msra.mxu0 0.0
  %305 = vmatprep.subr.mxu0 0.0
  %306 = vmatpush1.msra.mxu0 0.0
  %307 = vmatprep.subr.mxu0 0.0
  %308 = vmatpush1.msra.mxu0 0.0
  %309 = vmatprep.subr.mxu0 0.0
  %310 = vmatpush1.msra.mxu0 0.0
  %311 = vmatprep.subr.mxu0 0.0
  %312 = vmatpush1.msra.mxu0 0.0
  %313 = vmatprep.subr.mxu0 0.0
  %314 = vmatpush1.msra.mxu0 0.0
  %315 = vmatprep.subr.mxu0 0.0
  %316 = vmatpush1.msra.mxu0 0.0
  %317 = vmatprep.subr.mxu0 0.0
  %318 = vmatpush1.msra.mxu0 0.0
  %319 = vmatprep.subr.mxu0 0.0
  %320 = vmatpush1.msra.mxu0 0.0
  %321 = vmatprep.subr.mxu0 0.0
  %322 = vmatpush1.msra.mxu0 0.0
  %323 = vmatprep.subr.mxu0 0.0
  %324 = vmatpush1.msra.mxu0 0.0
  %325 = vmatprep.subr.mxu0 0.0
  %326 = vmatpush1.msra.mxu0 0.0
  %327 = vmatprep.subr.mxu0 0.0
  %328 = vmatpush1.msra.mxu0 0.0
  %329 = vmatprep.subr.mxu0 0.0
  %330 = vmatpush1.msra.mxu0 0.0
  %331 = vmatprep.subr.mxu0 0.0
  %332 = vmatpush1.msra.mxu0 0.0
  %333 = vmatprep.subr.mxu0 0.0
  %334 = vmatpush1.msra.mxu0 0.0
  %335 = vmatprep.subr.mxu0 0.0
  %336 = vmatpush1.msra.mxu0 0.0
  %337 = vmatprep.subr.mxu0 0.0
  %338 = vmatpush1.msra.mxu0 0.0
  %339 = vmatprep.subr.mxu0 0.0
  %340 = vmatpush1.msra.mxu0 0.0
  %341 = vmatprep.subr.mxu0 0.0
  %342 = vmatpush1.msra.mxu0 0.0
  %343 = vmatprep.subr.mxu0 0.0
  %344 = vmatpush1.msra.mxu0 0.0
  %345 = vmatprep.subr.mxu0 0.0
  %346 = vmatpush1.msra.mxu0 0.0
  %347 = vmatprep.subr.mxu0 0.0
  %348 = vmatpush1.msra.mxu0 0.0
  %349 = vmatprep.subr.mxu0 0.0
  %350 = vmatpush1.msra.mxu0 0.0
  %351 = vmatprep.subr.mxu0 0.0
  %352 = vmatpush1.msra.mxu0 0.0
  %353 = vmatprep.subr.mxu0 0.0
  %354 = vmatpush1.msra.mxu0 0.0
  %355 = vmatprep.subr.mxu0 0.0
  %356 = vmatpush1.msra.mxu0 0.0
  %357 = vmatprep.subr.mxu0 0.0
  %358 = vmatpush1.msra.mxu0 0.0
  %359 = vmatprep.mubr.f32.mxu0 0.0
  %360 = vmatmul.mubr.f32.gmra.mrb[0].mxu0 %v248
  %v361 = vpop.f32.mrb[0].mxu0
  %v362 = vadd.f32 %v88, %v361
  %v363 = vpop.f32.mrb[0].mxu0
  %364 = vmatprep.mubr.f32.mxu0 0.0
  %365 = vmatmul.mubr.f32.gmra.mrb[0].mxu0 %v251
  %v366 = vpop.f32.mrb[0].mxu0
  %v367 = vadd.f32 %v93, %v366
  %v368 = vpop.f32.mrb[0].mxu0
  %369 = vmatprep.mubr.f32.mxu0 0.0
  %370 = vmatmul.mubr.f32.gmra.mrb[0].mxu0 %v254
  %v371 = vpop.f32.mrb[0].mxu0
  %v372 = vadd.f32 %v98, %v371
  %v373 = vpop.f32.mrb[0].mxu0
  %374 = vmatprep.mubr.f32.mxu0 0.0
  %375 = vmatmul.mubr.f32.gmra.mrb[0].mxu0 %v257
  %v376 = vpop.f32.mrb[0].mxu0
  %v377 = vadd.f32 %v103, %v376
  %v378 = vpop.f32.mrb[0].mxu0
  %379 = vmatprep.mubr.f32.mxu0 0.0
  %380 = vmatmul.mubr.f32.gmra.mrb[0].mxu0 %v260
  %v381 = vpop.f32.mrb[0].mxu0
  %v382 = vadd.f32 %v108, %v381
  %v383 = vpop.f32.mrb[0].mxu0
  %384 = vmatprep.mubr.f32.mxu0 0.0
  %385 = vmatmul.mubr.f32.gmra.mrb[0].mxu0 %v263
  %v386 = vpop.f32.mrb[0].mxu0
  %v387 = vadd.f32 %v113, %v386
  %v388 = vpop.f32.mrb[0].mxu0
  %389 = vmatprep.mubr.f32.mxu0 0.0
  %390 = vmatmul.mubr.f32.gmra.mrb[0].mxu0 %v266
  %v391 = vpop.f32.mrb[0].mxu0
  %v392 = vadd.f32 %v118, %v391
  %v393 = vpop.f32.mrb[0].mxu0
  %394 = vmatprep.mubr.f32.mxu0 0.0
  %395 = vmatmul.mubr.f32.gmra.mrb[0].mxu0 %v269
  %v396 = vpop.f32.mrb[0].mxu0
  %v397 = vadd.f32 %v123, %v396
  %v398 = vpop.f32.mrb[0].mxu0
  %399 = vmatprep.mubr.f32.mxu0 0.0
  %400 = vmatmul.mubr.f32.gmra.mrb[0].mxu0 %v272
  %v401 = vpop.f32.mrb[0].mxu0
  %v402 = vadd.f32 %v128, %v401
  %v403 = vpop.f32.mrb[0].mxu0
  %404 = vmatprep.mubr.f32.mxu0 0.0
  %405 = vmatmul.mubr.f32.gmra.mrb[0].mxu0 %v275
  %v406 = vpop.f32.mrb[0].mxu0
  %v407 = vadd.f32 %v133, %v406
  %v408 = vpop.f32.mrb[0].mxu0
  %409 = vmatprep.mubr.f32.mxu0 0.0
  %410 = vmatmul.mubr.f32.gmra.mrb[0].mxu0 %v278
  %v411 = vpop.f32.mrb[0].mxu0
  %v412 = vadd.f32 %v138, %v411
  %v413 = vpop.f32.mrb[0].mxu0
  %414 = vmatprep.mubr.f32.mxu0 0.0
  %415 = vmatmul.mubr.f32.gmra.mrb[0].mxu0 %v281
  %v416 = vpop.f32.mrb[0].mxu0
  %v417 = vadd.f32 %v143, %v416
  %v418 = vpop.f32.mrb[0].mxu0
  %419 = vmatprep.mubr.f32.mxu0 0.0
  %420 = vmatmul.mubr.f32.gmra.mrb[0].mxu0 %v284
  %v421 = vpop.f32.mrb[0].mxu0
  %v422 = vadd.f32 %v148, %v421
  %v423 = vpop.f32.mrb[0].mxu0
  %424 = vmatprep.mubr.f32.mxu0 0.0
  %425 = vmatmul.mubr.f32.gmra.mrb[0].mxu0 %v287
  %v426 = vpop.f32.mrb[0].mxu0
  %v427 = vadd.f32 %v153, %v426
  %v428 = vpop.f32.mrb[0].mxu0
  %429 = vmatprep.mubr.f32.mxu0 0.0
  %430 = vmatmul.mubr.f32.gmra.mrb[0].mxu0 %v290
  %v431 = vpop.f32.mrb[0].mxu0
  %v432 = vadd.f32 %v158, %v431
  %v433 = vpop.f32.mrb[0].mxu0
  %434 = vmatprep.mubr.f32.mxu0 0.0
  %435 = vmatmul.mubr.f32.gmra.mrb[0].mxu0 %v293
  %v436 = vpop.f32.mrb[0].mxu0
  %v437 = vadd.f32 %v163, %v436
  %v438 = vpop.f32.mrb[0].mxu0
  %439 = vdwg.mxu0
  %v440 = vlaneseq
  %v441 = vshrl.u32 %v440, 7
  %v442 = vadd.s32 %v441, 8
  %v443 = vadd.s32 %v441, 16
  %v444 = vadd.s32 %v441, 24
  %v445 = vadd.s32 %v441, 32
  %v446 = vadd.s32 %v441, 40
  %v447 = vadd.s32 %v441, 48
  %v448 = vadd.s32 %v441, 56
  %v449 = vadd.s32 %v441, 64
  %v450 = vadd.s32 %v441, 72
  %v451 = vadd.s32 %v441, 80
  %v452 = vadd.s32 %v441, 88
  %v453 = vadd.s32 %v441, 96
  %v454 = vadd.s32 %v441, 104
  %v455 = vadd.s32 %v441, 112
  %v456 = vadd.s32 %v441, 120
  %vm457 = vcmp.ge.s32.totalorder %v441, 64
  %vm458 = vcmp.ge.s32.totalorder %v442, 64
  %vm459 = vcmp.ge.s32.totalorder %v443, 64
  %vm460 = vcmp.ge.s32.totalorder %v444, 64
  %vm461 = vcmp.ge.s32.totalorder %v445, 64
  %vm462 = vcmp.ge.s32.totalorder %v446, 64
  %vm463 = vcmp.ge.s32.totalorder %v447, 64
  %vm464 = vcmp.ge.s32.totalorder %v448, 64
  %vm465 = vcmp.ge.s32.totalorder %v449, 64
  %vm466 = vcmp.ge.s32.totalorder %v450, 64
  %vm467 = vcmp.ge.s32.totalorder %v451, 64
  %vm468 = vcmp.ge.s32.totalorder %v452, 64
  %vm469 = vcmp.ge.s32.totalorder %v453, 64
  %vm470 = vcmp.ge.s32.totalorder %v454, 64
  %vm471 = vcmp.ge.s32.totalorder %v455, 64
  %vm472 = vcmp.ge.s32.totalorder %v456, 64
  %vm473 = vcmp.lt.s32.totalorder %v441, 96
  %vm474 = vcmp.lt.s32.totalorder %v442, 96
  %vm475 = vcmp.lt.s32.totalorder %v443, 96
  %vm476 = vcmp.lt.s32.totalorder %v444, 96
  %vm477 = vcmp.lt.s32.totalorder %v445, 96
  %vm478 = vcmp.lt.s32.totalorder %v446, 96
  %vm479 = vcmp.lt.s32.totalorder %v447, 96
  %vm480 = vcmp.lt.s32.totalorder %v448, 96
  %vm481 = vcmp.lt.s32.totalorder %v449, 96
  %vm482 = vcmp.lt.s32.totalorder %v450, 96
  %vm483 = vcmp.lt.s32.totalorder %v451, 96
  %vm484 = vcmp.lt.s32.totalorder %v452, 96
  %vm485 = vcmp.lt.s32.totalorder %v453, 96
  %vm486 = vcmp.lt.s32.totalorder %v454, 96
  %vm487 = vcmp.lt.s32.totalorder %v455, 96
  %vm488 = vcmp.lt.s32.totalorder %v456, 96
  %vm489 = vmand %vm457, %vm473
  %vm490 = vmand %vm458, %vm474
  %vm491 = vmand %vm459, %vm475
  %vm492 = vmand %vm460, %vm476
  %vm493 = vmand %vm461, %vm477
  %vm494 = vmand %vm462, %vm478
  %vm495 = vmand %vm463, %vm479
  %vm496 = vmand %vm464, %vm480
  %vm497 = vmand %vm465, %vm481
  %vm498 = vmand %vm466, %vm482
  %vm499 = vmand %vm467, %vm483
  %vm500 = vmand %vm468, %vm484
  %vm501 = vmand %vm469, %vm485
  %vm502 = vmand %vm470, %vm486
  %vm503 = vmand %vm471, %vm487
  %vm504 = vmand %vm472, %vm488
  %v505 = vsel %vm489, 1.0, 0.5
  %v506 = vsel %vm490, 1.0, 0.5
  %v507 = vsel %vm491, 1.0, 0.5
  %v508 = vsel %vm492, 1.0, 0.5
  %v509 = vsel %vm493, 1.0, 0.5
  %v510 = vsel %vm494, 1.0, 0.5
  %v511 = vsel %vm495, 1.0, 0.5
  %v512 = vsel %vm496, 1.0, 0.5
  %v513 = vsel %vm497, 1.0, 0.5
  %v514 = vsel %vm498, 1.0, 0.5
  %v515 = vsel %vm499, 1.0, 0.5
  %v516 = vsel %vm500, 1.0, 0.5
  %v517 = vsel %vm501, 1.0, 0.5
  %v518 = vsel %vm502, 1.0, 0.5
  %v519 = vsel %vm503, 1.0, 0.5
  %v520 = vsel %vm504, 1.0, 0.5
  %v521 = vmul.f32 %v362, %v505
  %v522 = vmul.f32 %v367, %v506
  %v523 = vmul.f32 %v372, %v507
  %v524 = vmul.f32 %v377, %v508
  %v525 = vmul.f32 %v382, %v509
  %v526 = vmul.f32 %v387, %v510
  %v527 = vmul.f32 %v392, %v511
  %v528 = vmul.f32 %v397, %v512
  %v529 = vmul.f32 %v402, %v513
  %v530 = vmul.f32 %v407, %v514
  %v531 = vmul.f32 %v412, %v515
  %v532 = vmul.f32 %v417, %v516
  %v533 = vmul.f32 %v422, %v517
  %v534 = vmul.f32 %v427, %v518
  %v535 = vmul.f32 %v432, %v519
  %v536 = vmul.f32 %v437, %v520
  %v537 = vtanh.pop %v521
  %v538 = vtanh.pop %v522
  %v539 = vtanh.pop %v523
  %v540 = vtanh.pop %v524
  %v541 = vtanh.pop %v525
  %v542 = vtanh.pop %v526
  %v543 = vtanh.pop %v527
  %v544 = vtanh.pop %v528
  %v545 = vtanh.pop %v529
  %v546 = vtanh.pop %v530
  %v547 = vtanh.pop %v531
  %v548 = vtanh.pop %v532
  %v549 = vtanh.pop %v533
  %v550 = vtanh.pop %v534
  %v551 = vtanh.pop %v535
  %v552 = vtanh.pop %v536
  %v553 = vmul.f32 %v537, 0.5
  %v554 = vmul.f32 %v538, 0.5
  %v555 = vmul.f32 %v539, 0.5
  %v556 = vmul.f32 %v540, 0.5
  %v557 = vmul.f32 %v541, 0.5
  %v558 = vmul.f32 %v542, 0.5
  %v559 = vmul.f32 %v543, 0.5
  %v560 = vmul.f32 %v544, 0.5
  %v561 = vmul.f32 %v545, 0.5
  %v562 = vmul.f32 %v546, 0.5
  %v563 = vmul.f32 %v547, 0.5
  %v564 = vmul.f32 %v548, 0.5
  %v565 = vmul.f32 %v549, 0.5
  %v566 = vmul.f32 %v550, 0.5
  %v567 = vmul.f32 %v551, 0.5
  %v568 = vmul.f32 %v552, 0.5
  %v569 = vadd.f32 %v553, 0.5
  %v570 = vadd.f32 %v554, 0.5
  %v571 = vadd.f32 %v555, 0.5
  %v572 = vadd.f32 %v556, 0.5
  %v573 = vadd.f32 %v557, 0.5
  %v574 = vadd.f32 %v558, 0.5
  %v575 = vadd.f32 %v559, 0.5
  %v576 = vadd.f32 %v560, 0.5
  %v577 = vadd.f32 %v561, 0.5
  %v578 = vadd.f32 %v562, 0.5
  %v579 = vadd.f32 %v563, 0.5
  %v580 = vadd.f32 %v564, 0.5
  %v581 = vadd.f32 %v565, 0.5
  %v582 = vadd.f32 %v566, 0.5
  %v583 = vadd.f32 %v567, 0.5
  %v584 = vadd.f32 %v568, 0.5
  %v585 = vsel %vm489, %v537, %v569
  %v586 = vsel %vm490, %v538, %v570
  %v587 = vsel %vm491, %v539, %v571
  %v588 = vsel %vm492, %v540, %v572
  %v589 = vsel %vm493, %v541, %v573
  %v590 = vsel %vm494, %v542, %v574
  %v591 = vsel %vm495, %v543, %v575
  %v592 = vsel %vm496, %v544, %v576
  %v593 = vsel %vm497, %v545, %v577
  %v594 = vsel %vm498, %v546, %v578
  %v595 = vsel %vm499, %v547, %v579
  %v596 = vsel %vm500, %v548, %v580
  %v597 = vsel %vm501, %v549, %v581
  %v598 = vsel %vm502, %v550, %v582
  %v599 = vsel %vm503, %v551, %v583
  %v600 = vsel %vm504, %v552, %v584
  %v601 = vmul.f32 %v589, 0.0
  %v602 = vmul.f32 %v590, 0.0
  %v603 = vmul.f32 %v591, 0.0
  %v604 = vmul.f32 %v592, 0.0
  %v605 = vmul.f32 %v585, %v593
  %v606 = vmul.f32 %v586, %v594
  %v607 = vmul.f32 %v587, %v595
  %v608 = vmul.f32 %v588, %v596
  %v609 = vadd.f32 %v601, %v605
  %v610 = vadd.f32 %v602, %v606
  %v611 = vadd.f32 %v603, %v607
  %v612 = vadd.f32 %v604, %v608
  %v613 = vtanh.pop %v609
  %v614 = vtanh.pop %v610
  %v615 = vtanh.pop %v611
  %v616 = vtanh.pop %v612
  %v617 = vmul.f32 %v597, %v613
  %v618 = vmul.f32 %v598, %v614
  %v619 = vmul.f32 %v599, %v615
  %v620 = vmul.f32 %v600, %v616
  %vm621 = vcmask 261120
  %v623 = vsel %vm621, %v29, 0
  %v626 = vsel %vm621, %v30, 0
  %v629 = vsel %vm621, %v31, 0
  %v632 = vsel %vm621, %v32, 0
  %v635 = vsel %vm621, %v33, 0
  %v638 = vsel %vm621, %v34, 0
  %v641 = vsel %vm621, %v35, 0
  %v644 = vsel %vm621, %v36, 0
  %v647 = vsel %vm621, %v37, 0
  %v650 = vsel %vm621, %v38, 0
  %v653 = vsel %vm621, %v39, 0
  %v656 = vsel %vm621, %v40, 0
  %v659 = vsel %vm621, %v41, 0
  %v662 = vsel %vm621, %v42, 0
  %v665 = vsel %vm621, %v43, 0
  %v668 = vsel %vm621, %v44, 0
  %670 = vmatprep.subr.mxu0 0.0
  %671 = vmatpush1.msra.mxu0 %v617
  %672 = vmatprep.subr.mxu0 0.0
  %673 = vmatpush1.msra.mxu0 %v618
  %674 = vmatprep.subr.mxu0 0.0
  %675 = vmatpush1.msra.mxu0 %v619
  %676 = vmatprep.subr.mxu0 0.0
  %677 = vmatpush1.msra.mxu0 %v620
  %678 = vmatprep.subr.mxu0 0.0
  %679 = vmatpush1.msra.mxu0 0.0
  %680 = vmatprep.subr.mxu0 0.0
  %681 = vmatpush1.msra.mxu0 0.0
  %682 = vmatprep.subr.mxu0 0.0
  %683 = vmatpush1.msra.mxu0 0.0
  %684 = vmatprep.subr.mxu0 0.0
  %685 = vmatpush1.msra.mxu0 0.0
  %686 = vmatprep.subr.mxu0 0.0
  %687 = vmatpush1.msra.mxu0 0.0
  %688 = vmatprep.subr.mxu0 0.0
  %689 = vmatpush1.msra.mxu0 0.0
  %690 = vmatprep.subr.mxu0 0.0
  %691 = vmatpush1.msra.mxu0 0.0
  %692 = vmatprep.subr.mxu0 0.0
  %693 = vmatpush1.msra.mxu0 0.0
  %694 = vmatprep.subr.mxu0 0.0
  %695 = vmatpush1.msra.mxu0 0.0
  %696 = vmatprep.subr.mxu0 0.0
  %697 = vmatpush1.msra.mxu0 0.0
  %698 = vmatprep.subr.mxu0 0.0
  %699 = vmatpush1.msra.mxu0 0.0
  %700 = vmatprep.subr.mxu0 0.0
  %701 = vmatpush1.msra.mxu0 0.0
  %702 = vmatprep.subr.mxu0 0.0
  %703 = vmatpush1.msra.mxu0 0.0
  %704 = vmatprep.subr.mxu0 0.0
  %705 = vmatpush1.msra.mxu0 0.0
  %706 = vmatprep.subr.mxu0 0.0
  %707 = vmatpush1.msra.mxu0 0.0
  %708 = vmatprep.subr.mxu0 0.0
  %709 = vmatpush1.msra.mxu0 0.0
  %710 = vmatprep.subr.mxu0 0.0
  %711 = vmatpush1.msra.mxu0 0.0
  %712 = vmatprep.subr.mxu0 0.0
  %713 = vmatpush1.msra.mxu0 0.0
  %714 = vmatprep.subr.mxu0 0.0
  %715 = vmatpush1.msra.mxu0 0.0
  %716 = vmatprep.subr.mxu0 0.0
  %717 = vmatpush1.msra.mxu0 0.0
  %718 = vmatprep.subr.mxu0 0.0
  %719 = vmatpush1.msra.mxu0 0.0
  %720 = vmatprep.subr.mxu0 0.0
  %721 = vmatpush1.msra.mxu0 0.0
  %722 = vmatprep.subr.mxu0 0.0
  %723 = vmatpush1.msra.mxu0 0.0
  %724 = vmatprep.subr.mxu0 0.0
  %725 = vmatpush1.msra.mxu0 0.0
  %726 = vmatprep.subr.mxu0 0.0
  %727 = vmatpush1.msra.mxu0 0.0
  %728 = vmatprep.subr.mxu0 0.0
  %729 = vmatpush1.msra.mxu0 0.0
  %730 = vmatprep.subr.mxu0 0.0
  %731 = vmatpush1.msra.mxu0 0.0
  %732 = vmatprep.subr.mxu0 0.0
  %733 = vmatpush1.msra.mxu0 0.0
  %734 = vmatprep.mubr.f32.mxu0 0.0
  %735 = vmatmul.mubr.f32.gmra.mrb[0].mxu0 %v623
  %v736 = vpop.f32.mrb[0].mxu0
  %v737 = vadd.f32 0.0, %v736
  %v738 = vpop.f32.mrb[0].mxu0
  %739 = vmatprep.mubr.f32.mxu0 0.0
  %740 = vmatmul.mubr.f32.gmra.mrb[0].mxu0 %v626
  %v741 = vpop.f32.mrb[0].mxu0
  %v742 = vadd.f32 0.0, %v741
  %v743 = vpop.f32.mrb[0].mxu0
  %744 = vmatprep.mubr.f32.mxu0 0.0
  %745 = vmatmul.mubr.f32.gmra.mrb[0].mxu0 %v629
  %v746 = vpop.f32.mrb[0].mxu0
  %v747 = vadd.f32 0.0, %v746
  %v748 = vpop.f32.mrb[0].mxu0
  %749 = vmatprep.mubr.f32.mxu0 0.0
  %750 = vmatmul.mubr.f32.gmra.mrb[0].mxu0 %v632
  %v751 = vpop.f32.mrb[0].mxu0
  %v752 = vadd.f32 0.0, %v751
  %v753 = vpop.f32.mrb[0].mxu0
  %754 = vmatprep.mubr.f32.mxu0 0.0
  %755 = vmatmul.mubr.f32.gmra.mrb[0].mxu0 %v635
  %v756 = vpop.f32.mrb[0].mxu0
  %v757 = vadd.f32 0.0, %v756
  %v758 = vpop.f32.mrb[0].mxu0
  %759 = vmatprep.mubr.f32.mxu0 0.0
  %760 = vmatmul.mubr.f32.gmra.mrb[0].mxu0 %v638
  %v761 = vpop.f32.mrb[0].mxu0
  %v762 = vadd.f32 0.0, %v761
  %v763 = vpop.f32.mrb[0].mxu0
  %764 = vmatprep.mubr.f32.mxu0 0.0
  %765 = vmatmul.mubr.f32.gmra.mrb[0].mxu0 %v641
  %v766 = vpop.f32.mrb[0].mxu0
  %v767 = vadd.f32 0.0, %v766
  %v768 = vpop.f32.mrb[0].mxu0
  %769 = vmatprep.mubr.f32.mxu0 0.0
  %770 = vmatmul.mubr.f32.gmra.mrb[0].mxu0 %v644
  %v771 = vpop.f32.mrb[0].mxu0
  %v772 = vadd.f32 0.0, %v771
  %v773 = vpop.f32.mrb[0].mxu0
  %774 = vmatprep.mubr.f32.mxu0 0.0
  %775 = vmatmul.mubr.f32.gmra.mrb[0].mxu0 %v647
  %v776 = vpop.f32.mrb[0].mxu0
  %v777 = vadd.f32 0.0, %v776
  %v778 = vpop.f32.mrb[0].mxu0
  %779 = vmatprep.mubr.f32.mxu0 0.0
  %780 = vmatmul.mubr.f32.gmra.mrb[0].mxu0 %v650
  %v781 = vpop.f32.mrb[0].mxu0
  %v782 = vadd.f32 0.0, %v781
  %v783 = vpop.f32.mrb[0].mxu0
  %784 = vmatprep.mubr.f32.mxu0 0.0
  %785 = vmatmul.mubr.f32.gmra.mrb[0].mxu0 %v653
  %v786 = vpop.f32.mrb[0].mxu0
  %v787 = vadd.f32 0.0, %v786
  %v788 = vpop.f32.mrb[0].mxu0
  %789 = vmatprep.mubr.f32.mxu0 0.0
  %790 = vmatmul.mubr.f32.gmra.mrb[0].mxu0 %v656
  %v791 = vpop.f32.mrb[0].mxu0
  %v792 = vadd.f32 0.0, %v791
  %v793 = vpop.f32.mrb[0].mxu0
  %794 = vmatprep.mubr.f32.mxu0 0.0
  %795 = vmatmul.mubr.f32.gmra.mrb[0].mxu0 %v659
  %v796 = vpop.f32.mrb[0].mxu0
  %v797 = vadd.f32 0.0, %v796
  %v798 = vpop.f32.mrb[0].mxu0
  %799 = vmatprep.mubr.f32.mxu0 0.0
  %800 = vmatmul.mubr.f32.gmra.mrb[0].mxu0 %v662
  %v801 = vpop.f32.mrb[0].mxu0
  %v802 = vadd.f32 0.0, %v801
  %v803 = vpop.f32.mrb[0].mxu0
  %804 = vmatprep.mubr.f32.mxu0 0.0
  %805 = vmatmul.mubr.f32.gmra.mrb[0].mxu0 %v665
  %v806 = vpop.f32.mrb[0].mxu0
  %v807 = vadd.f32 0.0, %v806
  %v808 = vpop.f32.mrb[0].mxu0
  %809 = vmatprep.mubr.f32.mxu0 0.0
  %810 = vmatmul.mubr.f32.gmra.mrb[0].mxu0 %v668
  %v811 = vpop.f32.mrb[0].mxu0
  %v812 = vadd.f32 0.0, %v811
  %v813 = vpop.f32.mrb[0].mxu0
  %814 = vdwg.mxu0
  %831 = vrot.lane.b32.xlu0 %v737, 1
  %v832 = vpop.permute.xlu0 %831
  %833 = vrot.lane.b32.xlu0 %v742, 1
  %v834 = vpop.permute.xlu0 %833
  %835 = vrot.lane.b32.xlu0 %v747, 1
  %v836 = vpop.permute.xlu0 %835
  %837 = vrot.lane.b32.xlu0 %v752, 1
  %v838 = vpop.permute.xlu0 %837
  %839 = vrot.lane.b32.xlu0 %v757, 1
  %v840 = vpop.permute.xlu0 %839
  %841 = vrot.lane.b32.xlu0 %v762, 1
  %v842 = vpop.permute.xlu0 %841
  %843 = vrot.lane.b32.xlu0 %v767, 1
  %v844 = vpop.permute.xlu0 %843
  %845 = vrot.lane.b32.xlu0 %v772, 1
  %v846 = vpop.permute.xlu0 %845
  %847 = vrot.lane.b32.xlu0 %v777, 1
  %v848 = vpop.permute.xlu0 %847
  %849 = vrot.lane.b32.xlu0 %v782, 1
  %v850 = vpop.permute.xlu0 %849
  %851 = vrot.lane.b32.xlu0 %v787, 1
  %v852 = vpop.permute.xlu0 %851
  %853 = vrot.lane.b32.xlu0 %v792, 1
  %v854 = vpop.permute.xlu0 %853
  %855 = vrot.lane.b32.xlu0 %v797, 1
  %v856 = vpop.permute.xlu0 %855
  %857 = vrot.lane.b32.xlu0 %v802, 1
  %v858 = vpop.permute.xlu0 %857
  %859 = vrot.lane.b32.xlu0 %v807, 1
  %v860 = vpop.permute.xlu0 %859
  %861 = vrot.lane.b32.xlu0 %v812, 1
  %v862 = vpop.permute.xlu0 %861
  %v879 = vadd.f32 %v362, %v832
  %v880 = vadd.f32 %v367, %v834
  %v881 = vadd.f32 %v372, %v836
  %v882 = vadd.f32 %v377, %v838
  %v883 = vadd.f32 %v382, %v840
  %v884 = vadd.f32 %v387, %v842
  %v885 = vadd.f32 %v392, %v844
  %v886 = vadd.f32 %v397, %v846
  %v887 = vadd.f32 %v402, %v848
  %v888 = vadd.f32 %v407, %v850
  %v889 = vadd.f32 %v412, %v852
  %v890 = vadd.f32 %v417, %v854
  %v891 = vadd.f32 %v422, %v856
  %v892 = vadd.f32 %v427, %v858
  %v893 = vadd.f32 %v432, %v860
  %v894 = vadd.f32 %v437, %v862
  %v895 = vmul.f32 %v879, %v505
  %v896 = vmul.f32 %v880, %v506
  %v897 = vmul.f32 %v881, %v507
  %v898 = vmul.f32 %v882, %v508
  %v899 = vmul.f32 %v883, %v509
  %v900 = vmul.f32 %v884, %v510
  %v901 = vmul.f32 %v885, %v511
  %v902 = vmul.f32 %v886, %v512
  %v903 = vmul.f32 %v887, %v513
  %v904 = vmul.f32 %v888, %v514
  %v905 = vmul.f32 %v889, %v515
  %v906 = vmul.f32 %v890, %v516
  %v907 = vmul.f32 %v891, %v517
  %v908 = vmul.f32 %v892, %v518
  %v909 = vmul.f32 %v893, %v519
  %v910 = vmul.f32 %v894, %v520
  %v911 = vtanh.pop %v895
  %v912 = vtanh.pop %v896
  %v913 = vtanh.pop %v897
  %v914 = vtanh.pop %v898
  %v915 = vtanh.pop %v899
  %v916 = vtanh.pop %v900
  %v917 = vtanh.pop %v901
  %v918 = vtanh.pop %v902
  %v919 = vtanh.pop %v903
  %v920 = vtanh.pop %v904
  %v921 = vtanh.pop %v905
  %v922 = vtanh.pop %v906
  %v923 = vtanh.pop %v907
  %v924 = vtanh.pop %v908
  %v925 = vtanh.pop %v909
  %v926 = vtanh.pop %v910
  %v927 = vmul.f32 %v911, 0.5
  %v928 = vmul.f32 %v912, 0.5
  %v929 = vmul.f32 %v913, 0.5
  %v930 = vmul.f32 %v914, 0.5
  %v931 = vmul.f32 %v915, 0.5
  %v932 = vmul.f32 %v916, 0.5
  %v933 = vmul.f32 %v917, 0.5
  %v934 = vmul.f32 %v918, 0.5
  %v935 = vmul.f32 %v919, 0.5
  %v936 = vmul.f32 %v920, 0.5
  %v937 = vmul.f32 %v921, 0.5
  %v938 = vmul.f32 %v922, 0.5
  %v939 = vmul.f32 %v923, 0.5
  %v940 = vmul.f32 %v924, 0.5
  %v941 = vmul.f32 %v925, 0.5
  %v942 = vmul.f32 %v926, 0.5
  %v943 = vadd.f32 %v927, 0.5
  %v944 = vadd.f32 %v928, 0.5
  %v945 = vadd.f32 %v929, 0.5
  %v946 = vadd.f32 %v930, 0.5
  %v947 = vadd.f32 %v931, 0.5
  %v948 = vadd.f32 %v932, 0.5
  %v949 = vadd.f32 %v933, 0.5
  %v950 = vadd.f32 %v934, 0.5
  %v951 = vadd.f32 %v935, 0.5
  %v952 = vadd.f32 %v936, 0.5
  %v953 = vadd.f32 %v937, 0.5
  %v954 = vadd.f32 %v938, 0.5
  %v955 = vadd.f32 %v939, 0.5
  %v956 = vadd.f32 %v940, 0.5
  %v957 = vadd.f32 %v941, 0.5
  %v958 = vadd.f32 %v942, 0.5
  %v959 = vsel %vm489, %v911, %v943
  %v960 = vsel %vm490, %v912, %v944
  %v961 = vsel %vm491, %v913, %v945
  %v962 = vsel %vm492, %v914, %v946
  %v963 = vsel %vm493, %v915, %v947
  %v964 = vsel %vm494, %v916, %v948
  %v965 = vsel %vm495, %v917, %v949
  %v966 = vsel %vm496, %v918, %v950
  %v967 = vsel %vm497, %v919, %v951
  %v968 = vsel %vm498, %v920, %v952
  %v969 = vsel %vm499, %v921, %v953
  %v970 = vsel %vm500, %v922, %v954
  %v971 = vsel %vm501, %v923, %v955
  %v972 = vsel %vm502, %v924, %v956
  %v973 = vsel %vm503, %v925, %v957
  %v974 = vsel %vm504, %v926, %v958
  %979 = vrot.lane.b32.xlu0 %v609, 1
  %v980 = vpop.permute.xlu0 %979
  %981 = vrot.lane.b32.xlu0 %v610, 1
  %v982 = vpop.permute.xlu0 %981
  %983 = vrot.lane.b32.xlu0 %v611, 1
  %v984 = vpop.permute.xlu0 %983
  %985 = vrot.lane.b32.xlu0 %v612, 1
  %v986 = vpop.permute.xlu0 %985
  %v991 = vmul.f32 %v963, %v980
  %v992 = vmul.f32 %v964, %v982
  %v993 = vmul.f32 %v965, %v984
  %v994 = vmul.f32 %v966, %v986
  %v995 = vmul.f32 %v959, %v967
  %v996 = vmul.f32 %v960, %v968
  %v997 = vmul.f32 %v961, %v969
  %v998 = vmul.f32 %v962, %v970
  %v999 = vadd.f32 %v991, %v995
  %v1000 = vadd.f32 %v992, %v996
  %v1001 = vadd.f32 %v993, %v997
  %v1002 = vadd.f32 %v994, %v998
  %v1003 = vtanh.pop %v999
  %v1004 = vtanh.pop %v1000
  %v1005 = vtanh.pop %v1001
  %v1006 = vtanh.pop %v1002
  %v1007 = vmul.f32 %v971, %v1003
  %v1008 = vmul.f32 %v972, %v1004
  %v1009 = vmul.f32 %v973, %v1005
  %v1010 = vmul.f32 %v974, %v1006
  %1015 = vrot.lane.b32.xlu0 %v1007, 127
  %v1016 = vpop.permute.xlu0 %1015
  %1017 = vrot.lane.b32.xlu0 %v1008, 127
  %v1018 = vpop.permute.xlu0 %1017
  %1019 = vrot.lane.b32.xlu0 %v1009, 127
  %v1020 = vpop.permute.xlu0 %1019
  %1021 = vrot.lane.b32.xlu0 %v1010, 127
  %v1022 = vpop.permute.xlu0 %1021
  %1027 = vmatprep.subr.mxu0 0.0
  %1028 = vmatpush1.msra.mxu0 %v1016
  %1029 = vmatprep.subr.mxu0 0.0
  %1030 = vmatpush1.msra.mxu0 %v1018
  %1031 = vmatprep.subr.mxu0 0.0
  %1032 = vmatpush1.msra.mxu0 %v1020
  %1033 = vmatprep.subr.mxu0 0.0
  %1034 = vmatpush1.msra.mxu0 %v1022
  %1035 = vmatprep.subr.mxu0 0.0
  %1036 = vmatpush1.msra.mxu0 0.0
  %1037 = vmatprep.subr.mxu0 0.0
  %1038 = vmatpush1.msra.mxu0 0.0
  %1039 = vmatprep.subr.mxu0 0.0
  %1040 = vmatpush1.msra.mxu0 0.0
  %1041 = vmatprep.subr.mxu0 0.0
  %1042 = vmatpush1.msra.mxu0 0.0
  %1043 = vmatprep.subr.mxu0 0.0
  %1044 = vmatpush1.msra.mxu0 0.0
  %1045 = vmatprep.subr.mxu0 0.0
  %1046 = vmatpush1.msra.mxu0 0.0
  %1047 = vmatprep.subr.mxu0 0.0
  %1048 = vmatpush1.msra.mxu0 0.0
  %1049 = vmatprep.subr.mxu0 0.0
  %1050 = vmatpush1.msra.mxu0 0.0
  %1051 = vmatprep.subr.mxu0 0.0
  %1052 = vmatpush1.msra.mxu0 0.0
  %1053 = vmatprep.subr.mxu0 0.0
  %1054 = vmatpush1.msra.mxu0 0.0
  %1055 = vmatprep.subr.mxu0 0.0
  %1056 = vmatpush1.msra.mxu0 0.0
  %1057 = vmatprep.subr.mxu0 0.0
  %1058 = vmatpush1.msra.mxu0 0.0
  %1059 = vmatprep.subr.mxu0 0.0
  %1060 = vmatpush1.msra.mxu0 0.0
  %1061 = vmatprep.subr.mxu0 0.0
  %1062 = vmatpush1.msra.mxu0 0.0
  %1063 = vmatprep.subr.mxu0 0.0
  %1064 = vmatpush1.msra.mxu0 0.0
  %1065 = vmatprep.subr.mxu0 0.0
  %1066 = vmatpush1.msra.mxu0 0.0
  %1067 = vmatprep.subr.mxu0 0.0
  %1068 = vmatpush1.msra.mxu0 0.0
  %1069 = vmatprep.subr.mxu0 0.0
  %1070 = vmatpush1.msra.mxu0 0.0
  %1071 = vmatprep.subr.mxu0 0.0
  %1072 = vmatpush1.msra.mxu0 0.0
  %1073 = vmatprep.subr.mxu0 0.0
  %1074 = vmatpush1.msra.mxu0 0.0
  %1075 = vmatprep.subr.mxu0 0.0
  %1076 = vmatpush1.msra.mxu0 0.0
  %1077 = vmatprep.subr.mxu0 0.0
  %1078 = vmatpush1.msra.mxu0 0.0
  %1079 = vmatprep.subr.mxu0 0.0
  %1080 = vmatpush1.msra.mxu0 0.0
  %1081 = vmatprep.subr.mxu0 0.0
  %1082 = vmatpush1.msra.mxu0 0.0
  %1083 = vmatprep.subr.mxu0 0.0
  %1084 = vmatpush1.msra.mxu0 0.0
  %1085 = vmatprep.subr.mxu0 0.0
  %1086 = vmatpush1.msra.mxu0 0.0
  %1087 = vmatprep.subr.mxu0 0.0
  %1088 = vmatpush1.msra.mxu0 0.0
  %1089 = vmatprep.subr.mxu0 0.0
  %1090 = vmatpush1.msra.mxu0 0.0
  %1091 = vmatprep.mubr.f32.mxu0 0.0
  %1092 = vmatmul.mubr.f32.gmra.mrb[0].mxu0 %v623
  %v1093 = vpop.f32.mrb[0].mxu0
  %v1094 = vadd.f32 0.0, %v1093
  %v1095 = vpop.f32.mrb[0].mxu0
  %1096 = vmatprep.mubr.f32.mxu0 0.0
  %1097 = vmatmul.mubr.f32.gmra.mrb[0].mxu0 %v626
  %v1098 = vpop.f32.mrb[0].mxu0
  %v1099 = vadd.f32 0.0, %v1098
  %v1100 = vpop.f32.mrb[0].mxu0
  %1101 = vmatprep.mubr.f32.mxu0 0.0
  %1102 = vmatmul.mubr.f32.gmra.mrb[0].mxu0 %v629
  %v1103 = vpop.f32.mrb[0].mxu0
  %v1104 = vadd.f32 0.0, %v1103
  %v1105 = vpop.f32.mrb[0].mxu0
  %1106 = vmatprep.mubr.f32.mxu0 0.0
  %1107 = vmatmul.mubr.f32.gmra.mrb[0].mxu0 %v632
  %v1108 = vpop.f32.mrb[0].mxu0
  %v1109 = vadd.f32 0.0, %v1108
  %v1110 = vpop.f32.mrb[0].mxu0
  %1111 = vmatprep.mubr.f32.mxu0 0.0
  %1112 = vmatmul.mubr.f32.gmra.mrb[0].mxu0 %v635
  %v1113 = vpop.f32.mrb[0].mxu0
  %v1114 = vadd.f32 0.0, %v1113
  %v1115 = vpop.f32.mrb[0].mxu0
  %1116 = vmatprep.mubr.f32.mxu0 0.0
  %1117 = vmatmul.mubr.f32.gmra.mrb[0].mxu0 %v638
  %v1118 = vpop.f32.mrb[0].mxu0
  %v1119 = vadd.f32 0.0, %v1118
  %v1120 = vpop.f32.mrb[0].mxu0
  %1121 = vmatprep.mubr.f32.mxu0 0.0
  %1122 = vmatmul.mubr.f32.gmra.mrb[0].mxu0 %v641
  %v1123 = vpop.f32.mrb[0].mxu0
  %v1124 = vadd.f32 0.0, %v1123
  %v1125 = vpop.f32.mrb[0].mxu0
  %1126 = vmatprep.mubr.f32.mxu0 0.0
  %1127 = vmatmul.mubr.f32.gmra.mrb[0].mxu0 %v644
  %v1128 = vpop.f32.mrb[0].mxu0
  %v1129 = vadd.f32 0.0, %v1128
  %v1130 = vpop.f32.mrb[0].mxu0
  %1131 = vmatprep.mubr.f32.mxu0 0.0
  %1132 = vmatmul.mubr.f32.gmra.mrb[0].mxu0 %v647
  %v1133 = vpop.f32.mrb[0].mxu0
  %v1134 = vadd.f32 0.0, %v1133
  %v1135 = vpop.f32.mrb[0].mxu0
  %1136 = vmatprep.mubr.f32.mxu0 0.0
  %1137 = vmatmul.mubr.f32.gmra.mrb[0].mxu0 %v650
  %v1138 = vpop.f32.mrb[0].mxu0
  %v1139 = vadd.f32 0.0, %v1138
  %v1140 = vpop.f32.mrb[0].mxu0
  %1141 = vmatprep.mubr.f32.mxu0 0.0
  %1142 = vmatmul.mubr.f32.gmra.mrb[0].mxu0 %v653
  %v1143 = vpop.f32.mrb[0].mxu0
  %v1144 = vadd.f32 0.0, %v1143
  %v1145 = vpop.f32.mrb[0].mxu0
  %1146 = vmatprep.mubr.f32.mxu0 0.0
  %1147 = vmatmul.mubr.f32.gmra.mrb[0].mxu0 %v656
  %v1148 = vpop.f32.mrb[0].mxu0
  %v1149 = vadd.f32 0.0, %v1148
  %v1150 = vpop.f32.mrb[0].mxu0
  %1151 = vmatprep.mubr.f32.mxu0 0.0
  %1152 = vmatmul.mubr.f32.gmra.mrb[0].mxu0 %v659
  %v1153 = vpop.f32.mrb[0].mxu0
  %v1154 = vadd.f32 0.0, %v1153
  %v1155 = vpop.f32.mrb[0].mxu0
  %1156 = vmatprep.mubr.f32.mxu0 0.0
  %1157 = vmatmul.mubr.f32.gmra.mrb[0].mxu0 %v662
  %v1158 = vpop.f32.mrb[0].mxu0
  %v1159 = vadd.f32 0.0, %v1158
  %v1160 = vpop.f32.mrb[0].mxu0
  %1161 = vmatprep.mubr.f32.mxu0 0.0
  %1162 = vmatmul.mubr.f32.gmra.mrb[0].mxu0 %v665
  %v1163 = vpop.f32.mrb[0].mxu0
  %v1164 = vadd.f32 0.0, %v1163
  %v1165 = vpop.f32.mrb[0].mxu0
  %1166 = vmatprep.mubr.f32.mxu0 0.0
  %1167 = vmatmul.mubr.f32.gmra.mrb[0].mxu0 %v668
  %v1168 = vpop.f32.mrb[0].mxu0
  %v1169 = vadd.f32 0.0, %v1168
  %v1170 = vpop.f32.mrb[0].mxu0
  %1171 = vdwg.mxu0
  %1188 = vrot.lane.b32.xlu0 %v1094, 2
  %v1189 = vpop.permute.xlu0 %1188
  %1190 = vrot.lane.b32.xlu0 %v1099, 2
  %v1191 = vpop.permute.xlu0 %1190
  %1192 = vrot.lane.b32.xlu0 %v1104, 2
  %v1193 = vpop.permute.xlu0 %1192
  %1194 = vrot.lane.b32.xlu0 %v1109, 2
  %v1195 = vpop.permute.xlu0 %1194
  %1196 = vrot.lane.b32.xlu0 %v1114, 2
  %v1197 = vpop.permute.xlu0 %1196
  %1198 = vrot.lane.b32.xlu0 %v1119, 2
  %v1199 = vpop.permute.xlu0 %1198
  %1200 = vrot.lane.b32.xlu0 %v1124, 2
  %v1201 = vpop.permute.xlu0 %1200
  %1202 = vrot.lane.b32.xlu0 %v1129, 2
  %v1203 = vpop.permute.xlu0 %1202
  %1204 = vrot.lane.b32.xlu0 %v1134, 2
  %v1205 = vpop.permute.xlu0 %1204
  %1206 = vrot.lane.b32.xlu0 %v1139, 2
  %v1207 = vpop.permute.xlu0 %1206
  %1208 = vrot.lane.b32.xlu0 %v1144, 2
  %v1209 = vpop.permute.xlu0 %1208
  %1210 = vrot.lane.b32.xlu0 %v1149, 2
  %v1211 = vpop.permute.xlu0 %1210
  %1212 = vrot.lane.b32.xlu0 %v1154, 2
  %v1213 = vpop.permute.xlu0 %1212
  %1214 = vrot.lane.b32.xlu0 %v1159, 2
  %v1215 = vpop.permute.xlu0 %1214
  %1216 = vrot.lane.b32.xlu0 %v1164, 2
  %v1217 = vpop.permute.xlu0 %1216
  %1218 = vrot.lane.b32.xlu0 %v1169, 2
  %v1219 = vpop.permute.xlu0 %1218
  %v1236 = vadd.f32 %v362, %v1189
  %v1237 = vadd.f32 %v367, %v1191
  %v1238 = vadd.f32 %v372, %v1193
  %v1239 = vadd.f32 %v377, %v1195
  %v1240 = vadd.f32 %v382, %v1197
  %v1241 = vadd.f32 %v387, %v1199
  %v1242 = vadd.f32 %v392, %v1201
  %v1243 = vadd.f32 %v397, %v1203
  %v1244 = vadd.f32 %v402, %v1205
  %v1245 = vadd.f32 %v407, %v1207
  %v1246 = vadd.f32 %v412, %v1209
  %v1247 = vadd.f32 %v417, %v1211
  %v1248 = vadd.f32 %v422, %v1213
  %v1249 = vadd.f32 %v427, %v1215
  %v1250 = vadd.f32 %v432, %v1217
  %v1251 = vadd.f32 %v437, %v1219
  %v1252 = vmul.f32 %v1236, %v505
  %v1253 = vmul.f32 %v1237, %v506
  %v1254 = vmul.f32 %v1238, %v507
  %v1255 = vmul.f32 %v1239, %v508
  %v1256 = vmul.f32 %v1240, %v509
  %v1257 = vmul.f32 %v1241, %v510
  %v1258 = vmul.f32 %v1242, %v511
  %v1259 = vmul.f32 %v1243, %v512
  %v1260 = vmul.f32 %v1244, %v513
  %v1261 = vmul.f32 %v1245, %v514
  %v1262 = vmul.f32 %v1246, %v515
  %v1263 = vmul.f32 %v1247, %v516
  %v1264 = vmul.f32 %v1248, %v517
  %v1265 = vmul.f32 %v1249, %v518
  %v1266 = vmul.f32 %v1250, %v519
  %v1267 = vmul.f32 %v1251, %v520
  %v1268 = vtanh.pop %v1252
  %v1269 = vtanh.pop %v1253
  %v1270 = vtanh.pop %v1254
  %v1271 = vtanh.pop %v1255
  %v1272 = vtanh.pop %v1256
  %v1273 = vtanh.pop %v1257
  %v1274 = vtanh.pop %v1258
  %v1275 = vtanh.pop %v1259
  %v1276 = vtanh.pop %v1260
  %v1277 = vtanh.pop %v1261
  %v1278 = vtanh.pop %v1262
  %v1279 = vtanh.pop %v1263
  %v1280 = vtanh.pop %v1264
  %v1281 = vtanh.pop %v1265
  %v1282 = vtanh.pop %v1266
  %v1283 = vtanh.pop %v1267
  %v1284 = vmul.f32 %v1268, 0.5
  %v1285 = vmul.f32 %v1269, 0.5
  %v1286 = vmul.f32 %v1270, 0.5
  %v1287 = vmul.f32 %v1271, 0.5
  %v1288 = vmul.f32 %v1272, 0.5
  %v1289 = vmul.f32 %v1273, 0.5
  %v1290 = vmul.f32 %v1274, 0.5
  %v1291 = vmul.f32 %v1275, 0.5
  %v1292 = vmul.f32 %v1276, 0.5
  %v1293 = vmul.f32 %v1277, 0.5
  %v1294 = vmul.f32 %v1278, 0.5
  %v1295 = vmul.f32 %v1279, 0.5
  %v1296 = vmul.f32 %v1280, 0.5
  %v1297 = vmul.f32 %v1281, 0.5
  %v1298 = vmul.f32 %v1282, 0.5
  %v1299 = vmul.f32 %v1283, 0.5
  %v1300 = vadd.f32 %v1284, 0.5
  %v1301 = vadd.f32 %v1285, 0.5
  %v1302 = vadd.f32 %v1286, 0.5
  %v1303 = vadd.f32 %v1287, 0.5
  %v1304 = vadd.f32 %v1288, 0.5
  %v1305 = vadd.f32 %v1289, 0.5
  %v1306 = vadd.f32 %v1290, 0.5
  %v1307 = vadd.f32 %v1291, 0.5
  %v1308 = vadd.f32 %v1292, 0.5
  %v1309 = vadd.f32 %v1293, 0.5
  %v1310 = vadd.f32 %v1294, 0.5
  %v1311 = vadd.f32 %v1295, 0.5
  %v1312 = vadd.f32 %v1296, 0.5
  %v1313 = vadd.f32 %v1297, 0.5
  %v1314 = vadd.f32 %v1298, 0.5
  %v1315 = vadd.f32 %v1299, 0.5
  %v1316 = vsel %vm489, %v1268, %v1300
  %v1317 = vsel %vm490, %v1269, %v1301
  %v1318 = vsel %vm491, %v1270, %v1302
  %v1319 = vsel %vm492, %v1271, %v1303
  %v1320 = vsel %vm493, %v1272, %v1304
  %v1321 = vsel %vm494, %v1273, %v1305
  %v1322 = vsel %vm495, %v1274, %v1306
  %v1323 = vsel %vm496, %v1275, %v1307
  %v1324 = vsel %vm497, %v1276, %v1308
  %v1325 = vsel %vm498, %v1277, %v1309
  %v1326 = vsel %vm499, %v1278, %v1310
  %v1327 = vsel %vm500, %v1279, %v1311
  %v1328 = vsel %vm501, %v1280, %v1312
  %v1329 = vsel %vm502, %v1281, %v1313
  %v1330 = vsel %vm503, %v1282, %v1314
  %v1331 = vsel %vm504, %v1283, %v1315
  %1336 = vrot.lane.b32.xlu0 %v999, 1
  %v1337 = vpop.permute.xlu0 %1336
  %1338 = vrot.lane.b32.xlu0 %v1000, 1
  %v1339 = vpop.permute.xlu0 %1338
  %1340 = vrot.lane.b32.xlu0 %v1001, 1
  %v1341 = vpop.permute.xlu0 %1340
  %1342 = vrot.lane.b32.xlu0 %v1002, 1
  %v1343 = vpop.permute.xlu0 %1342
  %v1348 = vmul.f32 %v1320, %v1337
  %v1349 = vmul.f32 %v1321, %v1339
  %v1350 = vmul.f32 %v1322, %v1341
  %v1351 = vmul.f32 %v1323, %v1343
  %v1352 = vmul.f32 %v1316, %v1324
  %v1353 = vmul.f32 %v1317, %v1325
  %v1354 = vmul.f32 %v1318, %v1326
  %v1355 = vmul.f32 %v1319, %v1327
  %v1356 = vadd.f32 %v1348, %v1352
  %v1357 = vadd.f32 %v1349, %v1353
  %v1358 = vadd.f32 %v1350, %v1354
  %v1359 = vadd.f32 %v1351, %v1355
  %v1360 = vtanh.pop %v1356
  %v1361 = vtanh.pop %v1357
  %v1362 = vtanh.pop %v1358
  %v1363 = vtanh.pop %v1359
  %v1364 = vmul.f32 %v1328, %v1360
  %v1365 = vmul.f32 %v1329, %v1361
  %v1366 = vmul.f32 %v1330, %v1362
  %v1367 = vmul.f32 %v1331, %v1363
  %1372 = vrot.lane.b32.xlu0 %v1364, 126
  %v1373 = vpop.permute.xlu0 %1372
  %1374 = vrot.lane.b32.xlu0 %v1365, 126
  %v1375 = vpop.permute.xlu0 %1374
  %1376 = vrot.lane.b32.xlu0 %v1366, 126
  %v1377 = vpop.permute.xlu0 %1376
  %1378 = vrot.lane.b32.xlu0 %v1367, 126
  %v1379 = vpop.permute.xlu0 %1378
  %1384 = vmatprep.subr.mxu0 0.0
  %1385 = vmatpush1.msra.mxu0 %v1373
  %1386 = vmatprep.subr.mxu0 0.0
  %1387 = vmatpush1.msra.mxu0 %v1375
  %1388 = vmatprep.subr.mxu0 0.0
  %1389 = vmatpush1.msra.mxu0 %v1377
  %1390 = vmatprep.subr.mxu0 0.0
  %1391 = vmatpush1.msra.mxu0 %v1379
  %1392 = vmatprep.subr.mxu0 0.0
  %1393 = vmatpush1.msra.mxu0 0.0
  %1394 = vmatprep.subr.mxu0 0.0
  %1395 = vmatpush1.msra.mxu0 0.0
  %1396 = vmatprep.subr.mxu0 0.0
  %1397 = vmatpush1.msra.mxu0 0.0
  %1398 = vmatprep.subr.mxu0 0.0
  %1399 = vmatpush1.msra.mxu0 0.0
  %1400 = vmatprep.subr.mxu0 0.0
  %1401 = vmatpush1.msra.mxu0 0.0
  %1402 = vmatprep.subr.mxu0 0.0
  %1403 = vmatpush1.msra.mxu0 0.0
  %1404 = vmatprep.subr.mxu0 0.0
  %1405 = vmatpush1.msra.mxu0 0.0
  %1406 = vmatprep.subr.mxu0 0.0
  %1407 = vmatpush1.msra.mxu0 0.0
  %1408 = vmatprep.subr.mxu0 0.0
  %1409 = vmatpush1.msra.mxu0 0.0
  %1410 = vmatprep.subr.mxu0 0.0
  %1411 = vmatpush1.msra.mxu0 0.0
  %1412 = vmatprep.subr.mxu0 0.0
  %1413 = vmatpush1.msra.mxu0 0.0
  %1414 = vmatprep.subr.mxu0 0.0
  %1415 = vmatpush1.msra.mxu0 0.0
  %1416 = vmatprep.subr.mxu0 0.0
  %1417 = vmatpush1.msra.mxu0 0.0
  %1418 = vmatprep.subr.mxu0 0.0
  %1419 = vmatpush1.msra.mxu0 0.0
  %1420 = vmatprep.subr.mxu0 0.0
  %1421 = vmatpush1.msra.mxu0 0.0
  %1422 = vmatprep.subr.mxu0 0.0
  %1423 = vmatpush1.msra.mxu0 0.0
  %1424 = vmatprep.subr.mxu0 0.0
  %1425 = vmatpush1.msra.mxu0 0.0
  %1426 = vmatprep.subr.mxu0 0.0
  %1427 = vmatpush1.msra.mxu0 0.0
  %1428 = vmatprep.subr.mxu0 0.0
  %1429 = vmatpush1.msra.mxu0 0.0
  %1430 = vmatprep.subr.mxu0 0.0
  %1431 = vmatpush1.msra.mxu0 0.0
  %1432 = vmatprep.subr.mxu0 0.0
  %1433 = vmatpush1.msra.mxu0 0.0
  %1434 = vmatprep.subr.mxu0 0.0
  %1435 = vmatpush1.msra.mxu0 0.0
  %1436 = vmatprep.subr.mxu0 0.0
  %1437 = vmatpush1.msra.mxu0 0.0
  %1438 = vmatprep.subr.mxu0 0.0
  %1439 = vmatpush1.msra.mxu0 0.0
  %1440 = vmatprep.subr.mxu0 0.0
  %1441 = vmatpush1.msra.mxu0 0.0
  %1442 = vmatprep.subr.mxu0 0.0
  %1443 = vmatpush1.msra.mxu0 0.0
  %1444 = vmatprep.subr.mxu0 0.0
  %1445 = vmatpush1.msra.mxu0 0.0
  %1446 = vmatprep.subr.mxu0 0.0
  %1447 = vmatpush1.msra.mxu0 0.0
  %1448 = vmatprep.mubr.f32.mxu0 0.0
  %1449 = vmatmul.mubr.f32.gmra.mrb[0].mxu0 %v623
  %v1450 = vpop.f32.mrb[0].mxu0
  %v1451 = vadd.f32 0.0, %v1450
  %v1452 = vpop.f32.mrb[0].mxu0
  %1453 = vmatprep.mubr.f32.mxu0 0.0
  %1454 = vmatmul.mubr.f32.gmra.mrb[0].mxu0 %v626
  %v1455 = vpop.f32.mrb[0].mxu0
  %v1456 = vadd.f32 0.0, %v1455
  %v1457 = vpop.f32.mrb[0].mxu0
  %1458 = vmatprep.mubr.f32.mxu0 0.0
  %1459 = vmatmul.mubr.f32.gmra.mrb[0].mxu0 %v629
  %v1460 = vpop.f32.mrb[0].mxu0
  %v1461 = vadd.f32 0.0, %v1460
  %v1462 = vpop.f32.mrb[0].mxu0
  %1463 = vmatprep.mubr.f32.mxu0 0.0
  %1464 = vmatmul.mubr.f32.gmra.mrb[0].mxu0 %v632
  %v1465 = vpop.f32.mrb[0].mxu0
  %v1466 = vadd.f32 0.0, %v1465
  %v1467 = vpop.f32.mrb[0].mxu0
  %1468 = vmatprep.mubr.f32.mxu0 0.0
  %1469 = vmatmul.mubr.f32.gmra.mrb[0].mxu0 %v635
  %v1470 = vpop.f32.mrb[0].mxu0
  %v1471 = vadd.f32 0.0, %v1470
  %v1472 = vpop.f32.mrb[0].mxu0
  %1473 = vmatprep.mubr.f32.mxu0 0.0
  %1474 = vmatmul.mubr.f32.gmra.mrb[0].mxu0 %v638
  %v1475 = vpop.f32.mrb[0].mxu0
  %v1476 = vadd.f32 0.0, %v1475
  %v1477 = vpop.f32.mrb[0].mxu0
  %1478 = vmatprep.mubr.f32.mxu0 0.0
  %1479 = vmatmul.mubr.f32.gmra.mrb[0].mxu0 %v641
  %v1480 = vpop.f32.mrb[0].mxu0
  %v1481 = vadd.f32 0.0, %v1480
  %v1482 = vpop.f32.mrb[0].mxu0
  %1483 = vmatprep.mubr.f32.mxu0 0.0
  %1484 = vmatmul.mubr.f32.gmra.mrb[0].mxu0 %v644
  %v1485 = vpop.f32.mrb[0].mxu0
  %v1486 = vadd.f32 0.0, %v1485
  %v1487 = vpop.f32.mrb[0].mxu0
  %1488 = vmatprep.mubr.f32.mxu0 0.0
  %1489 = vmatmul.mubr.f32.gmra.mrb[0].mxu0 %v647
  %v1490 = vpop.f32.mrb[0].mxu0
  %v1491 = vadd.f32 0.0, %v1490
  %v1492 = vpop.f32.mrb[0].mxu0
  %1493 = vmatprep.mubr.f32.mxu0 0.0
  %1494 = vmatmul.mubr.f32.gmra.mrb[0].mxu0 %v650
  %v1495 = vpop.f32.mrb[0].mxu0
  %v1496 = vadd.f32 0.0, %v1495
  %v1497 = vpop.f32.mrb[0].mxu0
  %1498 = vmatprep.mubr.f32.mxu0 0.0
  %1499 = vmatmul.mubr.f32.gmra.mrb[0].mxu0 %v653
  %v1500 = vpop.f32.mrb[0].mxu0
  %v1501 = vadd.f32 0.0, %v1500
  %v1502 = vpop.f32.mrb[0].mxu0
  %1503 = vmatprep.mubr.f32.mxu0 0.0
  %1504 = vmatmul.mubr.f32.gmra.mrb[0].mxu0 %v656
  %v1505 = vpop.f32.mrb[0].mxu0
  %v1506 = vadd.f32 0.0, %v1505
  %v1507 = vpop.f32.mrb[0].mxu0
  %1508 = vmatprep.mubr.f32.mxu0 0.0
  %1509 = vmatmul.mubr.f32.gmra.mrb[0].mxu0 %v659
  %v1510 = vpop.f32.mrb[0].mxu0
  %v1511 = vadd.f32 0.0, %v1510
  %v1512 = vpop.f32.mrb[0].mxu0
  %1513 = vmatprep.mubr.f32.mxu0 0.0
  %1514 = vmatmul.mubr.f32.gmra.mrb[0].mxu0 %v662
  %v1515 = vpop.f32.mrb[0].mxu0
  %v1516 = vadd.f32 0.0, %v1515
  %v1517 = vpop.f32.mrb[0].mxu0
  %1518 = vmatprep.mubr.f32.mxu0 0.0
  %1519 = vmatmul.mubr.f32.gmra.mrb[0].mxu0 %v665
  %v1520 = vpop.f32.mrb[0].mxu0
  %v1521 = vadd.f32 0.0, %v1520
  %v1522 = vpop.f32.mrb[0].mxu0
  %1523 = vmatprep.mubr.f32.mxu0 0.0
  %1524 = vmatmul.mubr.f32.gmra.mrb[0].mxu0 %v668
  %v1525 = vpop.f32.mrb[0].mxu0
  %v1526 = vadd.f32 0.0, %v1525
  %v1527 = vpop.f32.mrb[0].mxu0
  %1528 = vdwg.mxu0
  %1545 = vrot.lane.b32.xlu0 %v1451, 3
  %v1546 = vpop.permute.xlu0 %1545
  %1547 = vrot.lane.b32.xlu0 %v1456, 3
  %v1548 = vpop.permute.xlu0 %1547
  %1549 = vrot.lane.b32.xlu0 %v1461, 3
  %v1550 = vpop.permute.xlu0 %1549
  %1551 = vrot.lane.b32.xlu0 %v1466, 3
  %v1552 = vpop.permute.xlu0 %1551
  %1553 = vrot.lane.b32.xlu0 %v1471, 3
  %v1554 = vpop.permute.xlu0 %1553
  %1555 = vrot.lane.b32.xlu0 %v1476, 3
  %v1556 = vpop.permute.xlu0 %1555
  %1557 = vrot.lane.b32.xlu0 %v1481, 3
  %v1558 = vpop.permute.xlu0 %1557
  %1559 = vrot.lane.b32.xlu0 %v1486, 3
  %v1560 = vpop.permute.xlu0 %1559
  %1561 = vrot.lane.b32.xlu0 %v1491, 3
  %v1562 = vpop.permute.xlu0 %1561
  %1563 = vrot.lane.b32.xlu0 %v1496, 3
  %v1564 = vpop.permute.xlu0 %1563
  %1565 = vrot.lane.b32.xlu0 %v1501, 3
  %v1566 = vpop.permute.xlu0 %1565
  %1567 = vrot.lane.b32.xlu0 %v1506, 3
  %v1568 = vpop.permute.xlu0 %1567
  %1569 = vrot.lane.b32.xlu0 %v1511, 3
  %v1570 = vpop.permute.xlu0 %1569
  %1571 = vrot.lane.b32.xlu0 %v1516, 3
  %v1572 = vpop.permute.xlu0 %1571
  %1573 = vrot.lane.b32.xlu0 %v1521, 3
  %v1574 = vpop.permute.xlu0 %1573
  %1575 = vrot.lane.b32.xlu0 %v1526, 3
  %v1576 = vpop.permute.xlu0 %1575
  %v1593 = vadd.f32 %v362, %v1546
  %v1594 = vadd.f32 %v367, %v1548
  %v1595 = vadd.f32 %v372, %v1550
  %v1596 = vadd.f32 %v377, %v1552
  %v1597 = vadd.f32 %v382, %v1554
  %v1598 = vadd.f32 %v387, %v1556
  %v1599 = vadd.f32 %v392, %v1558
  %v1600 = vadd.f32 %v397, %v1560
  %v1601 = vadd.f32 %v402, %v1562
  %v1602 = vadd.f32 %v407, %v1564
  %v1603 = vadd.f32 %v412, %v1566
  %v1604 = vadd.f32 %v417, %v1568
  %v1605 = vadd.f32 %v422, %v1570
  %v1606 = vadd.f32 %v427, %v1572
  %v1607 = vadd.f32 %v432, %v1574
  %v1608 = vadd.f32 %v437, %v1576
  %v1609 = vmul.f32 %v1593, %v505
  %v1610 = vmul.f32 %v1594, %v506
  %v1611 = vmul.f32 %v1595, %v507
  %v1612 = vmul.f32 %v1596, %v508
  %v1613 = vmul.f32 %v1597, %v509
  %v1614 = vmul.f32 %v1598, %v510
  %v1615 = vmul.f32 %v1599, %v511
  %v1616 = vmul.f32 %v1600, %v512
  %v1617 = vmul.f32 %v1601, %v513
  %v1618 = vmul.f32 %v1602, %v514
  %v1619 = vmul.f32 %v1603, %v515
  %v1620 = vmul.f32 %v1604, %v516
  %v1621 = vmul.f32 %v1605, %v517
  %v1622 = vmul.f32 %v1606, %v518
  %v1623 = vmul.f32 %v1607, %v519
  %v1624 = vmul.f32 %v1608, %v520
  %v1625 = vtanh.pop %v1609
  %v1626 = vtanh.pop %v1610
  %v1627 = vtanh.pop %v1611
  %v1628 = vtanh.pop %v1612
  %v1629 = vtanh.pop %v1613
  %v1630 = vtanh.pop %v1614
  %v1631 = vtanh.pop %v1615
  %v1632 = vtanh.pop %v1616
  %v1633 = vtanh.pop %v1617
  %v1634 = vtanh.pop %v1618
  %v1635 = vtanh.pop %v1619
  %v1636 = vtanh.pop %v1620
  %v1637 = vtanh.pop %v1621
  %v1638 = vtanh.pop %v1622
  %v1639 = vtanh.pop %v1623
  %v1640 = vtanh.pop %v1624
  %v1641 = vmul.f32 %v1625, 0.5
  %v1642 = vmul.f32 %v1626, 0.5
  %v1643 = vmul.f32 %v1627, 0.5
  %v1644 = vmul.f32 %v1628, 0.5
  %v1645 = vmul.f32 %v1629, 0.5
  %v1646 = vmul.f32 %v1630, 0.5
  %v1647 = vmul.f32 %v1631, 0.5
  %v1648 = vmul.f32 %v1632, 0.5
  %v1649 = vmul.f32 %v1633, 0.5
  %v1650 = vmul.f32 %v1634, 0.5
  %v1651 = vmul.f32 %v1635, 0.5
  %v1652 = vmul.f32 %v1636, 0.5
  %v1653 = vmul.f32 %v1637, 0.5
  %v1654 = vmul.f32 %v1638, 0.5
  %v1655 = vmul.f32 %v1639, 0.5
  %v1656 = vmul.f32 %v1640, 0.5
  %v1657 = vadd.f32 %v1641, 0.5
  %v1658 = vadd.f32 %v1642, 0.5
  %v1659 = vadd.f32 %v1643, 0.5
  %v1660 = vadd.f32 %v1644, 0.5
  %v1661 = vadd.f32 %v1645, 0.5
  %v1662 = vadd.f32 %v1646, 0.5
  %v1663 = vadd.f32 %v1647, 0.5
  %v1664 = vadd.f32 %v1648, 0.5
  %v1665 = vadd.f32 %v1649, 0.5
  %v1666 = vadd.f32 %v1650, 0.5
  %v1667 = vadd.f32 %v1651, 0.5
  %v1668 = vadd.f32 %v1652, 0.5
  %v1669 = vadd.f32 %v1653, 0.5
  %v1670 = vadd.f32 %v1654, 0.5
  %v1671 = vadd.f32 %v1655, 0.5
  %v1672 = vadd.f32 %v1656, 0.5
  %v1673 = vsel %vm489, %v1625, %v1657
  %v1674 = vsel %vm490, %v1626, %v1658
  %v1675 = vsel %vm491, %v1627, %v1659
  %v1676 = vsel %vm492, %v1628, %v1660
  %v1677 = vsel %vm493, %v1629, %v1661
  %v1678 = vsel %vm494, %v1630, %v1662
  %v1679 = vsel %vm495, %v1631, %v1663
  %v1680 = vsel %vm496, %v1632, %v1664
  %v1681 = vsel %vm497, %v1633, %v1665
  %v1682 = vsel %vm498, %v1634, %v1666
  %v1683 = vsel %vm499, %v1635, %v1667
  %v1684 = vsel %vm500, %v1636, %v1668
  %v1685 = vsel %vm501, %v1637, %v1669
  %v1686 = vsel %vm502, %v1638, %v1670
  %v1687 = vsel %vm503, %v1639, %v1671
  %v1688 = vsel %vm504, %v1640, %v1672
  %1693 = vrot.lane.b32.xlu0 %v1356, 1
  %v1694 = vpop.permute.xlu0 %1693
  %1695 = vrot.lane.b32.xlu0 %v1357, 1
  %v1696 = vpop.permute.xlu0 %1695
  %1697 = vrot.lane.b32.xlu0 %v1358, 1
  %v1698 = vpop.permute.xlu0 %1697
  %1699 = vrot.lane.b32.xlu0 %v1359, 1
  %v1700 = vpop.permute.xlu0 %1699
  %v1705 = vmul.f32 %v1677, %v1694
  %v1706 = vmul.f32 %v1678, %v1696
  %v1707 = vmul.f32 %v1679, %v1698
  %v1708 = vmul.f32 %v1680, %v1700
  %v1709 = vmul.f32 %v1673, %v1681
  %v1710 = vmul.f32 %v1674, %v1682
  %v1711 = vmul.f32 %v1675, %v1683
  %v1712 = vmul.f32 %v1676, %v1684
  %v1713 = vadd.f32 %v1705, %v1709
  %v1714 = vadd.f32 %v1706, %v1710
  %v1715 = vadd.f32 %v1707, %v1711
  %v1716 = vadd.f32 %v1708, %v1712
  %v1717 = vtanh.pop %v1713
  %v1718 = vtanh.pop %v1714
  %v1719 = vtanh.pop %v1715
  %v1720 = vtanh.pop %v1716
  %v1721 = vmul.f32 %v1685, %v1717
  %v1722 = vmul.f32 %v1686, %v1718
  %v1723 = vmul.f32 %v1687, %v1719
  %v1724 = vmul.f32 %v1688, %v1720
  %1729 = vrot.lane.b32.xlu0 %v1721, 125
  %v1730 = vpop.permute.xlu0 %1729
  %1731 = vrot.lane.b32.xlu0 %v1722, 125
  %v1732 = vpop.permute.xlu0 %1731
  %1733 = vrot.lane.b32.xlu0 %v1723, 125
  %v1734 = vpop.permute.xlu0 %1733
  %1735 = vrot.lane.b32.xlu0 %v1724, 125
  %v1736 = vpop.permute.xlu0 %1735
  %1741 = vmatprep.subr.mxu0 0.0
  %1742 = vmatpush1.msra.mxu0 %v1730
  %1743 = vmatprep.subr.mxu0 0.0
  %1744 = vmatpush1.msra.mxu0 %v1732
  %1745 = vmatprep.subr.mxu0 0.0
  %1746 = vmatpush1.msra.mxu0 %v1734
  %1747 = vmatprep.subr.mxu0 0.0
  %1748 = vmatpush1.msra.mxu0 %v1736
  %1749 = vmatprep.subr.mxu0 0.0
  %1750 = vmatpush1.msra.mxu0 0.0
  %1751 = vmatprep.subr.mxu0 0.0
  %1752 = vmatpush1.msra.mxu0 0.0
  %1753 = vmatprep.subr.mxu0 0.0
  %1754 = vmatpush1.msra.mxu0 0.0
  %1755 = vmatprep.subr.mxu0 0.0
  %1756 = vmatpush1.msra.mxu0 0.0
  %1757 = vmatprep.subr.mxu0 0.0
  %1758 = vmatpush1.msra.mxu0 0.0
  %1759 = vmatprep.subr.mxu0 0.0
  %1760 = vmatpush1.msra.mxu0 0.0
  %1761 = vmatprep.subr.mxu0 0.0
  %1762 = vmatpush1.msra.mxu0 0.0
  %1763 = vmatprep.subr.mxu0 0.0
  %1764 = vmatpush1.msra.mxu0 0.0
  %1765 = vmatprep.subr.mxu0 0.0
  %1766 = vmatpush1.msra.mxu0 0.0
  %1767 = vmatprep.subr.mxu0 0.0
  %1768 = vmatpush1.msra.mxu0 0.0
  %1769 = vmatprep.subr.mxu0 0.0
  %1770 = vmatpush1.msra.mxu0 0.0
  %1771 = vmatprep.subr.mxu0 0.0
  %1772 = vmatpush1.msra.mxu0 0.0
  %1773 = vmatprep.subr.mxu0 0.0
  %1774 = vmatpush1.msra.mxu0 0.0
  %1775 = vmatprep.subr.mxu0 0.0
  %1776 = vmatpush1.msra.mxu0 0.0
  %1777 = vmatprep.subr.mxu0 0.0
  %1778 = vmatpush1.msra.mxu0 0.0
  %1779 = vmatprep.subr.mxu0 0.0
  %1780 = vmatpush1.msra.mxu0 0.0
  %1781 = vmatprep.subr.mxu0 0.0
  %1782 = vmatpush1.msra.mxu0 0.0
  %1783 = vmatprep.subr.mxu0 0.0
  %1784 = vmatpush1.msra.mxu0 0.0
  %1785 = vmatprep.subr.mxu0 0.0
  %1786 = vmatpush1.msra.mxu0 0.0
  %1787 = vmatprep.subr.mxu0 0.0
  %1788 = vmatpush1.msra.mxu0 0.0
  %1789 = vmatprep.subr.mxu0 0.0
  %1790 = vmatpush1.msra.mxu0 0.0
  %1791 = vmatprep.subr.mxu0 0.0
  %1792 = vmatpush1.msra.mxu0 0.0
  %1793 = vmatprep.subr.mxu0 0.0
  %1794 = vmatpush1.msra.mxu0 0.0
  %1795 = vmatprep.subr.mxu0 0.0
  %1796 = vmatpush1.msra.mxu0 0.0
  %1797 = vmatprep.subr.mxu0 0.0
  %1798 = vmatpush1.msra.mxu0 0.0
  %1799 = vmatprep.subr.mxu0 0.0
  %1800 = vmatpush1.msra.mxu0 0.0
  %1801 = vmatprep.subr.mxu0 0.0
  %1802 = vmatpush1.msra.mxu0 0.0
  %1803 = vmatprep.subr.mxu0 0.0
  %1804 = vmatpush1.msra.mxu0 0.0
  %1805 = vmatprep.mubr.f32.mxu0 0.0
  %1806 = vmatmul.mubr.f32.gmra.mrb[0].mxu0 %v623
  %v1807 = vpop.f32.mrb[0].mxu0
  %v1808 = vadd.f32 0.0, %v1807
  %v1809 = vpop.f32.mrb[0].mxu0
  %1810 = vmatprep.mubr.f32.mxu0 0.0
  %1811 = vmatmul.mubr.f32.gmra.mrb[0].mxu0 %v626
  %v1812 = vpop.f32.mrb[0].mxu0
  %v1813 = vadd.f32 0.0, %v1812
  %v1814 = vpop.f32.mrb[0].mxu0
  %1815 = vmatprep.mubr.f32.mxu0 0.0
  %1816 = vmatmul.mubr.f32.gmra.mrb[0].mxu0 %v629
  %v1817 = vpop.f32.mrb[0].mxu0
  %v1818 = vadd.f32 0.0, %v1817
  %v1819 = vpop.f32.mrb[0].mxu0
  %1820 = vmatprep.mubr.f32.mxu0 0.0
  %1821 = vmatmul.mubr.f32.gmra.mrb[0].mxu0 %v632
  %v1822 = vpop.f32.mrb[0].mxu0
  %v1823 = vadd.f32 0.0, %v1822
  %v1824 = vpop.f32.mrb[0].mxu0
  %1825 = vmatprep.mubr.f32.mxu0 0.0
  %1826 = vmatmul.mubr.f32.gmra.mrb[0].mxu0 %v635
  %v1827 = vpop.f32.mrb[0].mxu0
  %v1828 = vadd.f32 0.0, %v1827
  %v1829 = vpop.f32.mrb[0].mxu0
  %1830 = vmatprep.mubr.f32.mxu0 0.0
  %1831 = vmatmul.mubr.f32.gmra.mrb[0].mxu0 %v638
  %v1832 = vpop.f32.mrb[0].mxu0
  %v1833 = vadd.f32 0.0, %v1832
  %v1834 = vpop.f32.mrb[0].mxu0
  %1835 = vmatprep.mubr.f32.mxu0 0.0
  %1836 = vmatmul.mubr.f32.gmra.mrb[0].mxu0 %v641
  %v1837 = vpop.f32.mrb[0].mxu0
  %v1838 = vadd.f32 0.0, %v1837
  %v1839 = vpop.f32.mrb[0].mxu0
  %1840 = vmatprep.mubr.f32.mxu0 0.0
  %1841 = vmatmul.mubr.f32.gmra.mrb[0].mxu0 %v644
  %v1842 = vpop.f32.mrb[0].mxu0
  %v1843 = vadd.f32 0.0, %v1842
  %v1844 = vpop.f32.mrb[0].mxu0
  %1845 = vmatprep.mubr.f32.mxu0 0.0
  %1846 = vmatmul.mubr.f32.gmra.mrb[0].mxu0 %v647
  %v1847 = vpop.f32.mrb[0].mxu0
  %v1848 = vadd.f32 0.0, %v1847
  %v1849 = vpop.f32.mrb[0].mxu0
  %1850 = vmatprep.mubr.f32.mxu0 0.0
  %1851 = vmatmul.mubr.f32.gmra.mrb[0].mxu0 %v650
  %v1852 = vpop.f32.mrb[0].mxu0
  %v1853 = vadd.f32 0.0, %v1852
  %v1854 = vpop.f32.mrb[0].mxu0
  %1855 = vmatprep.mubr.f32.mxu0 0.0
  %1856 = vmatmul.mubr.f32.gmra.mrb[0].mxu0 %v653
  %v1857 = vpop.f32.mrb[0].mxu0
  %v1858 = vadd.f32 0.0, %v1857
  %v1859 = vpop.f32.mrb[0].mxu0
  %1860 = vmatprep.mubr.f32.mxu0 0.0
  %1861 = vmatmul.mubr.f32.gmra.mrb[0].mxu0 %v656
  %v1862 = vpop.f32.mrb[0].mxu0
  %v1863 = vadd.f32 0.0, %v1862
  %v1864 = vpop.f32.mrb[0].mxu0
  %1865 = vmatprep.mubr.f32.mxu0 0.0
  %1866 = vmatmul.mubr.f32.gmra.mrb[0].mxu0 %v659
  %v1867 = vpop.f32.mrb[0].mxu0
  %v1868 = vadd.f32 0.0, %v1867
  %v1869 = vpop.f32.mrb[0].mxu0
  %1870 = vmatprep.mubr.f32.mxu0 0.0
  %1871 = vmatmul.mubr.f32.gmra.mrb[0].mxu0 %v662
  %v1872 = vpop.f32.mrb[0].mxu0
  %v1873 = vadd.f32 0.0, %v1872
  %v1874 = vpop.f32.mrb[0].mxu0
  %1875 = vmatprep.mubr.f32.mxu0 0.0
  %1876 = vmatmul.mubr.f32.gmra.mrb[0].mxu0 %v665
  %v1877 = vpop.f32.mrb[0].mxu0
  %v1878 = vadd.f32 0.0, %v1877
  %v1879 = vpop.f32.mrb[0].mxu0
  %1880 = vmatprep.mubr.f32.mxu0 0.0
  %1881 = vmatmul.mubr.f32.gmra.mrb[0].mxu0 %v668
  %v1882 = vpop.f32.mrb[0].mxu0
  %v1883 = vadd.f32 0.0, %v1882
  %v1884 = vpop.f32.mrb[0].mxu0
  %1885 = vdwg.mxu0
  %1902 = vrot.lane.b32.xlu0 %v1808, 4
  %v1903 = vpop.permute.xlu0 %1902
  %1904 = vrot.lane.b32.xlu0 %v1813, 4
  %v1905 = vpop.permute.xlu0 %1904
  %1906 = vrot.lane.b32.xlu0 %v1818, 4
  %v1907 = vpop.permute.xlu0 %1906
  %1908 = vrot.lane.b32.xlu0 %v1823, 4
  %v1909 = vpop.permute.xlu0 %1908
  %1910 = vrot.lane.b32.xlu0 %v1828, 4
  %v1911 = vpop.permute.xlu0 %1910
  %1912 = vrot.lane.b32.xlu0 %v1833, 4
  %v1913 = vpop.permute.xlu0 %1912
  %1914 = vrot.lane.b32.xlu0 %v1838, 4
  %v1915 = vpop.permute.xlu0 %1914
  %1916 = vrot.lane.b32.xlu0 %v1843, 4
  %v1917 = vpop.permute.xlu0 %1916
  %1918 = vrot.lane.b32.xlu0 %v1848, 4
  %v1919 = vpop.permute.xlu0 %1918
  %1920 = vrot.lane.b32.xlu0 %v1853, 4
  %v1921 = vpop.permute.xlu0 %1920
  %1922 = vrot.lane.b32.xlu0 %v1858, 4
  %v1923 = vpop.permute.xlu0 %1922
  %1924 = vrot.lane.b32.xlu0 %v1863, 4
  %v1925 = vpop.permute.xlu0 %1924
  %1926 = vrot.lane.b32.xlu0 %v1868, 4
  %v1927 = vpop.permute.xlu0 %1926
  %1928 = vrot.lane.b32.xlu0 %v1873, 4
  %v1929 = vpop.permute.xlu0 %1928
  %1930 = vrot.lane.b32.xlu0 %v1878, 4
  %v1931 = vpop.permute.xlu0 %1930
  %1932 = vrot.lane.b32.xlu0 %v1883, 4
  %v1933 = vpop.permute.xlu0 %1932
  %v1950 = vadd.f32 %v362, %v1903
  %v1951 = vadd.f32 %v367, %v1905
  %v1952 = vadd.f32 %v372, %v1907
  %v1953 = vadd.f32 %v377, %v1909
  %v1954 = vadd.f32 %v382, %v1911
  %v1955 = vadd.f32 %v387, %v1913
  %v1956 = vadd.f32 %v392, %v1915
  %v1957 = vadd.f32 %v397, %v1917
  %v1958 = vadd.f32 %v402, %v1919
  %v1959 = vadd.f32 %v407, %v1921
  %v1960 = vadd.f32 %v412, %v1923
  %v1961 = vadd.f32 %v417, %v1925
  %v1962 = vadd.f32 %v422, %v1927
  %v1963 = vadd.f32 %v427, %v1929
  %v1964 = vadd.f32 %v432, %v1931
  %v1965 = vadd.f32 %v437, %v1933
  %v1966 = vmul.f32 %v1950, %v505
  %v1967 = vmul.f32 %v1951, %v506
  %v1968 = vmul.f32 %v1952, %v507
  %v1969 = vmul.f32 %v1953, %v508
  %v1970 = vmul.f32 %v1954, %v509
  %v1971 = vmul.f32 %v1955, %v510
  %v1972 = vmul.f32 %v1956, %v511
  %v1973 = vmul.f32 %v1957, %v512
  %v1974 = vmul.f32 %v1958, %v513
  %v1975 = vmul.f32 %v1959, %v514
  %v1976 = vmul.f32 %v1960, %v515
  %v1977 = vmul.f32 %v1961, %v516
  %v1978 = vmul.f32 %v1962, %v517
  %v1979 = vmul.f32 %v1963, %v518
  %v1980 = vmul.f32 %v1964, %v519
  %v1981 = vmul.f32 %v1965, %v520
  %v1982 = vtanh.pop %v1966
  %v1983 = vtanh.pop %v1967
  %v1984 = vtanh.pop %v1968
  %v1985 = vtanh.pop %v1969
  %v1986 = vtanh.pop %v1970
  %v1987 = vtanh.pop %v1971
  %v1988 = vtanh.pop %v1972
  %v1989 = vtanh.pop %v1973
  %v1990 = vtanh.pop %v1974
  %v1991 = vtanh.pop %v1975
  %v1992 = vtanh.pop %v1976
  %v1993 = vtanh.pop %v1977
  %v1994 = vtanh.pop %v1978
  %v1995 = vtanh.pop %v1979
  %v1996 = vtanh.pop %v1980
  %v1997 = vtanh.pop %v1981
  %v1998 = vmul.f32 %v1982, 0.5
  %v1999 = vmul.f32 %v1983, 0.5
  %v2000 = vmul.f32 %v1984, 0.5
  %v2001 = vmul.f32 %v1985, 0.5
  %v2002 = vmul.f32 %v1986, 0.5
  %v2003 = vmul.f32 %v1987, 0.5
  %v2004 = vmul.f32 %v1988, 0.5
  %v2005 = vmul.f32 %v1989, 0.5
  %v2006 = vmul.f32 %v1990, 0.5
  %v2007 = vmul.f32 %v1991, 0.5
  %v2008 = vmul.f32 %v1992, 0.5
  %v2009 = vmul.f32 %v1993, 0.5
  %v2010 = vmul.f32 %v1994, 0.5
  %v2011 = vmul.f32 %v1995, 0.5
  %v2012 = vmul.f32 %v1996, 0.5
  %v2013 = vmul.f32 %v1997, 0.5
  %v2014 = vadd.f32 %v1998, 0.5
  %v2015 = vadd.f32 %v1999, 0.5
  %v2016 = vadd.f32 %v2000, 0.5
  %v2017 = vadd.f32 %v2001, 0.5
  %v2018 = vadd.f32 %v2002, 0.5
  %v2019 = vadd.f32 %v2003, 0.5
  %v2020 = vadd.f32 %v2004, 0.5
  %v2021 = vadd.f32 %v2005, 0.5
  %v2022 = vadd.f32 %v2006, 0.5
  %v2023 = vadd.f32 %v2007, 0.5
  %v2024 = vadd.f32 %v2008, 0.5
  %v2025 = vadd.f32 %v2009, 0.5
  %v2026 = vadd.f32 %v2010, 0.5
  %v2027 = vadd.f32 %v2011, 0.5
  %v2028 = vadd.f32 %v2012, 0.5
  %v2029 = vadd.f32 %v2013, 0.5
  %v2030 = vsel %vm489, %v1982, %v2014
  %v2031 = vsel %vm490, %v1983, %v2015
  %v2032 = vsel %vm491, %v1984, %v2016
  %v2033 = vsel %vm492, %v1985, %v2017
  %v2034 = vsel %vm493, %v1986, %v2018
  %v2035 = vsel %vm494, %v1987, %v2019
  %v2036 = vsel %vm495, %v1988, %v2020
  %v2037 = vsel %vm496, %v1989, %v2021
  %v2038 = vsel %vm497, %v1990, %v2022
  %v2039 = vsel %vm498, %v1991, %v2023
  %v2040 = vsel %vm499, %v1992, %v2024
  %v2041 = vsel %vm500, %v1993, %v2025
  %v2042 = vsel %vm501, %v1994, %v2026
  %v2043 = vsel %vm502, %v1995, %v2027
  %v2044 = vsel %vm503, %v1996, %v2028
  %v2045 = vsel %vm504, %v1997, %v2029
  %2050 = vrot.lane.b32.xlu0 %v1713, 1
  %v2051 = vpop.permute.xlu0 %2050
  %2052 = vrot.lane.b32.xlu0 %v1714, 1
  %v2053 = vpop.permute.xlu0 %2052
  %2054 = vrot.lane.b32.xlu0 %v1715, 1
  %v2055 = vpop.permute.xlu0 %2054
  %2056 = vrot.lane.b32.xlu0 %v1716, 1
  %v2057 = vpop.permute.xlu0 %2056
  %v2062 = vmul.f32 %v2034, %v2051
  %v2063 = vmul.f32 %v2035, %v2053
  %v2064 = vmul.f32 %v2036, %v2055
  %v2065 = vmul.f32 %v2037, %v2057
  %v2066 = vmul.f32 %v2030, %v2038
  %v2067 = vmul.f32 %v2031, %v2039
  %v2068 = vmul.f32 %v2032, %v2040
  %v2069 = vmul.f32 %v2033, %v2041
  %v2070 = vadd.f32 %v2062, %v2066
  %v2071 = vadd.f32 %v2063, %v2067
  %v2072 = vadd.f32 %v2064, %v2068
  %v2073 = vadd.f32 %v2065, %v2069
  %v2074 = vtanh.pop %v2070
  %v2075 = vtanh.pop %v2071
  %v2076 = vtanh.pop %v2072
  %v2077 = vtanh.pop %v2073
  %v2078 = vmul.f32 %v2042, %v2074
  %v2079 = vmul.f32 %v2043, %v2075
  %v2080 = vmul.f32 %v2044, %v2076
  %v2081 = vmul.f32 %v2045, %v2077
  %2086 = vrot.lane.b32.xlu0 %v2078, 124
  %v2087 = vpop.permute.xlu0 %2086
  %2088 = vrot.lane.b32.xlu0 %v2079, 124
  %v2089 = vpop.permute.xlu0 %2088
  %2090 = vrot.lane.b32.xlu0 %v2080, 124
  %v2091 = vpop.permute.xlu0 %2090
  %2092 = vrot.lane.b32.xlu0 %v2081, 124
  %v2093 = vpop.permute.xlu0 %2092
  %2098 = vmatprep.subr.mxu0 0.0
  %2099 = vmatpush1.msra.mxu0 %v2087
  %2100 = vmatprep.subr.mxu0 0.0
  %2101 = vmatpush1.msra.mxu0 %v2089
  %2102 = vmatprep.subr.mxu0 0.0
  %2103 = vmatpush1.msra.mxu0 %v2091
  %2104 = vmatprep.subr.mxu0 0.0
  %2105 = vmatpush1.msra.mxu0 %v2093
  %2106 = vmatprep.subr.mxu0 0.0
  %2107 = vmatpush1.msra.mxu0 0.0
  %2108 = vmatprep.subr.mxu0 0.0
  %2109 = vmatpush1.msra.mxu0 0.0
  %2110 = vmatprep.subr.mxu0 0.0
  %2111 = vmatpush1.msra.mxu0 0.0
  %2112 = vmatprep.subr.mxu0 0.0
  %2113 = vmatpush1.msra.mxu0 0.0
  %2114 = vmatprep.subr.mxu0 0.0
  %2115 = vmatpush1.msra.mxu0 0.0
  %2116 = vmatprep.subr.mxu0 0.0
  %2117 = vmatpush1.msra.mxu0 0.0
  %2118 = vmatprep.subr.mxu0 0.0
  %2119 = vmatpush1.msra.mxu0 0.0
  %2120 = vmatprep.subr.mxu0 0.0
  %2121 = vmatpush1.msra.mxu0 0.0
  %2122 = vmatprep.subr.mxu0 0.0
  %2123 = vmatpush1.msra.mxu0 0.0
  %2124 = vmatprep.subr.mxu0 0.0
  %2125 = vmatpush1.msra.mxu0 0.0
  %2126 = vmatprep.subr.mxu0 0.0
  %2127 = vmatpush1.msra.mxu0 0.0
  %2128 = vmatprep.subr.mxu0 0.0
  %2129 = vmatpush1.msra.mxu0 0.0
  %2130 = vmatprep.subr.mxu0 0.0
  %2131 = vmatpush1.msra.mxu0 0.0
  %2132 = vmatprep.subr.mxu0 0.0
  %2133 = vmatpush1.msra.mxu0 0.0
  %2134 = vmatprep.subr.mxu0 0.0
  %2135 = vmatpush1.msra.mxu0 0.0
  %2136 = vmatprep.subr.mxu0 0.0
  %2137 = vmatpush1.msra.mxu0 0.0
  %2138 = vmatprep.subr.mxu0 0.0
  %2139 = vmatpush1.msra.mxu0 0.0
  %2140 = vmatprep.subr.mxu0 0.0
  %2141 = vmatpush1.msra.mxu0 0.0
  %2142 = vmatprep.subr.mxu0 0.0
  %2143 = vmatpush1.msra.mxu0 0.0
  %2144 = vmatprep.subr.mxu0 0.0
  %2145 = vmatpush1.msra.mxu0 0.0
  %2146 = vmatprep.subr.mxu0 0.0
  %2147 = vmatpush1.msra.mxu0 0.0
  %2148 = vmatprep.subr.mxu0 0.0
  %2149 = vmatpush1.msra.mxu0 0.0
  %2150 = vmatprep.subr.mxu0 0.0
  %2151 = vmatpush1.msra.mxu0 0.0
  %2152 = vmatprep.subr.mxu0 0.0
  %2153 = vmatpush1.msra.mxu0 0.0
  %2154 = vmatprep.subr.mxu0 0.0
  %2155 = vmatpush1.msra.mxu0 0.0
  %2156 = vmatprep.subr.mxu0 0.0
  %2157 = vmatpush1.msra.mxu0 0.0
  %2158 = vmatprep.subr.mxu0 0.0
  %2159 = vmatpush1.msra.mxu0 0.0
  %2160 = vmatprep.subr.mxu0 0.0
  %2161 = vmatpush1.msra.mxu0 0.0
  %2162 = vmatprep.mubr.f32.mxu0 0.0
  %2163 = vmatmul.mubr.f32.gmra.mrb[0].mxu0 %v623
  %v2164 = vpop.f32.mrb[0].mxu0
  %v2165 = vadd.f32 0.0, %v2164
  %v2166 = vpop.f32.mrb[0].mxu0
  %2167 = vmatprep.mubr.f32.mxu0 0.0
  %2168 = vmatmul.mubr.f32.gmra.mrb[0].mxu0 %v626
  %v2169 = vpop.f32.mrb[0].mxu0
  %v2170 = vadd.f32 0.0, %v2169
  %v2171 = vpop.f32.mrb[0].mxu0
  %2172 = vmatprep.mubr.f32.mxu0 0.0
  %2173 = vmatmul.mubr.f32.gmra.mrb[0].mxu0 %v629
  %v2174 = vpop.f32.mrb[0].mxu0
  %v2175 = vadd.f32 0.0, %v2174
  %v2176 = vpop.f32.mrb[0].mxu0
  %2177 = vmatprep.mubr.f32.mxu0 0.0
  %2178 = vmatmul.mubr.f32.gmra.mrb[0].mxu0 %v632
  %v2179 = vpop.f32.mrb[0].mxu0
  %v2180 = vadd.f32 0.0, %v2179
  %v2181 = vpop.f32.mrb[0].mxu0
  %2182 = vmatprep.mubr.f32.mxu0 0.0
  %2183 = vmatmul.mubr.f32.gmra.mrb[0].mxu0 %v635
  %v2184 = vpop.f32.mrb[0].mxu0
  %v2185 = vadd.f32 0.0, %v2184
  %v2186 = vpop.f32.mrb[0].mxu0
  %2187 = vmatprep.mubr.f32.mxu0 0.0
  %2188 = vmatmul.mubr.f32.gmra.mrb[0].mxu0 %v638
  %v2189 = vpop.f32.mrb[0].mxu0
  %v2190 = vadd.f32 0.0, %v2189
  %v2191 = vpop.f32.mrb[0].mxu0
  %2192 = vmatprep.mubr.f32.mxu0 0.0
  %2193 = vmatmul.mubr.f32.gmra.mrb[0].mxu0 %v641
  %v2194 = vpop.f32.mrb[0].mxu0
  %v2195 = vadd.f32 0.0, %v2194
  %v2196 = vpop.f32.mrb[0].mxu0
  %2197 = vmatprep.mubr.f32.mxu0 0.0
  %2198 = vmatmul.mubr.f32.gmra.mrb[0].mxu0 %v644
  %v2199 = vpop.f32.mrb[0].mxu0
  %v2200 = vadd.f32 0.0, %v2199
  %v2201 = vpop.f32.mrb[0].mxu0
  %2202 = vmatprep.mubr.f32.mxu0 0.0
  %2203 = vmatmul.mubr.f32.gmra.mrb[0].mxu0 %v647
  %v2204 = vpop.f32.mrb[0].mxu0
  %v2205 = vadd.f32 0.0, %v2204
  %v2206 = vpop.f32.mrb[0].mxu0
  %2207 = vmatprep.mubr.f32.mxu0 0.0
  %2208 = vmatmul.mubr.f32.gmra.mrb[0].mxu0 %v650
  %v2209 = vpop.f32.mrb[0].mxu0
  %v2210 = vadd.f32 0.0, %v2209
  %v2211 = vpop.f32.mrb[0].mxu0
  %2212 = vmatprep.mubr.f32.mxu0 0.0
  %2213 = vmatmul.mubr.f32.gmra.mrb[0].mxu0 %v653
  %v2214 = vpop.f32.mrb[0].mxu0
  %v2215 = vadd.f32 0.0, %v2214
  %v2216 = vpop.f32.mrb[0].mxu0
  %2217 = vmatprep.mubr.f32.mxu0 0.0
  %2218 = vmatmul.mubr.f32.gmra.mrb[0].mxu0 %v656
  %v2219 = vpop.f32.mrb[0].mxu0
  %v2220 = vadd.f32 0.0, %v2219
  %v2221 = vpop.f32.mrb[0].mxu0
  %2222 = vmatprep.mubr.f32.mxu0 0.0
  %2223 = vmatmul.mubr.f32.gmra.mrb[0].mxu0 %v659
  %v2224 = vpop.f32.mrb[0].mxu0
  %v2225 = vadd.f32 0.0, %v2224
  %v2226 = vpop.f32.mrb[0].mxu0
  %2227 = vmatprep.mubr.f32.mxu0 0.0
  %2228 = vmatmul.mubr.f32.gmra.mrb[0].mxu0 %v662
  %v2229 = vpop.f32.mrb[0].mxu0
  %v2230 = vadd.f32 0.0, %v2229
  %v2231 = vpop.f32.mrb[0].mxu0
  %2232 = vmatprep.mubr.f32.mxu0 0.0
  %2233 = vmatmul.mubr.f32.gmra.mrb[0].mxu0 %v665
  %v2234 = vpop.f32.mrb[0].mxu0
  %v2235 = vadd.f32 0.0, %v2234
  %v2236 = vpop.f32.mrb[0].mxu0
  %2237 = vmatprep.mubr.f32.mxu0 0.0
  %2238 = vmatmul.mubr.f32.gmra.mrb[0].mxu0 %v668
  %v2239 = vpop.f32.mrb[0].mxu0
  %v2240 = vadd.f32 0.0, %v2239
  %v2241 = vpop.f32.mrb[0].mxu0
  %2242 = vdwg.mxu0
  %2259 = vrot.lane.b32.xlu0 %v2165, 5
  %v2260 = vpop.permute.xlu0 %2259
  %2261 = vrot.lane.b32.xlu0 %v2170, 5
  %v2262 = vpop.permute.xlu0 %2261
  %2263 = vrot.lane.b32.xlu0 %v2175, 5
  %v2264 = vpop.permute.xlu0 %2263
  %2265 = vrot.lane.b32.xlu0 %v2180, 5
  %v2266 = vpop.permute.xlu0 %2265
  %2267 = vrot.lane.b32.xlu0 %v2185, 5
  %v2268 = vpop.permute.xlu0 %2267
  %2269 = vrot.lane.b32.xlu0 %v2190, 5
  %v2270 = vpop.permute.xlu0 %2269
  %2271 = vrot.lane.b32.xlu0 %v2195, 5
  %v2272 = vpop.permute.xlu0 %2271
  %2273 = vrot.lane.b32.xlu0 %v2200, 5
  %v2274 = vpop.permute.xlu0 %2273
  %2275 = vrot.lane.b32.xlu0 %v2205, 5
  %v2276 = vpop.permute.xlu0 %2275
  %2277 = vrot.lane.b32.xlu0 %v2210, 5
  %v2278 = vpop.permute.xlu0 %2277
  %2279 = vrot.lane.b32.xlu0 %v2215, 5
  %v2280 = vpop.permute.xlu0 %2279
  %2281 = vrot.lane.b32.xlu0 %v2220, 5
  %v2282 = vpop.permute.xlu0 %2281
  %2283 = vrot.lane.b32.xlu0 %v2225, 5
  %v2284 = vpop.permute.xlu0 %2283
  %2285 = vrot.lane.b32.xlu0 %v2230, 5
  %v2286 = vpop.permute.xlu0 %2285
  %2287 = vrot.lane.b32.xlu0 %v2235, 5
  %v2288 = vpop.permute.xlu0 %2287
  %2289 = vrot.lane.b32.xlu0 %v2240, 5
  %v2290 = vpop.permute.xlu0 %2289
  %v2307 = vadd.f32 %v362, %v2260
  %v2308 = vadd.f32 %v367, %v2262
  %v2309 = vadd.f32 %v372, %v2264
  %v2310 = vadd.f32 %v377, %v2266
  %v2311 = vadd.f32 %v382, %v2268
  %v2312 = vadd.f32 %v387, %v2270
  %v2313 = vadd.f32 %v392, %v2272
  %v2314 = vadd.f32 %v397, %v2274
  %v2315 = vadd.f32 %v402, %v2276
  %v2316 = vadd.f32 %v407, %v2278
  %v2317 = vadd.f32 %v412, %v2280
  %v2318 = vadd.f32 %v417, %v2282
  %v2319 = vadd.f32 %v422, %v2284
  %v2320 = vadd.f32 %v427, %v2286
  %v2321 = vadd.f32 %v432, %v2288
  %v2322 = vadd.f32 %v437, %v2290
  %v2323 = vmul.f32 %v2307, %v505
  %v2324 = vmul.f32 %v2308, %v506
  %v2325 = vmul.f32 %v2309, %v507
  %v2326 = vmul.f32 %v2310, %v508
  %v2327 = vmul.f32 %v2311, %v509
  %v2328 = vmul.f32 %v2312, %v510
  %v2329 = vmul.f32 %v2313, %v511
  %v2330 = vmul.f32 %v2314, %v512
  %v2331 = vmul.f32 %v2315, %v513
  %v2332 = vmul.f32 %v2316, %v514
  %v2333 = vmul.f32 %v2317, %v515
  %v2334 = vmul.f32 %v2318, %v516
  %v2335 = vmul.f32 %v2319, %v517
  %v2336 = vmul.f32 %v2320, %v518
  %v2337 = vmul.f32 %v2321, %v519
  %v2338 = vmul.f32 %v2322, %v520
  %v2339 = vtanh.pop %v2323
  %v2340 = vtanh.pop %v2324
  %v2341 = vtanh.pop %v2325
  %v2342 = vtanh.pop %v2326
  %v2343 = vtanh.pop %v2327
  %v2344 = vtanh.pop %v2328
  %v2345 = vtanh.pop %v2329
  %v2346 = vtanh.pop %v2330
  %v2347 = vtanh.pop %v2331
  %v2348 = vtanh.pop %v2332
  %v2349 = vtanh.pop %v2333
  %v2350 = vtanh.pop %v2334
  %v2351 = vtanh.pop %v2335
  %v2352 = vtanh.pop %v2336
  %v2353 = vtanh.pop %v2337
  %v2354 = vtanh.pop %v2338
  %v2355 = vmul.f32 %v2339, 0.5
  %v2356 = vmul.f32 %v2340, 0.5
  %v2357 = vmul.f32 %v2341, 0.5
  %v2358 = vmul.f32 %v2342, 0.5
  %v2359 = vmul.f32 %v2343, 0.5
  %v2360 = vmul.f32 %v2344, 0.5
  %v2361 = vmul.f32 %v2345, 0.5
  %v2362 = vmul.f32 %v2346, 0.5
  %v2363 = vmul.f32 %v2347, 0.5
  %v2364 = vmul.f32 %v2348, 0.5
  %v2365 = vmul.f32 %v2349, 0.5
  %v2366 = vmul.f32 %v2350, 0.5
  %v2367 = vmul.f32 %v2351, 0.5
  %v2368 = vmul.f32 %v2352, 0.5
  %v2369 = vmul.f32 %v2353, 0.5
  %v2370 = vmul.f32 %v2354, 0.5
  %v2371 = vadd.f32 %v2355, 0.5
  %v2372 = vadd.f32 %v2356, 0.5
  %v2373 = vadd.f32 %v2357, 0.5
  %v2374 = vadd.f32 %v2358, 0.5
  %v2375 = vadd.f32 %v2359, 0.5
  %v2376 = vadd.f32 %v2360, 0.5
  %v2377 = vadd.f32 %v2361, 0.5
  %v2378 = vadd.f32 %v2362, 0.5
  %v2379 = vadd.f32 %v2363, 0.5
  %v2380 = vadd.f32 %v2364, 0.5
  %v2381 = vadd.f32 %v2365, 0.5
  %v2382 = vadd.f32 %v2366, 0.5
  %v2383 = vadd.f32 %v2367, 0.5
  %v2384 = vadd.f32 %v2368, 0.5
  %v2385 = vadd.f32 %v2369, 0.5
  %v2386 = vadd.f32 %v2370, 0.5
  %v2387 = vsel %vm489, %v2339, %v2371
  %v2388 = vsel %vm490, %v2340, %v2372
  %v2389 = vsel %vm491, %v2341, %v2373
  %v2390 = vsel %vm492, %v2342, %v2374
  %v2391 = vsel %vm493, %v2343, %v2375
  %v2392 = vsel %vm494, %v2344, %v2376
  %v2393 = vsel %vm495, %v2345, %v2377
  %v2394 = vsel %vm496, %v2346, %v2378
  %v2395 = vsel %vm497, %v2347, %v2379
  %v2396 = vsel %vm498, %v2348, %v2380
  %v2397 = vsel %vm499, %v2349, %v2381
  %v2398 = vsel %vm500, %v2350, %v2382
  %v2399 = vsel %vm501, %v2351, %v2383
  %v2400 = vsel %vm502, %v2352, %v2384
  %v2401 = vsel %vm503, %v2353, %v2385
  %v2402 = vsel %vm504, %v2354, %v2386
  %2407 = vrot.lane.b32.xlu0 %v2070, 1
  %v2408 = vpop.permute.xlu0 %2407
  %2409 = vrot.lane.b32.xlu0 %v2071, 1
  %v2410 = vpop.permute.xlu0 %2409
  %2411 = vrot.lane.b32.xlu0 %v2072, 1
  %v2412 = vpop.permute.xlu0 %2411
  %2413 = vrot.lane.b32.xlu0 %v2073, 1
  %v2414 = vpop.permute.xlu0 %2413
  %v2419 = vmul.f32 %v2391, %v2408
  %v2420 = vmul.f32 %v2392, %v2410
  %v2421 = vmul.f32 %v2393, %v2412
  %v2422 = vmul.f32 %v2394, %v2414
  %v2423 = vmul.f32 %v2387, %v2395
  %v2424 = vmul.f32 %v2388, %v2396
  %v2425 = vmul.f32 %v2389, %v2397
  %v2426 = vmul.f32 %v2390, %v2398
  %v2427 = vadd.f32 %v2419, %v2423
  %v2428 = vadd.f32 %v2420, %v2424
  %v2429 = vadd.f32 %v2421, %v2425
  %v2430 = vadd.f32 %v2422, %v2426
  %v2431 = vtanh.pop %v2427
  %v2432 = vtanh.pop %v2428
  %v2433 = vtanh.pop %v2429
  %v2434 = vtanh.pop %v2430
  %v2435 = vmul.f32 %v2399, %v2431
  %v2436 = vmul.f32 %v2400, %v2432
  %v2437 = vmul.f32 %v2401, %v2433
  %v2438 = vmul.f32 %v2402, %v2434
  %2443 = vrot.lane.b32.xlu0 %v2435, 123
  %v2444 = vpop.permute.xlu0 %2443
  %2445 = vrot.lane.b32.xlu0 %v2436, 123
  %v2446 = vpop.permute.xlu0 %2445
  %2447 = vrot.lane.b32.xlu0 %v2437, 123
  %v2448 = vpop.permute.xlu0 %2447
  %2449 = vrot.lane.b32.xlu0 %v2438, 123
  %v2450 = vpop.permute.xlu0 %2449
  %2455 = vmatprep.subr.mxu0 0.0
  %2456 = vmatpush1.msra.mxu0 %v2444
  %2457 = vmatprep.subr.mxu0 0.0
  %2458 = vmatpush1.msra.mxu0 %v2446
  %2459 = vmatprep.subr.mxu0 0.0
  %2460 = vmatpush1.msra.mxu0 %v2448
  %2461 = vmatprep.subr.mxu0 0.0
  %2462 = vmatpush1.msra.mxu0 %v2450
  %2463 = vmatprep.subr.mxu0 0.0
  %2464 = vmatpush1.msra.mxu0 0.0
  %2465 = vmatprep.subr.mxu0 0.0
  %2466 = vmatpush1.msra.mxu0 0.0
  %2467 = vmatprep.subr.mxu0 0.0
  %2468 = vmatpush1.msra.mxu0 0.0
  %2469 = vmatprep.subr.mxu0 0.0
  %2470 = vmatpush1.msra.mxu0 0.0
  %2471 = vmatprep.subr.mxu0 0.0
  %2472 = vmatpush1.msra.mxu0 0.0
  %2473 = vmatprep.subr.mxu0 0.0
  %2474 = vmatpush1.msra.mxu0 0.0
  %2475 = vmatprep.subr.mxu0 0.0
  %2476 = vmatpush1.msra.mxu0 0.0
  %2477 = vmatprep.subr.mxu0 0.0
  %2478 = vmatpush1.msra.mxu0 0.0
  %2479 = vmatprep.subr.mxu0 0.0
  %2480 = vmatpush1.msra.mxu0 0.0
  %2481 = vmatprep.subr.mxu0 0.0
  %2482 = vmatpush1.msra.mxu0 0.0
  %2483 = vmatprep.subr.mxu0 0.0
  %2484 = vmatpush1.msra.mxu0 0.0
  %2485 = vmatprep.subr.mxu0 0.0
  %2486 = vmatpush1.msra.mxu0 0.0
  %2487 = vmatprep.subr.mxu0 0.0
  %2488 = vmatpush1.msra.mxu0 0.0
  %2489 = vmatprep.subr.mxu0 0.0
  %2490 = vmatpush1.msra.mxu0 0.0
  %2491 = vmatprep.subr.mxu0 0.0
  %2492 = vmatpush1.msra.mxu0 0.0
  %2493 = vmatprep.subr.mxu0 0.0
  %2494 = vmatpush1.msra.mxu0 0.0
  %2495 = vmatprep.subr.mxu0 0.0
  %2496 = vmatpush1.msra.mxu0 0.0
  %2497 = vmatprep.subr.mxu0 0.0
  %2498 = vmatpush1.msra.mxu0 0.0
  %2499 = vmatprep.subr.mxu0 0.0
  %2500 = vmatpush1.msra.mxu0 0.0
  %2501 = vmatprep.subr.mxu0 0.0
  %2502 = vmatpush1.msra.mxu0 0.0
  %2503 = vmatprep.subr.mxu0 0.0
  %2504 = vmatpush1.msra.mxu0 0.0
  %2505 = vmatprep.subr.mxu0 0.0
  %2506 = vmatpush1.msra.mxu0 0.0
  %2507 = vmatprep.subr.mxu0 0.0
  %2508 = vmatpush1.msra.mxu0 0.0
  %2509 = vmatprep.subr.mxu0 0.0
  %2510 = vmatpush1.msra.mxu0 0.0
  %2511 = vmatprep.subr.mxu0 0.0
  %2512 = vmatpush1.msra.mxu0 0.0
  %2513 = vmatprep.subr.mxu0 0.0
  %2514 = vmatpush1.msra.mxu0 0.0
  %2515 = vmatprep.subr.mxu0 0.0
  %2516 = vmatpush1.msra.mxu0 0.0
  %2517 = vmatprep.subr.mxu0 0.0
  %2518 = vmatpush1.msra.mxu0 0.0
  %2519 = vmatprep.mubr.f32.mxu0 0.0
  %2520 = vmatmul.mubr.f32.gmra.mrb[0].mxu0 %v623
  %v2521 = vpop.f32.mrb[0].mxu0
  %v2522 = vadd.f32 0.0, %v2521
  %v2523 = vpop.f32.mrb[0].mxu0
  %2524 = vmatprep.mubr.f32.mxu0 0.0
  %2525 = vmatmul.mubr.f32.gmra.mrb[0].mxu0 %v626
  %v2526 = vpop.f32.mrb[0].mxu0
  %v2527 = vadd.f32 0.0, %v2526
  %v2528 = vpop.f32.mrb[0].mxu0
  %2529 = vmatprep.mubr.f32.mxu0 0.0
  %2530 = vmatmul.mubr.f32.gmra.mrb[0].mxu0 %v629
  %v2531 = vpop.f32.mrb[0].mxu0
  %v2532 = vadd.f32 0.0, %v2531
  %v2533 = vpop.f32.mrb[0].mxu0
  %2534 = vmatprep.mubr.f32.mxu0 0.0
  %2535 = vmatmul.mubr.f32.gmra.mrb[0].mxu0 %v632
  %v2536 = vpop.f32.mrb[0].mxu0
  %v2537 = vadd.f32 0.0, %v2536
  %v2538 = vpop.f32.mrb[0].mxu0
  %2539 = vmatprep.mubr.f32.mxu0 0.0
  %2540 = vmatmul.mubr.f32.gmra.mrb[0].mxu0 %v635
  %v2541 = vpop.f32.mrb[0].mxu0
  %v2542 = vadd.f32 0.0, %v2541
  %v2543 = vpop.f32.mrb[0].mxu0
  %2544 = vmatprep.mubr.f32.mxu0 0.0
  %2545 = vmatmul.mubr.f32.gmra.mrb[0].mxu0 %v638
  %v2546 = vpop.f32.mrb[0].mxu0
  %v2547 = vadd.f32 0.0, %v2546
  %v2548 = vpop.f32.mrb[0].mxu0
  %2549 = vmatprep.mubr.f32.mxu0 0.0
  %2550 = vmatmul.mubr.f32.gmra.mrb[0].mxu0 %v641
  %v2551 = vpop.f32.mrb[0].mxu0
  %v2552 = vadd.f32 0.0, %v2551
  %v2553 = vpop.f32.mrb[0].mxu0
  %2554 = vmatprep.mubr.f32.mxu0 0.0
  %2555 = vmatmul.mubr.f32.gmra.mrb[0].mxu0 %v644
  %v2556 = vpop.f32.mrb[0].mxu0
  %v2557 = vadd.f32 0.0, %v2556
  %v2558 = vpop.f32.mrb[0].mxu0
  %2559 = vmatprep.mubr.f32.mxu0 0.0
  %2560 = vmatmul.mubr.f32.gmra.mrb[0].mxu0 %v647
  %v2561 = vpop.f32.mrb[0].mxu0
  %v2562 = vadd.f32 0.0, %v2561
  %v2563 = vpop.f32.mrb[0].mxu0
  %2564 = vmatprep.mubr.f32.mxu0 0.0
  %2565 = vmatmul.mubr.f32.gmra.mrb[0].mxu0 %v650
  %v2566 = vpop.f32.mrb[0].mxu0
  %v2567 = vadd.f32 0.0, %v2566
  %v2568 = vpop.f32.mrb[0].mxu0
  %2569 = vmatprep.mubr.f32.mxu0 0.0
  %2570 = vmatmul.mubr.f32.gmra.mrb[0].mxu0 %v653
  %v2571 = vpop.f32.mrb[0].mxu0
  %v2572 = vadd.f32 0.0, %v2571
  %v2573 = vpop.f32.mrb[0].mxu0
  %2574 = vmatprep.mubr.f32.mxu0 0.0
  %2575 = vmatmul.mubr.f32.gmra.mrb[0].mxu0 %v656
  %v2576 = vpop.f32.mrb[0].mxu0
  %v2577 = vadd.f32 0.0, %v2576
  %v2578 = vpop.f32.mrb[0].mxu0
  %2579 = vmatprep.mubr.f32.mxu0 0.0
  %2580 = vmatmul.mubr.f32.gmra.mrb[0].mxu0 %v659
  %v2581 = vpop.f32.mrb[0].mxu0
  %v2582 = vadd.f32 0.0, %v2581
  %v2583 = vpop.f32.mrb[0].mxu0
  %2584 = vmatprep.mubr.f32.mxu0 0.0
  %2585 = vmatmul.mubr.f32.gmra.mrb[0].mxu0 %v662
  %v2586 = vpop.f32.mrb[0].mxu0
  %v2587 = vadd.f32 0.0, %v2586
  %v2588 = vpop.f32.mrb[0].mxu0
  %2589 = vmatprep.mubr.f32.mxu0 0.0
  %2590 = vmatmul.mubr.f32.gmra.mrb[0].mxu0 %v665
  %v2591 = vpop.f32.mrb[0].mxu0
  %v2592 = vadd.f32 0.0, %v2591
  %v2593 = vpop.f32.mrb[0].mxu0
  %2594 = vmatprep.mubr.f32.mxu0 0.0
  %2595 = vmatmul.mubr.f32.gmra.mrb[0].mxu0 %v668
  %v2596 = vpop.f32.mrb[0].mxu0
  %v2597 = vadd.f32 0.0, %v2596
  %v2598 = vpop.f32.mrb[0].mxu0
  %2599 = vdwg.mxu0
  %2616 = vrot.lane.b32.xlu0 %v2522, 6
  %v2617 = vpop.permute.xlu0 %2616
  %2618 = vrot.lane.b32.xlu0 %v2527, 6
  %v2619 = vpop.permute.xlu0 %2618
  %2620 = vrot.lane.b32.xlu0 %v2532, 6
  %v2621 = vpop.permute.xlu0 %2620
  %2622 = vrot.lane.b32.xlu0 %v2537, 6
  %v2623 = vpop.permute.xlu0 %2622
  %2624 = vrot.lane.b32.xlu0 %v2542, 6
  %v2625 = vpop.permute.xlu0 %2624
  %2626 = vrot.lane.b32.xlu0 %v2547, 6
  %v2627 = vpop.permute.xlu0 %2626
  %2628 = vrot.lane.b32.xlu0 %v2552, 6
  %v2629 = vpop.permute.xlu0 %2628
  %2630 = vrot.lane.b32.xlu0 %v2557, 6
  %v2631 = vpop.permute.xlu0 %2630
  %2632 = vrot.lane.b32.xlu0 %v2562, 6
  %v2633 = vpop.permute.xlu0 %2632
  %2634 = vrot.lane.b32.xlu0 %v2567, 6
  %v2635 = vpop.permute.xlu0 %2634
  %2636 = vrot.lane.b32.xlu0 %v2572, 6
  %v2637 = vpop.permute.xlu0 %2636
  %2638 = vrot.lane.b32.xlu0 %v2577, 6
  %v2639 = vpop.permute.xlu0 %2638
  %2640 = vrot.lane.b32.xlu0 %v2582, 6
  %v2641 = vpop.permute.xlu0 %2640
  %2642 = vrot.lane.b32.xlu0 %v2587, 6
  %v2643 = vpop.permute.xlu0 %2642
  %2644 = vrot.lane.b32.xlu0 %v2592, 6
  %v2645 = vpop.permute.xlu0 %2644
  %2646 = vrot.lane.b32.xlu0 %v2597, 6
  %v2647 = vpop.permute.xlu0 %2646
  %v2664 = vadd.f32 %v362, %v2617
  %v2665 = vadd.f32 %v367, %v2619
  %v2666 = vadd.f32 %v372, %v2621
  %v2667 = vadd.f32 %v377, %v2623
  %v2668 = vadd.f32 %v382, %v2625
  %v2669 = vadd.f32 %v387, %v2627
  %v2670 = vadd.f32 %v392, %v2629
  %v2671 = vadd.f32 %v397, %v2631
  %v2672 = vadd.f32 %v402, %v2633
  %v2673 = vadd.f32 %v407, %v2635
  %v2674 = vadd.f32 %v412, %v2637
  %v2675 = vadd.f32 %v417, %v2639
  %v2676 = vadd.f32 %v422, %v2641
  %v2677 = vadd.f32 %v427, %v2643
  %v2678 = vadd.f32 %v432, %v2645
  %v2679 = vadd.f32 %v437, %v2647
  %v2680 = vmul.f32 %v2664, %v505
  %v2681 = vmul.f32 %v2665, %v506
  %v2682 = vmul.f32 %v2666, %v507
  %v2683 = vmul.f32 %v2667, %v508
  %v2684 = vmul.f32 %v2668, %v509
  %v2685 = vmul.f32 %v2669, %v510
  %v2686 = vmul.f32 %v2670, %v511
  %v2687 = vmul.f32 %v2671, %v512
  %v2688 = vmul.f32 %v2672, %v513
  %v2689 = vmul.f32 %v2673, %v514
  %v2690 = vmul.f32 %v2674, %v515
  %v2691 = vmul.f32 %v2675, %v516
  %v2692 = vmul.f32 %v2676, %v517
  %v2693 = vmul.f32 %v2677, %v518
  %v2694 = vmul.f32 %v2678, %v519
  %v2695 = vmul.f32 %v2679, %v520
  %v2696 = vtanh.pop %v2680
  %v2697 = vtanh.pop %v2681
  %v2698 = vtanh.pop %v2682
  %v2699 = vtanh.pop %v2683
  %v2700 = vtanh.pop %v2684
  %v2701 = vtanh.pop %v2685
  %v2702 = vtanh.pop %v2686
  %v2703 = vtanh.pop %v2687
  %v2704 = vtanh.pop %v2688
  %v2705 = vtanh.pop %v2689
  %v2706 = vtanh.pop %v2690
  %v2707 = vtanh.pop %v2691
  %v2708 = vtanh.pop %v2692
  %v2709 = vtanh.pop %v2693
  %v2710 = vtanh.pop %v2694
  %v2711 = vtanh.pop %v2695
  %v2712 = vmul.f32 %v2696, 0.5
  %v2713 = vmul.f32 %v2697, 0.5
  %v2714 = vmul.f32 %v2698, 0.5
  %v2715 = vmul.f32 %v2699, 0.5
  %v2716 = vmul.f32 %v2700, 0.5
  %v2717 = vmul.f32 %v2701, 0.5
  %v2718 = vmul.f32 %v2702, 0.5
  %v2719 = vmul.f32 %v2703, 0.5
  %v2720 = vmul.f32 %v2704, 0.5
  %v2721 = vmul.f32 %v2705, 0.5
  %v2722 = vmul.f32 %v2706, 0.5
  %v2723 = vmul.f32 %v2707, 0.5
  %v2724 = vmul.f32 %v2708, 0.5
  %v2725 = vmul.f32 %v2709, 0.5
  %v2726 = vmul.f32 %v2710, 0.5
  %v2727 = vmul.f32 %v2711, 0.5
  %v2728 = vadd.f32 %v2712, 0.5
  %v2729 = vadd.f32 %v2713, 0.5
  %v2730 = vadd.f32 %v2714, 0.5
  %v2731 = vadd.f32 %v2715, 0.5
  %v2732 = vadd.f32 %v2716, 0.5
  %v2733 = vadd.f32 %v2717, 0.5
  %v2734 = vadd.f32 %v2718, 0.5
  %v2735 = vadd.f32 %v2719, 0.5
  %v2736 = vadd.f32 %v2720, 0.5
  %v2737 = vadd.f32 %v2721, 0.5
  %v2738 = vadd.f32 %v2722, 0.5
  %v2739 = vadd.f32 %v2723, 0.5
  %v2740 = vadd.f32 %v2724, 0.5
  %v2741 = vadd.f32 %v2725, 0.5
  %v2742 = vadd.f32 %v2726, 0.5
  %v2743 = vadd.f32 %v2727, 0.5
  %v2744 = vsel %vm489, %v2696, %v2728
  %v2745 = vsel %vm490, %v2697, %v2729
  %v2746 = vsel %vm491, %v2698, %v2730
  %v2747 = vsel %vm492, %v2699, %v2731
  %v2748 = vsel %vm493, %v2700, %v2732
  %v2749 = vsel %vm494, %v2701, %v2733
  %v2750 = vsel %vm495, %v2702, %v2734
  %v2751 = vsel %vm496, %v2703, %v2735
  %v2752 = vsel %vm497, %v2704, %v2736
  %v2753 = vsel %vm498, %v2705, %v2737
  %v2754 = vsel %vm499, %v2706, %v2738
  %v2755 = vsel %vm500, %v2707, %v2739
  %v2756 = vsel %vm501, %v2708, %v2740
  %v2757 = vsel %vm502, %v2709, %v2741
  %v2758 = vsel %vm503, %v2710, %v2742
  %v2759 = vsel %vm504, %v2711, %v2743
  %2764 = vrot.lane.b32.xlu0 %v2427, 1
  %v2765 = vpop.permute.xlu0 %2764
  %2766 = vrot.lane.b32.xlu0 %v2428, 1
  %v2767 = vpop.permute.xlu0 %2766
  %2768 = vrot.lane.b32.xlu0 %v2429, 1
  %v2769 = vpop.permute.xlu0 %2768
  %2770 = vrot.lane.b32.xlu0 %v2430, 1
  %v2771 = vpop.permute.xlu0 %2770
  %v2776 = vmul.f32 %v2748, %v2765
  %v2777 = vmul.f32 %v2749, %v2767
  %v2778 = vmul.f32 %v2750, %v2769
  %v2779 = vmul.f32 %v2751, %v2771
  %v2780 = vmul.f32 %v2744, %v2752
  %v2781 = vmul.f32 %v2745, %v2753
  %v2782 = vmul.f32 %v2746, %v2754
  %v2783 = vmul.f32 %v2747, %v2755
  %v2784 = vadd.f32 %v2776, %v2780
  %v2785 = vadd.f32 %v2777, %v2781
  %v2786 = vadd.f32 %v2778, %v2782
  %v2787 = vadd.f32 %v2779, %v2783
  %v2788 = vtanh.pop %v2784
  %v2789 = vtanh.pop %v2785
  %v2790 = vtanh.pop %v2786
  %v2791 = vtanh.pop %v2787
  %v2792 = vmul.f32 %v2756, %v2788
  %v2793 = vmul.f32 %v2757, %v2789
  %v2794 = vmul.f32 %v2758, %v2790
  %v2795 = vmul.f32 %v2759, %v2791
  %2800 = vrot.lane.b32.xlu0 %v2792, 122
  %v2801 = vpop.permute.xlu0 %2800
  %2802 = vrot.lane.b32.xlu0 %v2793, 122
  %v2803 = vpop.permute.xlu0 %2802
  %2804 = vrot.lane.b32.xlu0 %v2794, 122
  %v2805 = vpop.permute.xlu0 %2804
  %2806 = vrot.lane.b32.xlu0 %v2795, 122
  %v2807 = vpop.permute.xlu0 %2806
  %2812 = vmatprep.subr.mxu0 0.0
  %2813 = vmatpush1.msra.mxu0 %v2801
  %2814 = vmatprep.subr.mxu0 0.0
  %2815 = vmatpush1.msra.mxu0 %v2803
  %2816 = vmatprep.subr.mxu0 0.0
  %2817 = vmatpush1.msra.mxu0 %v2805
  %2818 = vmatprep.subr.mxu0 0.0
  %2819 = vmatpush1.msra.mxu0 %v2807
  %2820 = vmatprep.subr.mxu0 0.0
  %2821 = vmatpush1.msra.mxu0 0.0
  %2822 = vmatprep.subr.mxu0 0.0
  %2823 = vmatpush1.msra.mxu0 0.0
  %2824 = vmatprep.subr.mxu0 0.0
  %2825 = vmatpush1.msra.mxu0 0.0
  %2826 = vmatprep.subr.mxu0 0.0
  %2827 = vmatpush1.msra.mxu0 0.0
  %2828 = vmatprep.subr.mxu0 0.0
  %2829 = vmatpush1.msra.mxu0 0.0
  %2830 = vmatprep.subr.mxu0 0.0
  %2831 = vmatpush1.msra.mxu0 0.0
  %2832 = vmatprep.subr.mxu0 0.0
  %2833 = vmatpush1.msra.mxu0 0.0
  %2834 = vmatprep.subr.mxu0 0.0
  %2835 = vmatpush1.msra.mxu0 0.0
  %2836 = vmatprep.subr.mxu0 0.0
  %2837 = vmatpush1.msra.mxu0 0.0
  %2838 = vmatprep.subr.mxu0 0.0
  %2839 = vmatpush1.msra.mxu0 0.0
  %2840 = vmatprep.subr.mxu0 0.0
  %2841 = vmatpush1.msra.mxu0 0.0
  %2842 = vmatprep.subr.mxu0 0.0
  %2843 = vmatpush1.msra.mxu0 0.0
  %2844 = vmatprep.subr.mxu0 0.0
  %2845 = vmatpush1.msra.mxu0 0.0
  %2846 = vmatprep.subr.mxu0 0.0
  %2847 = vmatpush1.msra.mxu0 0.0
  %2848 = vmatprep.subr.mxu0 0.0
  %2849 = vmatpush1.msra.mxu0 0.0
  %2850 = vmatprep.subr.mxu0 0.0
  %2851 = vmatpush1.msra.mxu0 0.0
  %2852 = vmatprep.subr.mxu0 0.0
  %2853 = vmatpush1.msra.mxu0 0.0
  %2854 = vmatprep.subr.mxu0 0.0
  %2855 = vmatpush1.msra.mxu0 0.0
  %2856 = vmatprep.subr.mxu0 0.0
  %2857 = vmatpush1.msra.mxu0 0.0
  %2858 = vmatprep.subr.mxu0 0.0
  %2859 = vmatpush1.msra.mxu0 0.0
  %2860 = vmatprep.subr.mxu0 0.0
  %2861 = vmatpush1.msra.mxu0 0.0
  %2862 = vmatprep.subr.mxu0 0.0
  %2863 = vmatpush1.msra.mxu0 0.0
  %2864 = vmatprep.subr.mxu0 0.0
  %2865 = vmatpush1.msra.mxu0 0.0
  %2866 = vmatprep.subr.mxu0 0.0
  %2867 = vmatpush1.msra.mxu0 0.0
  %2868 = vmatprep.subr.mxu0 0.0
  %2869 = vmatpush1.msra.mxu0 0.0
  %2870 = vmatprep.subr.mxu0 0.0
  %2871 = vmatpush1.msra.mxu0 0.0
  %2872 = vmatprep.subr.mxu0 0.0
  %2873 = vmatpush1.msra.mxu0 0.0
  %2874 = vmatprep.subr.mxu0 0.0
  %2875 = vmatpush1.msra.mxu0 0.0
  %2876 = vmatprep.mubr.f32.mxu0 0.0
  %2877 = vmatmul.mubr.f32.gmra.mrb[0].mxu0 %v623
  %v2878 = vpop.f32.mrb[0].mxu0
  %v2879 = vadd.f32 0.0, %v2878
  %v2880 = vpop.f32.mrb[0].mxu0
  %2881 = vmatprep.mubr.f32.mxu0 0.0
  %2882 = vmatmul.mubr.f32.gmra.mrb[0].mxu0 %v626
  %v2883 = vpop.f32.mrb[0].mxu0
  %v2884 = vadd.f32 0.0, %v2883
  %v2885 = vpop.f32.mrb[0].mxu0
  %2886 = vmatprep.mubr.f32.mxu0 0.0
  %2887 = vmatmul.mubr.f32.gmra.mrb[0].mxu0 %v629
  %v2888 = vpop.f32.mrb[0].mxu0
  %v2889 = vadd.f32 0.0, %v2888
  %v2890 = vpop.f32.mrb[0].mxu0
  %2891 = vmatprep.mubr.f32.mxu0 0.0
  %2892 = vmatmul.mubr.f32.gmra.mrb[0].mxu0 %v632
  %v2893 = vpop.f32.mrb[0].mxu0
  %v2894 = vadd.f32 0.0, %v2893
  %v2895 = vpop.f32.mrb[0].mxu0
  %2896 = vmatprep.mubr.f32.mxu0 0.0
  %2897 = vmatmul.mubr.f32.gmra.mrb[0].mxu0 %v635
  %v2898 = vpop.f32.mrb[0].mxu0
  %v2899 = vadd.f32 0.0, %v2898
  %v2900 = vpop.f32.mrb[0].mxu0
  %2901 = vmatprep.mubr.f32.mxu0 0.0
  %2902 = vmatmul.mubr.f32.gmra.mrb[0].mxu0 %v638
  %v2903 = vpop.f32.mrb[0].mxu0
  %v2904 = vadd.f32 0.0, %v2903
  %v2905 = vpop.f32.mrb[0].mxu0
  %2906 = vmatprep.mubr.f32.mxu0 0.0
  %2907 = vmatmul.mubr.f32.gmra.mrb[0].mxu0 %v641
  %v2908 = vpop.f32.mrb[0].mxu0
  %v2909 = vadd.f32 0.0, %v2908
  %v2910 = vpop.f32.mrb[0].mxu0
  %2911 = vmatprep.mubr.f32.mxu0 0.0
  %2912 = vmatmul.mubr.f32.gmra.mrb[0].mxu0 %v644
  %v2913 = vpop.f32.mrb[0].mxu0
  %v2914 = vadd.f32 0.0, %v2913
  %v2915 = vpop.f32.mrb[0].mxu0
  %2916 = vmatprep.mubr.f32.mxu0 0.0
  %2917 = vmatmul.mubr.f32.gmra.mrb[0].mxu0 %v647
  %v2918 = vpop.f32.mrb[0].mxu0
  %v2919 = vadd.f32 0.0, %v2918
  %v2920 = vpop.f32.mrb[0].mxu0
  %2921 = vmatprep.mubr.f32.mxu0 0.0
  %2922 = vmatmul.mubr.f32.gmra.mrb[0].mxu0 %v650
  %v2923 = vpop.f32.mrb[0].mxu0
  %v2924 = vadd.f32 0.0, %v2923
  %v2925 = vpop.f32.mrb[0].mxu0
  %2926 = vmatprep.mubr.f32.mxu0 0.0
  %2927 = vmatmul.mubr.f32.gmra.mrb[0].mxu0 %v653
  %v2928 = vpop.f32.mrb[0].mxu0
  %v2929 = vadd.f32 0.0, %v2928
  %v2930 = vpop.f32.mrb[0].mxu0
  %2931 = vmatprep.mubr.f32.mxu0 0.0
  %2932 = vmatmul.mubr.f32.gmra.mrb[0].mxu0 %v656
  %v2933 = vpop.f32.mrb[0].mxu0
  %v2934 = vadd.f32 0.0, %v2933
  %v2935 = vpop.f32.mrb[0].mxu0
  %2936 = vmatprep.mubr.f32.mxu0 0.0
  %2937 = vmatmul.mubr.f32.gmra.mrb[0].mxu0 %v659
  %v2938 = vpop.f32.mrb[0].mxu0
  %v2939 = vadd.f32 0.0, %v2938
  %v2940 = vpop.f32.mrb[0].mxu0
  %2941 = vmatprep.mubr.f32.mxu0 0.0
  %2942 = vmatmul.mubr.f32.gmra.mrb[0].mxu0 %v662
  %v2943 = vpop.f32.mrb[0].mxu0
  %v2944 = vadd.f32 0.0, %v2943
  %v2945 = vpop.f32.mrb[0].mxu0
  %2946 = vmatprep.mubr.f32.mxu0 0.0
  %2947 = vmatmul.mubr.f32.gmra.mrb[0].mxu0 %v665
  %v2948 = vpop.f32.mrb[0].mxu0
  %v2949 = vadd.f32 0.0, %v2948
  %v2950 = vpop.f32.mrb[0].mxu0
  %2951 = vmatprep.mubr.f32.mxu0 0.0
  %2952 = vmatmul.mubr.f32.gmra.mrb[0].mxu0 %v668
  %v2953 = vpop.f32.mrb[0].mxu0
  %v2954 = vadd.f32 0.0, %v2953
  %v2955 = vpop.f32.mrb[0].mxu0
  %2956 = vdwg.mxu0
  %2973 = vrot.lane.b32.xlu0 %v2879, 7
  %v2974 = vpop.permute.xlu0 %2973
  %2975 = vrot.lane.b32.xlu0 %v2884, 7
  %v2976 = vpop.permute.xlu0 %2975
  %2977 = vrot.lane.b32.xlu0 %v2889, 7
  %v2978 = vpop.permute.xlu0 %2977
  %2979 = vrot.lane.b32.xlu0 %v2894, 7
  %v2980 = vpop.permute.xlu0 %2979
  %2981 = vrot.lane.b32.xlu0 %v2899, 7
  %v2982 = vpop.permute.xlu0 %2981
  %2983 = vrot.lane.b32.xlu0 %v2904, 7
  %v2984 = vpop.permute.xlu0 %2983
  %2985 = vrot.lane.b32.xlu0 %v2909, 7
  %v2986 = vpop.permute.xlu0 %2985
  %2987 = vrot.lane.b32.xlu0 %v2914, 7
  %v2988 = vpop.permute.xlu0 %2987
  %2989 = vrot.lane.b32.xlu0 %v2919, 7
  %v2990 = vpop.permute.xlu0 %2989
  %2991 = vrot.lane.b32.xlu0 %v2924, 7
  %v2992 = vpop.permute.xlu0 %2991
  %2993 = vrot.lane.b32.xlu0 %v2929, 7
  %v2994 = vpop.permute.xlu0 %2993
  %2995 = vrot.lane.b32.xlu0 %v2934, 7
  %v2996 = vpop.permute.xlu0 %2995
  %2997 = vrot.lane.b32.xlu0 %v2939, 7
  %v2998 = vpop.permute.xlu0 %2997
  %2999 = vrot.lane.b32.xlu0 %v2944, 7
  %v3000 = vpop.permute.xlu0 %2999
  %3001 = vrot.lane.b32.xlu0 %v2949, 7
  %v3002 = vpop.permute.xlu0 %3001
  %3003 = vrot.lane.b32.xlu0 %v2954, 7
  %v3004 = vpop.permute.xlu0 %3003
  %v3021 = vadd.f32 %v362, %v2974
  %v3022 = vadd.f32 %v367, %v2976
  %v3023 = vadd.f32 %v372, %v2978
  %v3024 = vadd.f32 %v377, %v2980
  %v3025 = vadd.f32 %v382, %v2982
  %v3026 = vadd.f32 %v387, %v2984
  %v3027 = vadd.f32 %v392, %v2986
  %v3028 = vadd.f32 %v397, %v2988
  %v3029 = vadd.f32 %v402, %v2990
  %v3030 = vadd.f32 %v407, %v2992
  %v3031 = vadd.f32 %v412, %v2994
  %v3032 = vadd.f32 %v417, %v2996
  %v3033 = vadd.f32 %v422, %v2998
  %v3034 = vadd.f32 %v427, %v3000
  %v3035 = vadd.f32 %v432, %v3002
  %v3036 = vadd.f32 %v437, %v3004
  %v3037 = vmul.f32 %v3021, %v505
  %v3038 = vmul.f32 %v3022, %v506
  %v3039 = vmul.f32 %v3023, %v507
  %v3040 = vmul.f32 %v3024, %v508
  %v3041 = vmul.f32 %v3025, %v509
  %v3042 = vmul.f32 %v3026, %v510
  %v3043 = vmul.f32 %v3027, %v511
  %v3044 = vmul.f32 %v3028, %v512
  %v3045 = vmul.f32 %v3029, %v513
  %v3046 = vmul.f32 %v3030, %v514
  %v3047 = vmul.f32 %v3031, %v515
  %v3048 = vmul.f32 %v3032, %v516
  %v3049 = vmul.f32 %v3033, %v517
  %v3050 = vmul.f32 %v3034, %v518
  %v3051 = vmul.f32 %v3035, %v519
  %v3052 = vmul.f32 %v3036, %v520
  %v3053 = vtanh.pop %v3037
  %v3054 = vtanh.pop %v3038
  %v3055 = vtanh.pop %v3039
  %v3056 = vtanh.pop %v3040
  %v3057 = vtanh.pop %v3041
  %v3058 = vtanh.pop %v3042
  %v3059 = vtanh.pop %v3043
  %v3060 = vtanh.pop %v3044
  %v3061 = vtanh.pop %v3045
  %v3062 = vtanh.pop %v3046
  %v3063 = vtanh.pop %v3047
  %v3064 = vtanh.pop %v3048
  %v3065 = vtanh.pop %v3049
  %v3066 = vtanh.pop %v3050
  %v3067 = vtanh.pop %v3051
  %v3068 = vtanh.pop %v3052
  %v3069 = vmul.f32 %v3053, 0.5
  %v3070 = vmul.f32 %v3054, 0.5
  %v3071 = vmul.f32 %v3055, 0.5
  %v3072 = vmul.f32 %v3056, 0.5
  %v3073 = vmul.f32 %v3057, 0.5
  %v3074 = vmul.f32 %v3058, 0.5
  %v3075 = vmul.f32 %v3059, 0.5
  %v3076 = vmul.f32 %v3060, 0.5
  %v3077 = vmul.f32 %v3061, 0.5
  %v3078 = vmul.f32 %v3062, 0.5
  %v3079 = vmul.f32 %v3063, 0.5
  %v3080 = vmul.f32 %v3064, 0.5
  %v3081 = vmul.f32 %v3065, 0.5
  %v3082 = vmul.f32 %v3066, 0.5
  %v3083 = vmul.f32 %v3067, 0.5
  %v3084 = vmul.f32 %v3068, 0.5
  %v3085 = vadd.f32 %v3069, 0.5
  %v3086 = vadd.f32 %v3070, 0.5
  %v3087 = vadd.f32 %v3071, 0.5
  %v3088 = vadd.f32 %v3072, 0.5
  %v3089 = vadd.f32 %v3073, 0.5
  %v3090 = vadd.f32 %v3074, 0.5
  %v3091 = vadd.f32 %v3075, 0.5
  %v3092 = vadd.f32 %v3076, 0.5
  %v3093 = vadd.f32 %v3077, 0.5
  %v3094 = vadd.f32 %v3078, 0.5
  %v3095 = vadd.f32 %v3079, 0.5
  %v3096 = vadd.f32 %v3080, 0.5
  %v3097 = vadd.f32 %v3081, 0.5
  %v3098 = vadd.f32 %v3082, 0.5
  %v3099 = vadd.f32 %v3083, 0.5
  %v3100 = vadd.f32 %v3084, 0.5
  %v3101 = vsel %vm489, %v3053, %v3085
  %v3102 = vsel %vm490, %v3054, %v3086
  %v3103 = vsel %vm491, %v3055, %v3087
  %v3104 = vsel %vm492, %v3056, %v3088
  %v3105 = vsel %vm493, %v3057, %v3089
  %v3106 = vsel %vm494, %v3058, %v3090
  %v3107 = vsel %vm495, %v3059, %v3091
  %v3108 = vsel %vm496, %v3060, %v3092
  %v3109 = vsel %vm497, %v3061, %v3093
  %v3110 = vsel %vm498, %v3062, %v3094
  %v3111 = vsel %vm499, %v3063, %v3095
  %v3112 = vsel %vm500, %v3064, %v3096
  %v3113 = vsel %vm501, %v3065, %v3097
  %v3114 = vsel %vm502, %v3066, %v3098
  %v3115 = vsel %vm503, %v3067, %v3099
  %v3116 = vsel %vm504, %v3068, %v3100
  %3121 = vrot.lane.b32.xlu0 %v2784, 1
  %v3122 = vpop.permute.xlu0 %3121
  %3123 = vrot.lane.b32.xlu0 %v2785, 1
  %v3124 = vpop.permute.xlu0 %3123
  %3125 = vrot.lane.b32.xlu0 %v2786, 1
  %v3126 = vpop.permute.xlu0 %3125
  %3127 = vrot.lane.b32.xlu0 %v2787, 1
  %v3128 = vpop.permute.xlu0 %3127
  %v3133 = vmul.f32 %v3105, %v3122
  %v3134 = vmul.f32 %v3106, %v3124
  %v3135 = vmul.f32 %v3107, %v3126
  %v3136 = vmul.f32 %v3108, %v3128
  %v3137 = vmul.f32 %v3101, %v3109
  %v3138 = vmul.f32 %v3102, %v3110
  %v3139 = vmul.f32 %v3103, %v3111
  %v3140 = vmul.f32 %v3104, %v3112
  %v3141 = vadd.f32 %v3133, %v3137
  %v3142 = vadd.f32 %v3134, %v3138
  %v3143 = vadd.f32 %v3135, %v3139
  %v3144 = vadd.f32 %v3136, %v3140
  %v3145 = vtanh.pop %v3141
  %v3146 = vtanh.pop %v3142
  %v3147 = vtanh.pop %v3143
  %v3148 = vtanh.pop %v3144
  %v3149 = vmul.f32 %v3113, %v3145
  %v3150 = vmul.f32 %v3114, %v3146
  %v3151 = vmul.f32 %v3115, %v3147
  %v3152 = vmul.f32 %v3116, %v3148
  %v3153 = vld [vmem:[%s4] sm:$0xff]
  %v3154 = vld [vmem:[%s4 + $0x8] sm:$0xff]
  %v3155 = vld [vmem:[%s4 + $0x10] sm:$0xff]
  %v3156 = vld [vmem:[%s4 + $0x18] sm:$0xff]
  %v3157 = vld [vmem:[%s5] sm:$0xff]
  %v3158 = vld [vmem:[%s5 + $0x8] sm:$0xff]
  %v3159 = vld [vmem:[%s5 + $0x10] sm:$0xff]
  %v3160 = vld [vmem:[%s5 + $0x18] sm:$0xff]
  %3165 = vrot.lane.b32.xlu0 %v3149, 121
  %v3166 = vpop.permute.xlu0 %3165
  %3167 = vrot.lane.b32.xlu0 %v3150, 121
  %v3168 = vpop.permute.xlu0 %3167
  %3169 = vrot.lane.b32.xlu0 %v3151, 121
  %v3170 = vpop.permute.xlu0 %3169
  %3171 = vrot.lane.b32.xlu0 %v3152, 121
  %v3172 = vpop.permute.xlu0 %3171
  %v3178 = vsel %vm621, %v3153, 0
  %v3181 = vsel %vm621, %v3154, 0
  %v3184 = vsel %vm621, %v3155, 0
  %v3187 = vsel %vm621, %v3156, 0
  %3189 = vmatprep.subr.mxu0 0.0
  %3190 = vmatpush1.msra.mxu0 %v3166
  %3191 = vmatprep.subr.mxu0 0.0
  %3192 = vmatpush1.msra.mxu0 %v3168
  %3193 = vmatprep.subr.mxu0 0.0
  %3194 = vmatpush1.msra.mxu0 %v3170
  %3195 = vmatprep.subr.mxu0 0.0
  %3196 = vmatpush1.msra.mxu0 %v3172
  %3197 = vmatprep.subr.mxu0 0.0
  %3198 = vmatpush1.msra.mxu0 0.0
  %3199 = vmatprep.subr.mxu0 0.0
  %3200 = vmatpush1.msra.mxu0 0.0
  %3201 = vmatprep.subr.mxu0 0.0
  %3202 = vmatpush1.msra.mxu0 0.0
  %3203 = vmatprep.subr.mxu0 0.0
  %3204 = vmatpush1.msra.mxu0 0.0
  %3205 = vmatprep.subr.mxu0 0.0
  %3206 = vmatpush1.msra.mxu0 0.0
  %3207 = vmatprep.subr.mxu0 0.0
  %3208 = vmatpush1.msra.mxu0 0.0
  %3209 = vmatprep.subr.mxu0 0.0
  %3210 = vmatpush1.msra.mxu0 0.0
  %3211 = vmatprep.subr.mxu0 0.0
  %3212 = vmatpush1.msra.mxu0 0.0
  %3213 = vmatprep.subr.mxu0 0.0
  %3214 = vmatpush1.msra.mxu0 0.0
  %3215 = vmatprep.subr.mxu0 0.0
  %3216 = vmatpush1.msra.mxu0 0.0
  %3217 = vmatprep.subr.mxu0 0.0
  %3218 = vmatpush1.msra.mxu0 0.0
  %3219 = vmatprep.subr.mxu0 0.0
  %3220 = vmatpush1.msra.mxu0 0.0
  %3221 = vmatprep.subr.mxu0 0.0
  %3222 = vmatpush1.msra.mxu0 0.0
  %3223 = vmatprep.subr.mxu0 0.0
  %3224 = vmatpush1.msra.mxu0 0.0
  %3225 = vmatprep.subr.mxu0 0.0
  %3226 = vmatpush1.msra.mxu0 0.0
  %3227 = vmatprep.subr.mxu0 0.0
  %3228 = vmatpush1.msra.mxu0 0.0
  %3229 = vmatprep.subr.mxu0 0.0
  %3230 = vmatpush1.msra.mxu0 0.0
  %3231 = vmatprep.subr.mxu0 0.0
  %3232 = vmatpush1.msra.mxu0 0.0
  %3233 = vmatprep.subr.mxu0 0.0
  %3234 = vmatpush1.msra.mxu0 0.0
  %3235 = vmatprep.subr.mxu0 0.0
  %3236 = vmatpush1.msra.mxu0 0.0
  %3237 = vmatprep.subr.mxu0 0.0
  %3238 = vmatpush1.msra.mxu0 0.0
  %3239 = vmatprep.subr.mxu0 0.0
  %3240 = vmatpush1.msra.mxu0 0.0
  %3241 = vmatprep.subr.mxu0 0.0
  %3242 = vmatpush1.msra.mxu0 0.0
  %3243 = vmatprep.subr.mxu0 0.0
  %3244 = vmatpush1.msra.mxu0 0.0
  %3245 = vmatprep.subr.mxu0 0.0
  %3246 = vmatpush1.msra.mxu0 0.0
  %3247 = vmatprep.subr.mxu0 0.0
  %3248 = vmatpush1.msra.mxu0 0.0
  %3249 = vmatprep.subr.mxu0 0.0
  %3250 = vmatpush1.msra.mxu0 0.0
  %3251 = vmatprep.subr.mxu0 0.0
  %3252 = vmatpush1.msra.mxu0 0.0
  %3253 = vmatprep.mubr.f32.mxu0 0.0
  %3254 = vmatmul.mubr.f32.gmra.mrb[0].mxu0 %v3178
  %v3255 = vpop.f32.mrb[0].mxu0
  %v3256 = vadd.f32 %v3157, %v3255
  %v3257 = vpop.f32.mrb[0].mxu0
  %3258 = vmatprep.mubr.f32.mxu0 0.0
  %3259 = vmatmul.mubr.f32.gmra.mrb[0].mxu0 %v3181
  %v3260 = vpop.f32.mrb[0].mxu0
  %v3261 = vadd.f32 %v3158, %v3260
  %v3262 = vpop.f32.mrb[0].mxu0
  %3263 = vmatprep.mubr.f32.mxu0 0.0
  %3264 = vmatmul.mubr.f32.gmra.mrb[0].mxu0 %v3184
  %v3265 = vpop.f32.mrb[0].mxu0
  %v3266 = vadd.f32 %v3159, %v3265
  %v3267 = vpop.f32.mrb[0].mxu0
  %3268 = vmatprep.mubr.f32.mxu0 0.0
  %3269 = vmatmul.mubr.f32.gmra.mrb[0].mxu0 %v3187
  %v3270 = vpop.f32.mrb[0].mxu0
  %v3271 = vadd.f32 %v3160, %v3270
  %v3272 = vpop.f32.mrb[0].mxu0
  %3273 = vdwg.mxu0
  %v3274 = vmax.f32 %v3256, 0.0
  %v3275 = vmax.f32 %v3261, 0.0
  %v3276 = vmax.f32 %v3266, 0.0
  %v3277 = vmax.f32 %v3271, 0.0
  %v3278 = vld [vmem:[%s6] sm:$0xf]
  %v3279 = vld [vmem:[%s7] sm:$0xf]
  %v3281 = vsel %vm621, %v3278, 0
  %3283 = vmatprep.subr.mxu0 0.0
  %3284 = vmatpush1.msra.mxu0 %v3274
  %3285 = vmatprep.subr.mxu0 0.0
  %3286 = vmatpush1.msra.mxu0 %v3275
  %3287 = vmatprep.subr.mxu0 0.0
  %3288 = vmatpush1.msra.mxu0 %v3276
  %3289 = vmatprep.subr.mxu0 0.0
  %3290 = vmatpush1.msra.mxu0 %v3277
  %3291 = vmatprep.subr.mxu0 0.0
  %3292 = vmatpush1.msra.mxu0 0.0
  %3293 = vmatprep.subr.mxu0 0.0
  %3294 = vmatpush1.msra.mxu0 0.0
  %3295 = vmatprep.subr.mxu0 0.0
  %3296 = vmatpush1.msra.mxu0 0.0
  %3297 = vmatprep.subr.mxu0 0.0
  %3298 = vmatpush1.msra.mxu0 0.0
  %3299 = vmatprep.subr.mxu0 0.0
  %3300 = vmatpush1.msra.mxu0 0.0
  %3301 = vmatprep.subr.mxu0 0.0
  %3302 = vmatpush1.msra.mxu0 0.0
  %3303 = vmatprep.subr.mxu0 0.0
  %3304 = vmatpush1.msra.mxu0 0.0
  %3305 = vmatprep.subr.mxu0 0.0
  %3306 = vmatpush1.msra.mxu0 0.0
  %3307 = vmatprep.subr.mxu0 0.0
  %3308 = vmatpush1.msra.mxu0 0.0
  %3309 = vmatprep.subr.mxu0 0.0
  %3310 = vmatpush1.msra.mxu0 0.0
  %3311 = vmatprep.subr.mxu0 0.0
  %3312 = vmatpush1.msra.mxu0 0.0
  %3313 = vmatprep.subr.mxu0 0.0
  %3314 = vmatpush1.msra.mxu0 0.0
  %3315 = vmatprep.subr.mxu0 0.0
  %3316 = vmatpush1.msra.mxu0 0.0
  %3317 = vmatprep.subr.mxu0 0.0
  %3318 = vmatpush1.msra.mxu0 0.0
  %3319 = vmatprep.subr.mxu0 0.0
  %3320 = vmatpush1.msra.mxu0 0.0
  %3321 = vmatprep.subr.mxu0 0.0
  %3322 = vmatpush1.msra.mxu0 0.0
  %3323 = vmatprep.subr.mxu0 0.0
  %3324 = vmatpush1.msra.mxu0 0.0
  %3325 = vmatprep.subr.mxu0 0.0
  %3326 = vmatpush1.msra.mxu0 0.0
  %3327 = vmatprep.subr.mxu0 0.0
  %3328 = vmatpush1.msra.mxu0 0.0
  %3329 = vmatprep.subr.mxu0 0.0
  %3330 = vmatpush1.msra.mxu0 0.0
  %3331 = vmatprep.subr.mxu0 0.0
  %3332 = vmatpush1.msra.mxu0 0.0
  %3333 = vmatprep.subr.mxu0 0.0
  %3334 = vmatpush1.msra.mxu0 0.0
  %3335 = vmatprep.subr.mxu0 0.0
  %3336 = vmatpush1.msra.mxu0 0.0
  %3337 = vmatprep.subr.mxu0 0.0
  %3338 = vmatpush1.msra.mxu0 0.0
  %3339 = vmatprep.subr.mxu0 0.0
  %3340 = vmatpush1.msra.mxu0 0.0
  %3341 = vmatprep.subr.mxu0 0.0
  %3342 = vmatpush1.msra.mxu0 0.0
  %3343 = vmatprep.subr.mxu0 0.0
  %3344 = vmatpush1.msra.mxu0 0.0
  %3345 = vmatprep.subr.mxu0 0.0
  %3346 = vmatpush1.msra.mxu0 0.0
  %3347 = vmatprep.mubr.f32.mxu0 0.0
  %3348 = vmatmul.mubr.f32.gmra.mrb[0].mxu0 %v3281
  %v3349 = vpop.f32.mrb[0].mxu0
  %v3350 = vadd.f32 %v3279, %v3349
  %v3351 = vpop.f32.mrb[0].mxu0
  %3352 = vdwg.mxu0
  %vm3353 = vcmask 3072
  %3354 = vst.msk [vmem:[%s8] sm:$0xf] %vm3353, %v3350
  // Predicated region
  $region34: #{tpu_custom_call.1} parent=0 // pred_check
    _
  $region35: #{tpu_custom_call.1} parent=0 // pred_check_branch
    %3356 = sbr.rel (0) target = $region37
  $region36: #{tpu_custom_call.1} parent=0 // pred_region
    _
  $region37: #{tpu_custom_call.1} parent=0 // pred_fallthru
    _
  // Predicated region
  $region38: #{tpu_custom_call.1} parent=0 // pred_check
    _
  $region39: #{tpu_custom_call.1} parent=0 // pred_check_branch
    %3358 = sbr.rel (0) target = $region41
  $region40: #{tpu_custom_call.1} parent=0 // pred_region
    _
  $region41: #{tpu_custom_call.1} parent=0 // pred_fallthru
    _

</llo_original>
